<compile_context>
chip_gen: v7x
topology: tpu7x:2x2x1
jax: 0.10.0
libtpu: 0.0.40
codegen_flags: <defaults>
</compile_context>

<pallas_src>
import numpy as np
import jax
import jax.numpy as jnp
from jax import lax
from jax.experimental import pallas as pl
from jax.experimental.pallas import tpu as pltpu


# ------------------------------ fused kernel ------------------------------

def _lenet_kernel(x_ref, bw1_ref, b1_ref, bw2_ref, b2_ref,
                  w1fc_ref, bfc1_ref, w2fc_ref, bfc2_ref, w3fc_ref, bfc3_ref,
                  out_ref):
    f32, bf16 = jnp.float32, jnp.bfloat16
    TB = out_ref.shape[0]          # samples per grid step
    NL = x_ref.shape[1]            # TB * 32 lanes (sample-major, column-minor)

    def shl(a, s):                 # lane shift-left by s (wrapped lanes unused)
        if s == 0:
            return a
        return jnp.concatenate([a[:, s:], a[:, :s]], axis=1)

    def shu(a):                    # sublane (row) shift-up by 1 (wrap unused)
        return jnp.concatenate([a[1:, :], a[:1, :]], axis=0)

    # ---------------- conv1: one K-packed matmul + bias + ReLU ----------------
    x = x_ref[...]                                                   # (96, NL) bf16
    xs = jnp.concatenate([shl(x, dw) for dw in range(5)], axis=0)    # (480, NL)
    y1 = jnp.dot(bw1_ref[...], xs, preferred_element_type=f32)       # (192, NL)
    y1 = jnp.maximum(y1 + b1_ref[...], 0.0).astype(bf16)

    # -------- 2x2 max-pool (stage 1), un-compacted: valid at even row/lane ----
    p1 = jnp.maximum(y1, shu(y1))
    p1 = jnp.maximum(p1, shl(p1, 1))                                 # (192, NL) bf16

    # ---------------- conv2: one K-packed matmul + bias + ReLU ----------------
    ps = jnp.concatenate([shl(p1, 2 * dw) for dw in range(5)], axis=0)  # (960, NL)
    y2 = jnp.dot(bw2_ref[...], ps, preferred_element_type=f32)       # (160, NL)
    y2 = jnp.maximum(y2 + b2_ref[...], 0.0).astype(bf16)

    # -------- 2x2 max-pool (stage 2), un-compacted ----------------------------
    p2 = jnp.maximum(y2, shu(y2))
    p2 = jnp.maximum(p2, shl(p2, 2))                                 # (160, NL) bf16

    # -------- gather pooled features via 5 tiny selection matmuls -------------
    # feature (oc, ph, pw=q) of sample b sits at p2[10*oc + 2*ph, 32*b + 4*q].
    lane = lax.broadcasted_iota(jnp.int32, (NL, TB), 0)
    samp = lax.broadcasted_iota(jnp.int32, (NL, TB), 1)
    parts = []
    for q in range(5):
        sel = (lane == samp * 32 + 4 * q).astype(bf16)               # (NL, TB)
        parts.append(jnp.dot(p2, sel, preferred_element_type=f32))   # (160, TB)
    feat = jnp.concatenate(parts, axis=0).astype(bf16)               # (800, TB)

    # -------- fc1 -> ReLU -> fc2 -> ReLU -> fc3 (batch on lanes) --------------
    h1 = jnp.dot(w1fc_ref[...], feat, preferred_element_type=f32) + bfc1_ref[...]
    h1 = jnp.maximum(h1, 0.0).astype(bf16)                           # (128, TB)
    h2 = jnp.dot(w2fc_ref[...], h1, preferred_element_type=f32) + bfc2_ref[...]
    h2 = jnp.maximum(h2, 0.0).astype(bf16)                           # (128, TB)
    lt = jnp.dot(w3fc_ref[...], h2, preferred_element_type=f32) + bfc3_ref[...]

    # -------- transpose logits (128, TB) -> (TB, 128) with an identity matmul -
    eye = (lax.broadcasted_iota(jnp.int32, (TB, TB), 0) ==
           lax.broadcasted_iota(jnp.int32, (TB, TB), 1)).astype(bf16)
    out_ref[...] = lax.dot_general(eye, lt.astype(bf16),
                                   (((1,), (1,)), ((), ())),
                                   preferred_element_type=f32)       # (TB, 128)


# ------------------------------ host wrappers ------------------------------

def init_lenet_params(key):
    """PyTorch-style uniform(+-1/sqrt(fan_in)) init, PyTorch layouts."""
    def uni(k, shape, fan_in):
        bound = 1.0 / jnp.sqrt(fan_in)
        return jax.random.uniform(k, shape, jnp.float32, -bound, bound)

    ks = jax.random.split(key, 10)
    return {
        "conv1_w": uni(ks[0], (6, 3, 5, 5), 3 * 5 * 5),
        "conv1_b": uni(ks[1], (6,), 3 * 5 * 5),
        "conv2_w": uni(ks[2], (16, 6, 5, 5), 6 * 5 * 5),
        "conv2_b": uni(ks[3], (16,), 6 * 5 * 5),
        "fc1_w": uni(ks[4], (120, 400), 400),   # PyTorch Linear: (out, in)
        "fc1_b": uni(ks[5], (120,), 400),
        "fc2_w": uni(ks[6], (84, 120), 120),
        "fc2_b": uni(ks[7], (84,), 120),
        "fc3_w": uni(ks[8], (10, 84), 84),
        "fc3_b": uni(ks[9], (10,), 84),
    }


def pack_params(p):
    """One-time packing into banded / K-stacked matmul weights (bf16)."""
    f32 = np.float32
    w1 = np.asarray(p["conv1_w"], f32)     # (6, 3, 5, 5)   OIHW
    w2 = np.asarray(p["conv2_w"], f32)     # (16, 6, 5, 5)
    fc1w = np.asarray(p["fc1_w"], f32)     # (120, 400)
    fc2w = np.asarray(p["fc2_w"], f32)     # (84, 120)
    fc3w = np.asarray(p["fc3_w"], f32)     # (10, 84)

    # conv1 band: row = oc*32 + oh, col = dw*96 + ic*32 + h ; nonzero for h = oh+dh.
    bw1 = np.zeros((6, 32, 5, 3, 32), f32)
    for oh in range(28):
        for dh in range(5):
            bw1[:, oh, :, :, oh + dh] = np.transpose(w1[:, :, dh, :], (0, 2, 1))
    bw1 = bw1.reshape(192, 480)

    # conv2 band: row = oc*10 + oh2, col = dw*192 + ic*32 + h ; h = 2*(oh2+dh)
    # (the factor 2 absorbs the stride-2 of the un-compacted pool1).
    bw2 = np.zeros((16, 10, 5, 6, 32), f32)
    for oh2 in range(10):
        for dh in range(5):
            bw2[:, oh2, :, :, 2 * (oh2 + dh)] = np.transpose(w2[:, :, dh, :], (0, 2, 1))
    bw2 = bw2.reshape(160, 960)

    # fc1: col = q*160 + oc*10 + oh2u ; nonzero only at even oh2u = 2*ph.
    fc1r = fc1w.reshape(120, 16, 5, 5)                 # [j, oc, ph, pw]
    w1fc = np.zeros((128, 5, 16, 10), f32)             # [j, q(=pw), oc, oh2u]
    for ph in range(5):
        w1fc[:120, :, :, 2 * ph] = np.transpose(fc1r[:, :, ph, :], (0, 2, 1))
    w1fc = w1fc.reshape(128, 800)

    w2fc = np.zeros((128, 128), f32); w2fc[:84, :120] = fc2w
    w3fc = np.zeros((128, 128), f32); w3fc[:10, :84] = fc3w

    b1 = np.repeat(np.asarray(p["conv1_b"], f32), 32).reshape(192, 1)
    b2 = np.repeat(np.asarray(p["conv2_b"], f32), 10).reshape(160, 1)
    bfc1 = np.zeros((128, 1), f32); bfc1[:120, 0] = np.asarray(p["fc1_b"], f32)
    bfc2 = np.zeros((128, 1), f32); bfc2[:84, 0] = np.asarray(p["fc2_b"], f32)
    bfc3 = np.zeros((128, 1), f32); bfc3[:10, 0] = np.asarray(p["fc3_b"], f32)

    bf16 = jnp.bfloat16
    return {
        "bw1": jnp.asarray(bw1, bf16), "b1": jnp.asarray(b1),
        "bw2": jnp.asarray(bw2, bf16), "b2": jnp.asarray(b2),
        "w1fc": jnp.asarray(w1fc, bf16), "bfc1": jnp.asarray(bfc1),
        "w2fc": jnp.asarray(w2fc, bf16), "bfc2": jnp.asarray(bfc2),
        "w3fc": jnp.asarray(w3fc, bf16), "bfc3": jnp.asarray(bfc3),
    }


def lenet_forward(packed, x_nchw, *, batch_tile=32):
    """x_nchw: (B, 3, 32, 32) f32  ->  logits (B, 10) f32."""
    B = x_nchw.shape[0]
    B_pad = ((B + 7) // 8) * 8
    TB = min(batch_tile, B_pad)
    if TB == B_pad and B_pad >= 16:
        # Prefer >=2 grid steps so a 2-TensorCore chip (v7x) gets both cores busy.
        TB = max(8, (B_pad // 2) // 8 * 8)
    nb = -(-B_pad // TB)
    B_pad = nb * TB
    NL = TB * 32

    # bf16 input, layout (96, B_pad*32): row = ic*32 + h, lane = b*32 + w.
    x = x_nchw.astype(jnp.bfloat16)
    x = jnp.pad(x, ((0, B_pad - B), (0, 0), (0, 0), (0, 0)))
    x = jnp.transpose(x, (1, 2, 0, 3)).reshape(96, B_pad * 32)

    out = pl.pallas_call(
        _lenet_kernel,
        out_shape=jax.ShapeDtypeStruct((B_pad, 128), jnp.float32),
        grid_spec=pltpu.PrefetchScalarGridSpec(
            num_scalar_prefetch=0,
            grid=(nb,),
            in_specs=[
                pl.BlockSpec((96, NL), lambda i: (0, i)),      # input slab
                pl.BlockSpec((192, 480), lambda i: (0, 0)),    # conv1 band
                pl.BlockSpec((192, 1), lambda i: (0, 0)),
                pl.BlockSpec((160, 960), lambda i: (0, 0)),    # conv2 band
                pl.BlockSpec((160, 1), lambda i: (0, 0)),
                pl.BlockSpec((128, 800), lambda i: (0, 0)),    # fc1
                pl.BlockSpec((128, 1), lambda i: (0, 0)),
                pl.BlockSpec((128, 128), lambda i: (0, 0)),    # fc2
                pl.BlockSpec((128, 1), lambda i: (0, 0)),
                pl.BlockSpec((128, 128), lambda i: (0, 0)),    # fc3
                pl.BlockSpec((128, 1), lambda i: (0, 0)),
            ],
            out_specs=pl.BlockSpec((TB, 128), lambda i: (i, 0)),
        ),
        compiler_params=pltpu.CompilerParams(
            dimension_semantics=("parallel",),
            vmem_limit_bytes=48 * 1024 * 1024,   # peak use is ~4-12 MB; < 64 MiB (v7x)
        ),
    )(x, packed["bw1"], packed["b1"], packed["bw2"], packed["b2"],
      packed["w1fc"], packed["bfc1"], packed["w2fc"], packed["bfc2"],
      packed["w3fc"], packed["bfc3"])

    return out[:B, :10]


def _lenet_reference(params, x_nchw):
    """Pure-JAX f32 reference (weights/input rounded to bf16 like the kernel)."""
    f32 = jnp.float32
    rd = lambda a: a.astype(jnp.bfloat16).astype(f32)
    dn = ("NCHW", "OIHW", "NCHW")
    y = lax.conv_general_dilated(rd(x_nchw), rd(params["conv1_w"]), (1, 1),
                                 "VALID", dimension_numbers=dn)
    y = jnp.maximum(y + params["conv1_b"][None, :, None, None], 0.0)
    y = lax.reduce_window(y, -jnp.inf, lax.max, (1, 1, 2, 2), (1, 1, 2, 2), "VALID")
    y = lax.conv_general_dilated(y, rd(params["conv2_w"]), (1, 1),
                                 "VALID", dimension_numbers=dn)
    y = jnp.maximum(y + params["conv2_b"][None, :, None, None], 0.0)
    y = lax.reduce_window(y, -jnp.inf, lax.max, (1, 1, 2, 2), (1, 1, 2, 2), "VALID")
    y = y.reshape(y.shape[0], -1)
    y = jnp.maximum(y @ rd(params["fc1_w"]).T + params["fc1_b"], 0.0)
    y = jnp.maximum(y @ rd(params["fc2_w"]).T + params["fc2_b"], 0.0)
    return y @ rd(params["fc3_w"]).T + params["fc3_b"]


if __name__ == "__main__":
    key = jax.random.PRNGKey(0)
    pkey, xkey = jax.random.split(key)
    params = init_lenet_params(pkey)
    packed = pack_params(params)            # one-time weight pre-packing
    # CIFAR-10 shaped input (fc1 = 16*5*5 fixes the spatial size to 32x32);
    # B=13 exercises batch padding and a multi-step grid.
    x = jax.random.normal(xkey, (13, 3, 32, 32), dtype=jnp.float32)

    fwd = jax.jit(lenet_forward)
    logits = fwd(packed, x)
    jax.block_until_ready(logits)

    assert logits.shape == (13, 10) and logits.dtype == jnp.float32
    assert bool(jnp.all(jnp.isfinite(logits)))

    ref = _lenet_reference(params, x)
    max_err = float(jnp.max(jnp.abs(logits - ref)))
    assert bool(jnp.allclose(logits, ref, atol=3e-2, rtol=3e-2)), \
        f"kernel/reference mismatch, max abs err = {max_err}"
    print("KERNEL_OK")
</pallas_src>

<mosaic_0001>
module attributes {stable_mosaic.version = 11 : i64} {
  func.func @_lenet_kernel(%arg0: i32, %arg1: memref<96x256xbf16, #tpu.memory_space<vmem>>, %arg2: memref<192x480xbf16, #tpu.memory_space<vmem>>, %arg3: memref<192x1xf32, #tpu.memory_space<vmem>>, %arg4: memref<160x960xbf16, #tpu.memory_space<vmem>>, %arg5: memref<160x1xf32, #tpu.memory_space<vmem>>, %arg6: memref<128x800xbf16, #tpu.memory_space<vmem>>, %arg7: memref<128x1xf32, #tpu.memory_space<vmem>>, %arg8: memref<128x128xbf16, #tpu.memory_space<vmem>>, %arg9: memref<128x1xf32, #tpu.memory_space<vmem>>, %arg10: memref<128x128xbf16, #tpu.memory_space<vmem>>, %arg11: memref<128x1xf32, #tpu.memory_space<vmem>>, %arg12: memref<8x128xf32, #tpu.memory_space<vmem>>) attributes {dimension_semantics = [#tpu.dimension_semantics<parallel>], iteration_bounds = array<i64: 2>, scalar_prefetch = 0 : i64, scratch_operands = 0 : i64, tpu.core_type = #tpu.core_type<tc>, window_params = [{transform_indices = @transform_0, window_bounds = array<i64: 96, 256>}, {pipeline_mode = #tpu.pipeline_mode<synchronous>, transform_indices = @transform_1, window_bounds = array<i64: 192, 480>}, {pipeline_mode = #tpu.pipeline_mode<synchronous>, transform_indices = @transform_2, window_bounds = array<i64: 192, 1>}, {pipeline_mode = #tpu.pipeline_mode<synchronous>, transform_indices = @transform_3, window_bounds = array<i64: 160, 960>}, {pipeline_mode = #tpu.pipeline_mode<synchronous>, transform_indices = @transform_4, window_bounds = array<i64: 160, 1>}, {pipeline_mode = #tpu.pipeline_mode<synchronous>, transform_indices = @transform_5, window_bounds = array<i64: 128, 800>}, {pipeline_mode = #tpu.pipeline_mode<synchronous>, transform_indices = @transform_6, window_bounds = array<i64: 128, 1>}, {pipeline_mode = #tpu.pipeline_mode<synchronous>, transform_indices = @transform_7, window_bounds = array<i64: 128, 128>}, {pipeline_mode = #tpu.pipeline_mode<synchronous>, transform_indices = @transform_8, window_bounds = array<i64: 128, 1>}, {pipeline_mode = #tpu.pipeline_mode<synchronous>, transform_indices = @transform_9, window_bounds = array<i64: 128, 128>}, {pipeline_mode = #tpu.pipeline_mode<synchronous>, transform_indices = @transform_10, window_bounds = array<i64: 128, 1>}, {transform_indices = @transform_11, window_bounds = array<i64: 8, 128>}]} {
    %c0 = arith.constant 0 : index
    %c0_0 = arith.constant 0 : index
    %0 = vector.load %arg1[%c0, %c0_0] : memref<96x256xbf16, #tpu.memory_space<vmem>>, vector<96x256xbf16>
    %1 = vector.extract_strided_slice %0 {offsets = [0, 1], sizes = [96, 255], strides = [1, 1]} : vector<96x256xbf16> to vector<96x255xbf16>
    %2 = vector.extract_strided_slice %0 {offsets = [0, 0], sizes = [96, 1], strides = [1, 1]} : vector<96x256xbf16> to vector<96x1xbf16>
    %3 = tpu.concatenate %1, %2 in 1 : vector<96x255xbf16>, vector<96x1xbf16> -> vector<96x256xbf16>
    %4 = vector.extract_strided_slice %0 {offsets = [0, 2], sizes = [96, 254], strides = [1, 1]} : vector<96x256xbf16> to vector<96x254xbf16>
    %5 = vector.extract_strided_slice %0 {offsets = [0, 0], sizes = [96, 2], strides = [1, 1]} : vector<96x256xbf16> to vector<96x2xbf16>
    %6 = tpu.concatenate %4, %5 in 1 : vector<96x254xbf16>, vector<96x2xbf16> -> vector<96x256xbf16>
    %7 = vector.extract_strided_slice %0 {offsets = [0, 3], sizes = [96, 253], strides = [1, 1]} : vector<96x256xbf16> to vector<96x253xbf16>
    %8 = vector.extract_strided_slice %0 {offsets = [0, 0], sizes = [96, 3], strides = [1, 1]} : vector<96x256xbf16> to vector<96x3xbf16>
    %9 = tpu.concatenate %7, %8 in 1 : vector<96x253xbf16>, vector<96x3xbf16> -> vector<96x256xbf16>
    %10 = vector.extract_strided_slice %0 {offsets = [0, 4], sizes = [96, 252], strides = [1, 1]} : vector<96x256xbf16> to vector<96x252xbf16>
    %11 = vector.extract_strided_slice %0 {offsets = [0, 0], sizes = [96, 4], strides = [1, 1]} : vector<96x256xbf16> to vector<96x4xbf16>
    %12 = tpu.concatenate %10, %11 in 1 : vector<96x252xbf16>, vector<96x4xbf16> -> vector<96x256xbf16>
    %13 = tpu.concatenate %0, %3, %6, %9, %12 in 0 : vector<96x256xbf16>, vector<96x256xbf16>, vector<96x256xbf16>, vector<96x256xbf16>, vector<96x256xbf16> -> vector<480x256xbf16>
    %c0_1 = arith.constant 0 : index
    %c0_2 = arith.constant 0 : index
    %14 = vector.load %arg2[%c0_1, %c0_2] : memref<192x480xbf16, #tpu.memory_space<vmem>>, vector<192x480xbf16>
    %cst = arith.constant dense<0.000000e+00> : vector<192x256xf32>
    %15 = tpu.matmul %14, %13, %cst {dimension_numbers = #tpu.dot_dimension_numbers<[1], [0], [0], [1], [0, 0, 1, 1], [], []>} : vector<192x480xbf16>, vector<480x256xbf16>, vector<192x256xf32> -> vector<192x256xf32>
    %c0_3 = arith.constant 0 : index
    %c0_4 = arith.constant 0 : index
    %16 = vector.load %arg3[%c0_3, %c0_4] : memref<192x1xf32, #tpu.memory_space<vmem>>, vector<192x1xf32>
    %17 = vector.broadcast %16 : vector<192x1xf32> to vector<192x256xf32>
    %18 = arith.addf %15, %17 : vector<192x256xf32>
    %cst_5 = arith.constant 0.000000e+00 : f32
    %19 = vector.broadcast %cst_5 : f32 to vector<192x256xf32>
    %20 = arith.maximumf %18, %19 : vector<192x256xf32>
    %21 = arith.truncf %20 : vector<192x256xf32> to vector<192x256xbf16>
    %22 = vector.extract_strided_slice %21 {offsets = [1, 0], sizes = [191, 256], strides = [1, 1]} : vector<192x256xbf16> to vector<191x256xbf16>
    %23 = vector.extract_strided_slice %21 {offsets = [0, 0], sizes = [1, 256], strides = [1, 1]} : vector<192x256xbf16> to vector<1x256xbf16>
    %24 = tpu.concatenate %22, %23 in 0 : vector<191x256xbf16>, vector<1x256xbf16> -> vector<192x256xbf16>
    %25 = arith.maximumf %21, %24 : vector<192x256xbf16>
    %26 = vector.extract_strided_slice %25 {offsets = [0, 1], sizes = [192, 255], strides = [1, 1]} : vector<192x256xbf16> to vector<192x255xbf16>
    %27 = vector.extract_strided_slice %25 {offsets = [0, 0], sizes = [192, 1], strides = [1, 1]} : vector<192x256xbf16> to vector<192x1xbf16>
    %28 = tpu.concatenate %26, %27 in 1 : vector<192x255xbf16>, vector<192x1xbf16> -> vector<192x256xbf16>
    %29 = arith.maximumf %25, %28 : vector<192x256xbf16>
    %30 = vector.extract_strided_slice %29 {offsets = [0, 2], sizes = [192, 254], strides = [1, 1]} : vector<192x256xbf16> to vector<192x254xbf16>
    %31 = vector.extract_strided_slice %29 {offsets = [0, 0], sizes = [192, 2], strides = [1, 1]} : vector<192x256xbf16> to vector<192x2xbf16>
    %32 = tpu.concatenate %30, %31 in 1 : vector<192x254xbf16>, vector<192x2xbf16> -> vector<192x256xbf16>
    %33 = vector.extract_strided_slice %29 {offsets = [0, 4], sizes = [192, 252], strides = [1, 1]} : vector<192x256xbf16> to vector<192x252xbf16>
    %34 = vector.extract_strided_slice %29 {offsets = [0, 0], sizes = [192, 4], strides = [1, 1]} : vector<192x256xbf16> to vector<192x4xbf16>
    %35 = tpu.concatenate %33, %34 in 1 : vector<192x252xbf16>, vector<192x4xbf16> -> vector<192x256xbf16>
    %36 = vector.extract_strided_slice %29 {offsets = [0, 6], sizes = [192, 250], strides = [1, 1]} : vector<192x256xbf16> to vector<192x250xbf16>
    %37 = vector.extract_strided_slice %29 {offsets = [0, 0], sizes = [192, 6], strides = [1, 1]} : vector<192x256xbf16> to vector<192x6xbf16>
    %38 = tpu.concatenate %36, %37 in 1 : vector<192x250xbf16>, vector<192x6xbf16> -> vector<192x256xbf16>
    %39 = vector.extract_strided_slice %29 {offsets = [0, 8], sizes = [192, 248], strides = [1, 1]} : vector<192x256xbf16> to vector<192x248xbf16>
    %40 = vector.extract_strided_slice %29 {offsets = [0, 0], sizes = [192, 8], strides = [1, 1]} : vector<192x256xbf16> to vector<192x8xbf16>
    %41 = tpu.concatenate %39, %40 in 1 : vector<192x248xbf16>, vector<192x8xbf16> -> vector<192x256xbf16>
    %42 = tpu.concatenate %29, %32, %35, %38, %41 in 0 : vector<192x256xbf16>, vector<192x256xbf16>, vector<192x256xbf16>, vector<192x256xbf16>, vector<192x256xbf16> -> vector<960x256xbf16>
    %c0_6 = arith.constant 0 : index
    %c0_7 = arith.constant 0 : index
    %43 = vector.load %arg4[%c0_6, %c0_7] : memref<160x960xbf16, #tpu.memory_space<vmem>>, vector<160x960xbf16>
    %cst_8 = arith.constant dense<0.000000e+00> : vector<160x256xf32>
    %44 = tpu.matmul %43, %42, %cst_8 {dimension_numbers = #tpu.dot_dimension_numbers<[1], [0], [0], [1], [0, 0, 1, 1], [], []>} : vector<160x960xbf16>, vector<960x256xbf16>, vector<160x256xf32> -> vector<160x256xf32>
    %c0_9 = arith.constant 0 : index
    %c0_10 = arith.constant 0 : index
    %45 = vector.load %arg5[%c0_9, %c0_10] : memref<160x1xf32, #tpu.memory_space<vmem>>, vector<160x1xf32>
    %46 = vector.broadcast %45 : vector<160x1xf32> to vector<160x256xf32>
    %47 = arith.addf %44, %46 : vector<160x256xf32>
    %cst_11 = arith.constant 0.000000e+00 : f32
    %48 = vector.broadcast %cst_11 : f32 to vector<160x256xf32>
    %49 = arith.maximumf %47, %48 : vector<160x256xf32>
    %50 = arith.truncf %49 : vector<160x256xf32> to vector<160x256xbf16>
    %51 = vector.extract_strided_slice %50 {offsets = [1, 0], sizes = [159, 256], strides = [1, 1]} : vector<160x256xbf16> to vector<159x256xbf16>
    %52 = vector.extract_strided_slice %50 {offsets = [0, 0], sizes = [1, 256], strides = [1, 1]} : vector<160x256xbf16> to vector<1x256xbf16>
    %53 = tpu.concatenate %51, %52 in 0 : vector<159x256xbf16>, vector<1x256xbf16> -> vector<160x256xbf16>
    %54 = arith.maximumf %50, %53 : vector<160x256xbf16>
    %55 = vector.extract_strided_slice %54 {offsets = [0, 2], sizes = [160, 254], strides = [1, 1]} : vector<160x256xbf16> to vector<160x254xbf16>
    %56 = vector.extract_strided_slice %54 {offsets = [0, 0], sizes = [160, 2], strides = [1, 1]} : vector<160x256xbf16> to vector<160x2xbf16>
    %57 = tpu.concatenate %55, %56 in 1 : vector<160x254xbf16>, vector<160x2xbf16> -> vector<160x256xbf16>
    %58 = arith.maximumf %54, %57 : vector<160x256xbf16>
    %59 = tpu.iota {dimensions = array<i32: 0>} : vector<256x8xi32>
    %60 = tpu.iota {dimensions = array<i32: 1>} : vector<256x8xi32>
    %c32_i32 = arith.constant 32 : i32
    %61 = vector.broadcast %c32_i32 : i32 to vector<256x8xi32>
    %62 = arith.muli %60, %61 : vector<256x8xi32>
    %c0_i32 = arith.constant 0 : i32
    %63 = vector.broadcast %c0_i32 : i32 to vector<256x8xi32>
    %64 = arith.addi %62, %63 : vector<256x8xi32>
    %65 = arith.cmpi eq, %59, %64 : vector<256x8xi32>
    %66 = arith.extui %65 : vector<256x8xi1> to vector<256x8xi32>
    %67 = arith.sitofp %66 : vector<256x8xi32> to vector<256x8xf32>
    %68 = arith.truncf %67 : vector<256x8xf32> to vector<256x8xbf16>
    %cst_12 = arith.constant dense<0.000000e+00> : vector<160x8xf32>
    %69 = tpu.matmul %58, %68, %cst_12 {dimension_numbers = #tpu.dot_dimension_numbers<[1], [0], [0], [1], [0, 0, 1, 1], [], []>} : vector<160x256xbf16>, vector<256x8xbf16>, vector<160x8xf32> -> vector<160x8xf32>
    %c32_i32_13 = arith.constant 32 : i32
    %70 = vector.broadcast %c32_i32_13 : i32 to vector<256x8xi32>
    %71 = arith.muli %60, %70 : vector<256x8xi32>
    %c4_i32 = arith.constant 4 : i32
    %72 = vector.broadcast %c4_i32 : i32 to vector<256x8xi32>
    %73 = arith.addi %71, %72 : vector<256x8xi32>
    %74 = arith.cmpi eq, %59, %73 : vector<256x8xi32>
    %75 = arith.extui %74 : vector<256x8xi1> to vector<256x8xi32>
    %76 = arith.sitofp %75 : vector<256x8xi32> to vector<256x8xf32>
    %77 = arith.truncf %76 : vector<256x8xf32> to vector<256x8xbf16>
    %cst_14 = arith.constant dense<0.000000e+00> : vector<160x8xf32>
    %78 = tpu.matmul %58, %77, %cst_14 {dimension_numbers = #tpu.dot_dimension_numbers<[1], [0], [0], [1], [0, 0, 1, 1], [], []>} : vector<160x256xbf16>, vector<256x8xbf16>, vector<160x8xf32> -> vector<160x8xf32>
    %c32_i32_15 = arith.constant 32 : i32
    %79 = vector.broadcast %c32_i32_15 : i32 to vector<256x8xi32>
    %80 = arith.muli %60, %79 : vector<256x8xi32>
    %c8_i32 = arith.constant 8 : i32
    %81 = vector.broadcast %c8_i32 : i32 to vector<256x8xi32>
    %82 = arith.addi %80, %81 : vector<256x8xi32>
    %83 = arith.cmpi eq, %59, %82 : vector<256x8xi32>
    %84 = arith.extui %83 : vector<256x8xi1> to vector<256x8xi32>
    %85 = arith.sitofp %84 : vector<256x8xi32> to vector<256x8xf32>
    %86 = arith.truncf %85 : vector<256x8xf32> to vector<256x8xbf16>
    %cst_16 = arith.constant dense<0.000000e+00> : vector<160x8xf32>
    %87 = tpu.matmul %58, %86, %cst_16 {dimension_numbers = #tpu.dot_dimension_numbers<[1], [0], [0], [1], [0, 0, 1, 1], [], []>} : vector<160x256xbf16>, vector<256x8xbf16>, vector<160x8xf32> -> vector<160x8xf32>
    %c32_i32_17 = arith.constant 32 : i32
    %88 = vector.broadcast %c32_i32_17 : i32 to vector<256x8xi32>
    %89 = arith.muli %60, %88 : vector<256x8xi32>
    %c12_i32 = arith.constant 12 : i32
    %90 = vector.broadcast %c12_i32 : i32 to vector<256x8xi32>
    %91 = arith.addi %89, %90 : vector<256x8xi32>
    %92 = arith.cmpi eq, %59, %91 : vector<256x8xi32>
    %93 = arith.extui %92 : vector<256x8xi1> to vector<256x8xi32>
    %94 = arith.sitofp %93 : vector<256x8xi32> to vector<256x8xf32>
    %95 = arith.truncf %94 : vector<256x8xf32> to vector<256x8xbf16>
    %cst_18 = arith.constant dense<0.000000e+00> : vector<160x8xf32>
    %96 = tpu.matmul %58, %95, %cst_18 {dimension_numbers = #tpu.dot_dimension_numbers<[1], [0], [0], [1], [0, 0, 1, 1], [], []>} : vector<160x256xbf16>, vector<256x8xbf16>, vector<160x8xf32> -> vector<160x8xf32>
    %c32_i32_19 = arith.constant 32 : i32
    %97 = vector.broadcast %c32_i32_19 : i32 to vector<256x8xi32>
    %98 = arith.muli %60, %97 : vector<256x8xi32>
    %c16_i32 = arith.constant 16 : i32
    %99 = vector.broadcast %c16_i32 : i32 to vector<256x8xi32>
    %100 = arith.addi %98, %99 : vector<256x8xi32>
    %101 = arith.cmpi eq, %59, %100 : vector<256x8xi32>
    %102 = arith.extui %101 : vector<256x8xi1> to vector<256x8xi32>
    %103 = arith.sitofp %102 : vector<256x8xi32> to vector<256x8xf32>
    %104 = arith.truncf %103 : vector<256x8xf32> to vector<256x8xbf16>
    %cst_20 = arith.constant dense<0.000000e+00> : vector<160x8xf32>
    %105 = tpu.matmul %58, %104, %cst_20 {dimension_numbers = #tpu.dot_dimension_numbers<[1], [0], [0], [1], [0, 0, 1, 1], [], []>} : vector<160x256xbf16>, vector<256x8xbf16>, vector<160x8xf32> -> vector<160x8xf32>
    %106 = tpu.concatenate %69, %78, %87, %96, %105 in 0 : vector<160x8xf32>, vector<160x8xf32>, vector<160x8xf32>, vector<160x8xf32>, vector<160x8xf32> -> vector<800x8xf32>
    %107 = arith.truncf %106 : vector<800x8xf32> to vector<800x8xbf16>
    %c0_21 = arith.constant 0 : index
    %c0_22 = arith.constant 0 : index
    %108 = vector.load %arg6[%c0_21, %c0_22] : memref<128x800xbf16, #tpu.memory_space<vmem>>, vector<128x800xbf16>
    %cst_23 = arith.constant dense<0.000000e+00> : vector<128x8xf32>
    %109 = tpu.matmul %108, %107, %cst_23 {dimension_numbers = #tpu.dot_dimension_numbers<[1], [0], [0], [1], [0, 0, 1, 1], [], []>} : vector<128x800xbf16>, vector<800x8xbf16>, vector<128x8xf32> -> vector<128x8xf32>
    %c0_24 = arith.constant 0 : index
    %c0_25 = arith.constant 0 : index
    %110 = vector.load %arg7[%c0_24, %c0_25] : memref<128x1xf32, #tpu.memory_space<vmem>>, vector<128x1xf32>
    %111 = vector.broadcast %110 : vector<128x1xf32> to vector<128x8xf32>
    %112 = arith.addf %109, %111 : vector<128x8xf32>
    %cst_26 = arith.constant 0.000000e+00 : f32
    %113 = vector.broadcast %cst_26 : f32 to vector<128x8xf32>
    %114 = arith.maximumf %112, %113 : vector<128x8xf32>
    %115 = arith.truncf %114 : vector<128x8xf32> to vector<128x8xbf16>
    %c0_27 = arith.constant 0 : index
    %c0_28 = arith.constant 0 : index
    %116 = vector.load %arg8[%c0_27, %c0_28] : memref<128x128xbf16, #tpu.memory_space<vmem>>, vector<128x128xbf16>
    %cst_29 = arith.constant dense<0.000000e+00> : vector<128x8xf32>
    %117 = tpu.matmul %116, %115, %cst_29 {dimension_numbers = #tpu.dot_dimension_numbers<[1], [0], [0], [1], [0, 0, 1, 1], [], []>} : vector<128x128xbf16>, vector<128x8xbf16>, vector<128x8xf32> -> vector<128x8xf32>
    %c0_30 = arith.constant 0 : index
    %c0_31 = arith.constant 0 : index
    %118 = vector.load %arg9[%c0_30, %c0_31] : memref<128x1xf32, #tpu.memory_space<vmem>>, vector<128x1xf32>
    %119 = vector.broadcast %118 : vector<128x1xf32> to vector<128x8xf32>
    %120 = arith.addf %117, %119 : vector<128x8xf32>
    %cst_32 = arith.constant 0.000000e+00 : f32
    %121 = vector.broadcast %cst_32 : f32 to vector<128x8xf32>
    %122 = arith.maximumf %120, %121 : vector<128x8xf32>
    %123 = arith.truncf %122 : vector<128x8xf32> to vector<128x8xbf16>
    %c0_33 = arith.constant 0 : index
    %c0_34 = arith.constant 0 : index
    %124 = vector.load %arg10[%c0_33, %c0_34] : memref<128x128xbf16, #tpu.memory_space<vmem>>, vector<128x128xbf16>
    %cst_35 = arith.constant dense<0.000000e+00> : vector<128x8xf32>
    %125 = tpu.matmul %124, %123, %cst_35 {dimension_numbers = #tpu.dot_dimension_numbers<[1], [0], [0], [1], [0, 0, 1, 1], [], []>} : vector<128x128xbf16>, vector<128x8xbf16>, vector<128x8xf32> -> vector<128x8xf32>
    %c0_36 = arith.constant 0 : index
    %c0_37 = arith.constant 0 : index
    %126 = vector.load %arg11[%c0_36, %c0_37] : memref<128x1xf32, #tpu.memory_space<vmem>>, vector<128x1xf32>
    %127 = vector.broadcast %126 : vector<128x1xf32> to vector<128x8xf32>
    %128 = arith.addf %125, %127 : vector<128x8xf32>
    %129 = tpu.iota {dimensions = array<i32: 0>} : vector<8x8xi32>
    %130 = tpu.iota {dimensions = array<i32: 1>} : vector<8x8xi32>
    %131 = arith.cmpi eq, %129, %130 : vector<8x8xi32>
    %132 = arith.extui %131 : vector<8x8xi1> to vector<8x8xi32>
    %133 = arith.sitofp %132 : vector<8x8xi32> to vector<8x8xf32>
    %134 = arith.truncf %133 : vector<8x8xf32> to vector<8x8xbf16>
    %135 = arith.truncf %128 : vector<128x8xf32> to vector<128x8xbf16>
    %cst_38 = arith.constant dense<0.000000e+00> : vector<8x128xf32>
    %136 = tpu.matmul %134, %135, %cst_38 {dimension_numbers = #tpu.dot_dimension_numbers<[1], [1], [0], [0], [0, 0, 1, 0], [], []>} : vector<8x8xbf16>, vector<128x8xbf16>, vector<8x128xf32> -> vector<8x128xf32>
    %c0_39 = arith.constant 0 : index
    %c0_40 = arith.constant 0 : index
    %137 = vector.load %arg12[%c0_39, %c0_40] : memref<8x128xf32, #tpu.memory_space<vmem>>, vector<8x128xf32>
    tpu.vector_store %arg12[%c0_39, %c0_40], %136 {strides = array<i32>} : memref<8x128xf32, #tpu.memory_space<vmem>>, vector<8x128xf32>,
    return
  }
  func.func @transform_0(%arg0: i32) -> (i32, i32) {
    %c0_i32 = arith.constant 0 : i32
    %c0_i32_0 = arith.constant 0 : i32
    return %c0_i32, %arg0 : i32, i32
  }
  func.func @transform_1(%arg0: i32) -> (i32, i32) {
    %c0_i32 = arith.constant 0 : i32
    %c0_i32_0 = arith.constant 0 : i32
    %c0_i32_1 = arith.constant 0 : i32
    return %c0_i32, %c0_i32_0 : i32, i32
  }
  func.func @transform_2(%arg0: i32) -> (i32, i32) {
    %c0_i32 = arith.constant 0 : i32
    %c0_i32_0 = arith.constant 0 : i32
    %c0_i32_1 = arith.constant 0 : i32
    return %c0_i32, %c0_i32_0 : i32, i32
  }
  func.func @transform_3(%arg0: i32) -> (i32, i32) {
    %c0_i32 = arith.constant 0 : i32
    %c0_i32_0 = arith.constant 0 : i32
    %c0_i32_1 = arith.constant 0 : i32
    return %c0_i32, %c0_i32_0 : i32, i32
  }
  func.func @transform_4(%arg0: i32) -> (i32, i32) {
    %c0_i32 = arith.constant 0 : i32
    %c0_i32_0 = arith.constant 0 : i32
    %c0_i32_1 = arith.constant 0 : i32
    return %c0_i32, %c0_i32_0 : i32, i32
  }
  func.func @transform_5(%arg0: i32) -> (i32, i32) {
    %c0_i32 = arith.constant 0 : i32
    %c0_i32_0 = arith.constant 0 : i32
    %c0_i32_1 = arith.constant 0 : i32
    return %c0_i32, %c0_i32_0 : i32, i32
  }
  func.func @transform_6(%arg0: i32) -> (i32, i32) {
    %c0_i32 = arith.constant 0 : i32
    %c0_i32_0 = arith.constant 0 : i32
    %c0_i32_1 = arith.constant 0 : i32
    return %c0_i32, %c0_i32_0 : i32, i32
  }
  func.func @transform_7(%arg0: i32) -> (i32, i32) {
    %c0_i32 = arith.constant 0 : i32
    %c0_i32_0 = arith.constant 0 : i32
    %c0_i32_1 = arith.constant 0 : i32
    return %c0_i32, %c0_i32_0 : i32, i32
  }
  func.func @transform_8(%arg0: i32) -> (i32, i32) {
    %c0_i32 = arith.constant 0 : i32
    %c0_i32_0 = arith.constant 0 : i32
    %c0_i32_1 = arith.constant 0 : i32
    return %c0_i32, %c0_i32_0 : i32, i32
  }
  func.func @transform_9(%arg0: i32) -> (i32, i32) {
    %c0_i32 = arith.constant 0 : i32
    %c0_i32_0 = arith.constant 0 : i32
    %c0_i32_1 = arith.constant 0 : i32
    return %c0_i32, %c0_i32_0 : i32, i32
  }
  func.func @transform_10(%arg0: i32) -> (i32, i32) {
    %c0_i32 = arith.constant 0 : i32
    %c0_i32_0 = arith.constant 0 : i32
    %c0_i32_1 = arith.constant 0 : i32
    return %c0_i32, %c0_i32_0 : i32, i32
  }
  func.func @transform_11(%arg0: i32) -> (i32, i32) {
    %c0_i32 = arith.constant 0 : i32
    %c0_i32_0 = arith.constant 0 : i32
    return %arg0, %c0_i32 : i32, i32
  }
}

</mosaic_0001>

<llo_original>
// kernel: lenet_forward.1
$region0: #{lenet_forward.1}
  #allocation0 [shape = 'u32[]', space=smem, size = 0x4, offset = 0x4, fixed_abs, tag = 'smem constant byte address 0x4 - core index']
  #allocation1 [shape = 'u32[144,128]{1,0:T(1,128)}', space=vmem, size = 0x12000, scoped, tag = 'internal scratch']
  %s0 = inlined_call_operand.vmem [shape: bf16[96,512], index: 0, kind: input, shape index: {}]
  %s1 = inlined_call_operand.vmem [shape: bf16[192,480], index: 1, kind: input, shape index: {}]
  %s2 = inlined_call_operand.vmem [shape: f32[192,1], index: 2, kind: input, shape index: {}]
  %s3 = inlined_call_operand.vmem [shape: bf16[160,960], index: 3, kind: input, shape index: {}]
  %s4 = inlined_call_operand.vmem [shape: f32[160,1], index: 4, kind: input, shape index: {}]
  %s5 = inlined_call_operand.vmem [shape: bf16[128,800], index: 5, kind: input, shape index: {}]
  %s6 = inlined_call_operand.vmem [shape: f32[128,1], index: 6, kind: input, shape index: {}]
  %s7 = inlined_call_operand.vmem [shape: bf16[128,128], index: 7, kind: input, shape index: {}]
  %s8 = inlined_call_operand.vmem [shape: f32[128,1], index: 8, kind: input, shape index: {}]
  %s9 = inlined_call_operand.vmem [shape: bf16[128,128], index: 9, kind: input, shape index: {}]
  %s10 = inlined_call_operand.vmem [shape: f32[128,1], index: 10, kind: input, shape index: {}]
  %s11 = inlined_call_operand.hbm [shape: f32[16,128], index: 11, kind: output, shape index: {}]
  %s12 = sld [smem:[#allocation0]]
  $region115: #{lenet_forward.1} parent=0
    _
  %s14 = ssub.s32 1, %s12
  %s15 = scalar_select 0, %s14, %s12
  $region1: #{lenet_forward.1} parent=0
    #allocation2 [shape = 'u8[98304]{0}', space=vmem, size = 0x18000, scoped, tag = 'input window, operand 0']
    #allocation3 [shape = 'u8[8192]{0}', space=vmem, size = 0x2000, scoped, tag = 'output window, operand 0']
    #allocation4 [shape = 's32[2]{0}', space=sflag, size = 0x8, scoped, tag = 'scoped memory for lenet_forward.1']
    %16 = vsyncpa [#allocation4], 0
    %s17 = scalar_lea.sflag [#allocation4], 1
    %18 = vsyncpa %s17, 0
    loop: start=0, step=1, limit=4
    $region2: #{lenet_forward.1} parent=1 // loop_pre_header
      _
    $region3: #{lenet_forward.1} parent=1 // loop_header
      %s20 = sphi 0, %s24
      %p21 = scmp.ge.s32.totalorder %s20, 4
      %s30 = sphi 0, %s32
      %s33 = sphi 0, %s30
      %s34 = sphi 0, %s33
      %s50 = sphi 0, %s34
      %s54 = sphi 0, %s54
      %s56 = sphi 0, %s54
      %s57 = sphi 0, %s56
      %s71 = sphi 0, %s57
      %s75 = sphi 0, %s75
      %s77 = sphi 0, %s75
      %s78 = sphi 0, %s77
      %s92 = sphi 0, %s78
      %s96 = sphi 0, %s96
      %s98 = sphi 0, %s96
      %s99 = sphi 0, %s98
      %s113 = sphi 0, %s99
      %s117 = sphi 0, %s117
      %s119 = sphi 0, %s117
      %s120 = sphi 0, %s119
      %s134 = sphi 0, %s120
      %s138 = sphi 0, %s138
      %s140 = sphi 0, %s138
      %s141 = sphi 0, %s140
      %s155 = sphi 0, %s141
      %s159 = sphi 0, %s159
      %s161 = sphi 0, %s159
      %s162 = sphi 0, %s161
      %s176 = sphi 0, %s162
      %s180 = sphi 0, %s180
      %s182 = sphi 0, %s180
      %s183 = sphi 0, %s182
      %s197 = sphi 0, %s183
      %s201 = sphi 0, %s201
      %s203 = sphi 0, %s201
      %s204 = sphi 0, %s203
      %s218 = sphi 0, %s204
      %s222 = sphi 0, %s222
      %s224 = sphi 0, %s222
      %s225 = sphi 0, %s224
      %s239 = sphi 0, %s225
      %s243 = sphi 0, %s243
      %s245 = sphi 0, %s243
      %s246 = sphi 0, %s245
      %s260 = sphi 0, %s246
      %s266 = sphi 0, %s268
      %s269 = sphi 0, %s266
      %s270 = sphi 0, %s269
      %s286 = sphi 0, %s270
    $region4: #{lenet_forward.1} parent=1 // loop_header_branch
      %23 = sbr.rel (%p21) target = $region8
    $region5: #{lenet_forward.1} parent=1 // loop_body
      %s25 = ssub.s32 %s20, 1
      %s26 = ssub.s32 %s20, 2
      %s27 = sadd.s32 %s20, 1
      %s28 = ssub.s32 %s20, %s27
      %p29 = scmp.eq.s32.totalorder %s28, 0
      %s31 = sadd.s32 %s30, 1
      %s32 = scalar_select %p29, %s30, %s31
      %p35 = pneg %p29
      %p36 = scmp.eq.s32.totalorder %s20, 1
      %p37 = por %p35, %p36
      %p38 = scmp.ne.s32.totalorder %s30, %s33
      %p39 = scmp.eq.s32.totalorder %s20, 0
      %p40 = por %p38, %p39
      %p41 = scmp.ne.s32.totalorder %s30, %s33
      %p42 = scmp.eq.s32.totalorder %s25, 1
      %p43 = por %p41, %p42
      %p44 = scmp.ne.s32.totalorder %s33, %s34
      %p45 = scmp.eq.s32.totalorder %s25, 0
      %p46 = por %p44, %p45
      %p47 = scmp.ne.s32.totalorder %s33, %s34
      %p48 = scmp.eq.s32.totalorder %s26, 1
      %p49 = por %p47, %p48
      %p51 = scmp.ne.s32.totalorder %s34, %s50
      %p52 = scmp.eq.s32.totalorder %s26, 0
      %p53 = por %p51, %p52
      %s55 = sadd.s32 %s54, 1
      %p58 = scmp.eq.s32.totalorder %s20, 1
      %p59 = scmp.ne.s32.totalorder %s54, %s56
      %p60 = scmp.eq.s32.totalorder %s20, 0
      %p61 = por %p59, %p60
      %p62 = scmp.ne.s32.totalorder %s54, %s56
      %p63 = scmp.eq.s32.totalorder %s25, 1
      %p64 = por %p62, %p63
      %p65 = scmp.ne.s32.totalorder %s56, %s57
      %p66 = scmp.eq.s32.totalorder %s25, 0
      %p67 = por %p65, %p66
      %p68 = scmp.ne.s32.totalorder %s56, %s57
      %p69 = scmp.eq.s32.totalorder %s26, 1
      %p70 = por %p68, %p69
      %p72 = scmp.ne.s32.totalorder %s57, %s71
      %p73 = scmp.eq.s32.totalorder %s26, 0
      %p74 = por %p72, %p73
      %s76 = sadd.s32 %s75, 1
      %p79 = scmp.eq.s32.totalorder %s20, 1
      %p80 = scmp.ne.s32.totalorder %s75, %s77
      %p81 = scmp.eq.s32.totalorder %s20, 0
      %p82 = por %p80, %p81
      %p83 = scmp.ne.s32.totalorder %s75, %s77
      %p84 = scmp.eq.s32.totalorder %s25, 1
      %p85 = por %p83, %p84
      %p86 = scmp.ne.s32.totalorder %s77, %s78
      %p87 = scmp.eq.s32.totalorder %s25, 0
      %p88 = por %p86, %p87
      %p89 = scmp.ne.s32.totalorder %s77, %s78
      %p90 = scmp.eq.s32.totalorder %s26, 1
      %p91 = por %p89, %p90
      %p93 = scmp.ne.s32.totalorder %s78, %s92
      %p94 = scmp.eq.s32.totalorder %s26, 0
      %p95 = por %p93, %p94
      %s97 = sadd.s32 %s96, 1
      %p100 = scmp.eq.s32.totalorder %s20, 1
      %p101 = scmp.ne.s32.totalorder %s96, %s98
      %p102 = scmp.eq.s32.totalorder %s20, 0
      %p103 = por %p101, %p102
      %p104 = scmp.ne.s32.totalorder %s96, %s98
      %p105 = scmp.eq.s32.totalorder %s25, 1
      %p106 = por %p104, %p105
      %p107 = scmp.ne.s32.totalorder %s98, %s99
      %p108 = scmp.eq.s32.totalorder %s25, 0
      %p109 = por %p107, %p108
      %p110 = scmp.ne.s32.totalorder %s98, %s99
      %p111 = scmp.eq.s32.totalorder %s26, 1
      %p112 = por %p110, %p111
      %p114 = scmp.ne.s32.totalorder %s99, %s113
      %p115 = scmp.eq.s32.totalorder %s26, 0
      %p116 = por %p114, %p115
      %s118 = sadd.s32 %s117, 1
      %p121 = scmp.eq.s32.totalorder %s20, 1
      %p122 = scmp.ne.s32.totalorder %s117, %s119
      %p123 = scmp.eq.s32.totalorder %s20, 0
      %p124 = por %p122, %p123
      %p125 = scmp.ne.s32.totalorder %s117, %s119
      %p126 = scmp.eq.s32.totalorder %s25, 1
      %p127 = por %p125, %p126
      %p128 = scmp.ne.s32.totalorder %s119, %s120
      %p129 = scmp.eq.s32.totalorder %s25, 0
      %p130 = por %p128, %p129
      %p131 = scmp.ne.s32.totalorder %s119, %s120
      %p132 = scmp.eq.s32.totalorder %s26, 1
      %p133 = por %p131, %p132
      %p135 = scmp.ne.s32.totalorder %s120, %s134
      %p136 = scmp.eq.s32.totalorder %s26, 0
      %p137 = por %p135, %p136
      %s139 = sadd.s32 %s138, 1
      %p142 = scmp.eq.s32.totalorder %s20, 1
      %p143 = scmp.ne.s32.totalorder %s138, %s140
      %p144 = scmp.eq.s32.totalorder %s20, 0
      %p145 = por %p143, %p144
      %p146 = scmp.ne.s32.totalorder %s138, %s140
      %p147 = scmp.eq.s32.totalorder %s25, 1
      %p148 = por %p146, %p147
      %p149 = scmp.ne.s32.totalorder %s140, %s141
      %p150 = scmp.eq.s32.totalorder %s25, 0
      %p151 = por %p149, %p150
      %p152 = scmp.ne.s32.totalorder %s140, %s141
      %p153 = scmp.eq.s32.totalorder %s26, 1
      %p154 = por %p152, %p153
      %p156 = scmp.ne.s32.totalorder %s141, %s155
      %p157 = scmp.eq.s32.totalorder %s26, 0
      %p158 = por %p156, %p157
      %s160 = sadd.s32 %s159, 1
      %p163 = scmp.eq.s32.totalorder %s20, 1
      %p164 = scmp.ne.s32.totalorder %s159, %s161
      %p165 = scmp.eq.s32.totalorder %s20, 0
      %p166 = por %p164, %p165
      %p167 = scmp.ne.s32.totalorder %s159, %s161
      %p168 = scmp.eq.s32.totalorder %s25, 1
      %p169 = por %p167, %p168
      %p170 = scmp.ne.s32.totalorder %s161, %s162
      %p171 = scmp.eq.s32.totalorder %s25, 0
      %p172 = por %p170, %p171
      %p173 = scmp.ne.s32.totalorder %s161, %s162
      %p174 = scmp.eq.s32.totalorder %s26, 1
      %p175 = por %p173, %p174
      %p177 = scmp.ne.s32.totalorder %s162, %s176
      %p178 = scmp.eq.s32.totalorder %s26, 0
      %p179 = por %p177, %p178
      %s181 = sadd.s32 %s180, 1
      %p184 = scmp.eq.s32.totalorder %s20, 1
      %p185 = scmp.ne.s32.totalorder %s180, %s182
      %p186 = scmp.eq.s32.totalorder %s20, 0
      %p187 = por %p185, %p186
      %p188 = scmp.ne.s32.totalorder %s180, %s182
      %p189 = scmp.eq.s32.totalorder %s25, 1
      %p190 = por %p188, %p189
      %p191 = scmp.ne.s32.totalorder %s182, %s183
      %p192 = scmp.eq.s32.totalorder %s25, 0
      %p193 = por %p191, %p192
      %p194 = scmp.ne.s32.totalorder %s182, %s183
      %p195 = scmp.eq.s32.totalorder %s26, 1
      %p196 = por %p194, %p195
      %p198 = scmp.ne.s32.totalorder %s183, %s197
      %p199 = scmp.eq.s32.totalorder %s26, 0
      %p200 = por %p198, %p199
      %s202 = sadd.s32 %s201, 1
      %p205 = scmp.eq.s32.totalorder %s20, 1
      %p206 = scmp.ne.s32.totalorder %s201, %s203
      %p207 = scmp.eq.s32.totalorder %s20, 0
      %p208 = por %p206, %p207
      %p209 = scmp.ne.s32.totalorder %s201, %s203
      %p210 = scmp.eq.s32.totalorder %s25, 1
      %p211 = por %p209, %p210
      %p212 = scmp.ne.s32.totalorder %s203, %s204
      %p213 = scmp.eq.s32.totalorder %s25, 0
      %p214 = por %p212, %p213
      %p215 = scmp.ne.s32.totalorder %s203, %s204
      %p216 = scmp.eq.s32.totalorder %s26, 1
      %p217 = por %p215, %p216
      %p219 = scmp.ne.s32.totalorder %s204, %s218
      %p220 = scmp.eq.s32.totalorder %s26, 0
      %p221 = por %p219, %p220
      %s223 = sadd.s32 %s222, 1
      %p226 = scmp.eq.s32.totalorder %s20, 1
      %p227 = scmp.ne.s32.totalorder %s222, %s224
      %p228 = scmp.eq.s32.totalorder %s20, 0
      %p229 = por %p227, %p228
      %p230 = scmp.ne.s32.totalorder %s222, %s224
      %p231 = scmp.eq.s32.totalorder %s25, 1
      %p232 = por %p230, %p231
      %p233 = scmp.ne.s32.totalorder %s224, %s225
      %p234 = scmp.eq.s32.totalorder %s25, 0
      %p235 = por %p233, %p234
      %p236 = scmp.ne.s32.totalorder %s224, %s225
      %p237 = scmp.eq.s32.totalorder %s26, 1
      %p238 = por %p236, %p237
      %p240 = scmp.ne.s32.totalorder %s225, %s239
      %p241 = scmp.eq.s32.totalorder %s26, 0
      %p242 = por %p240, %p241
      %s244 = sadd.s32 %s243, 1
      %p247 = scmp.eq.s32.totalorder %s20, 1
      %p248 = scmp.ne.s32.totalorder %s243, %s245
      %p249 = scmp.eq.s32.totalorder %s20, 0
      %p250 = por %p248, %p249
      %p251 = scmp.ne.s32.totalorder %s243, %s245
      %p252 = scmp.eq.s32.totalorder %s25, 1
      %p253 = por %p251, %p252
      %p254 = scmp.ne.s32.totalorder %s245, %s246
      %p255 = scmp.eq.s32.totalorder %s25, 0
      %p256 = por %p254, %p255
      %p257 = scmp.ne.s32.totalorder %s245, %s246
      %p258 = scmp.eq.s32.totalorder %s26, 1
      %p259 = por %p257, %p258
      %p261 = scmp.ne.s32.totalorder %s246, %s260
      %p262 = scmp.eq.s32.totalorder %s26, 0
      %p263 = por %p261, %p262
      %s264 = ssub.s32 %s20, %s27
      %p265 = scmp.eq.s32.totalorder %s264, 0
      %s267 = sadd.s32 %s266, 1
      %s268 = scalar_select %p265, %s266, %s267
      %p271 = pneg %p265
      %p272 = scmp.eq.s32.totalorder %s20, 1
      %p273 = por %p271, %p272
      %p274 = scmp.ne.s32.totalorder %s266, %s269
      %p275 = scmp.eq.s32.totalorder %s20, 0
      %p276 = por %p274, %p275
      %p277 = scmp.ne.s32.totalorder %s266, %s269
      %p278 = scmp.eq.s32.totalorder %s25, 1
      %p279 = por %p277, %p278
      %p280 = scmp.ne.s32.totalorder %s269, %s270
      %p281 = scmp.eq.s32.totalorder %s25, 0
      %p282 = por %p280, %p281
      %p283 = scmp.ne.s32.totalorder %s269, %s270
      %p284 = scmp.eq.s32.totalorder %s26, 1
      %p285 = por %p283, %p284
      %p287 = scmp.ne.s32.totalorder %s270, %s286
      %p288 = scmp.eq.s32.totalorder %s26, 0
      %p289 = por %p287, %p288
      %p290 = scmp.le.s32.totalorder 1, %s20
      %p291 = scmp.lt.s32.totalorder %s20, 3
      %p292 = pnand %p290, %p291
      %p293 = pneg %p292
      // Predicated region
      $region9: #{lenet_forward.1} parent=5 // pred_check
        _
      $region10: #{lenet_forward.1} parent=5 // pred_check_branch
        %295 = sbr.rel (%p292) target = $region12
      $region11: #{lenet_forward.1} parent=5 // pred_region
        %s296 = ssub.s32 %s20, 1
        // Predicated region
        $region13: #{lenet_forward.1} parent=11 // pred_check
          %p297 = pneg %p67
        $region14: #{lenet_forward.1} parent=11 // pred_check_branch
          %299 = sbr.rel (%p297) target = $region16
        $region15: #{lenet_forward.1} parent=11 // pred_region
          _
        $region16: #{lenet_forward.1} parent=11 // pred_fallthru
          _
        // Predicated region
        $region17: #{lenet_forward.1} parent=11 // pred_check
          %p300 = pneg %p88
        $region18: #{lenet_forward.1} parent=11 // pred_check_branch
          %302 = sbr.rel (%p300) target = $region20
        $region19: #{lenet_forward.1} parent=11 // pred_region
          _
        $region20: #{lenet_forward.1} parent=11 // pred_fallthru
          _
        // Predicated region
        $region21: #{lenet_forward.1} parent=11 // pred_check
          %p303 = pneg %p109
        $region22: #{lenet_forward.1} parent=11 // pred_check_branch
          %305 = sbr.rel (%p303) target = $region24
        $region23: #{lenet_forward.1} parent=11 // pred_region
          _
        $region24: #{lenet_forward.1} parent=11 // pred_fallthru
          _
        // Predicated region
        $region25: #{lenet_forward.1} parent=11 // pred_check
          %p306 = pneg %p130
        $region26: #{lenet_forward.1} parent=11 // pred_check_branch
          %308 = sbr.rel (%p306) target = $region28
        $region27: #{lenet_forward.1} parent=11 // pred_region
          _
        $region28: #{lenet_forward.1} parent=11 // pred_fallthru
          _
        // Predicated region
        $region29: #{lenet_forward.1} parent=11 // pred_check
          %p309 = pneg %p151
        $region30: #{lenet_forward.1} parent=11 // pred_check_branch
          %311 = sbr.rel (%p309) target = $region32
        $region31: #{lenet_forward.1} parent=11 // pred_region
          _
        $region32: #{lenet_forward.1} parent=11 // pred_fallthru
          _
        // Predicated region
        $region33: #{lenet_forward.1} parent=11 // pred_check
          %p312 = pneg %p172
        $region34: #{lenet_forward.1} parent=11 // pred_check_branch
          %314 = sbr.rel (%p312) target = $region36
        $region35: #{lenet_forward.1} parent=11 // pred_region
          _
        $region36: #{lenet_forward.1} parent=11 // pred_fallthru
          _
        // Predicated region
        $region37: #{lenet_forward.1} parent=11 // pred_check
          %p315 = pneg %p193
        $region38: #{lenet_forward.1} parent=11 // pred_check_branch
          %317 = sbr.rel (%p315) target = $region40
        $region39: #{lenet_forward.1} parent=11 // pred_region
          _
        $region40: #{lenet_forward.1} parent=11 // pred_fallthru
          _
        // Predicated region
        $region41: #{lenet_forward.1} parent=11 // pred_check
          %p318 = pneg %p214
        $region42: #{lenet_forward.1} parent=11 // pred_check_branch
          %320 = sbr.rel (%p318) target = $region44
        $region43: #{lenet_forward.1} parent=11 // pred_region
          _
        $region44: #{lenet_forward.1} parent=11 // pred_fallthru
          _
        // Predicated region
        $region45: #{lenet_forward.1} parent=11 // pred_check
          %p321 = pneg %p235
        $region46: #{lenet_forward.1} parent=11 // pred_check_branch
          %323 = sbr.rel (%p321) target = $region48
        $region47: #{lenet_forward.1} parent=11 // pred_region
          _
        $region48: #{lenet_forward.1} parent=11 // pred_fallthru
          _
        // Predicated region
        $region49: #{lenet_forward.1} parent=11 // pred_check
          %p324 = pneg %p256
        $region50: #{lenet_forward.1} parent=11 // pred_check_branch
          %326 = sbr.rel (%p324) target = $region52
        $region51: #{lenet_forward.1} parent=11 // pred_region
          _
        $region52: #{lenet_forward.1} parent=11 // pred_fallthru
          _
      $region12: #{lenet_forward.1} parent=5 // pred_fallthru
        _
      %p327 = scmp.lt.s32.totalorder %s20, 2
      // Predicated region
      $region53: #{lenet_forward.1} parent=5 // pred_check
        %p328 = pneg %p327
      $region54: #{lenet_forward.1} parent=5 // pred_check_branch
        %330 = sbr.rel (%p328) target = $region56
      $region55: #{lenet_forward.1} parent=5 // pred_region
        // Predicated region
        $region57: #{lenet_forward.1} parent=55 // pred_check
          %p331 = pneg %p40
        $region58: #{lenet_forward.1} parent=55 // pred_check_branch
          %333 = sbr.rel (%p331) target = $region60
        $region59: #{lenet_forward.1} parent=55 // pred_region
          %s334 = sand.u32 %s30, 1
          %s335 = sand.u32 %s30, 1
          %s336 = smul.addr %s335, 96
          %s337 = scalar_lea.vmem [#allocation2], %s336
          %s338 = smul.u32 2, %s20
          %s339 = smul.addr %s338, 4
          %s340 = scalar_lea.vmem %s0, %s339
          // Predicated region
          $region61: #{lenet_forward.1} parent=59 // pred_check
            _
          $region62: #{lenet_forward.1} parent=59 // pred_check_branch
            %342 = sbr.rel (0) target = $region64
          $region63: #{lenet_forward.1} parent=59 // pred_region
            // Predicated region
            $region65: #{lenet_forward.1} parent=63 // pred_check
              _
            $region66: #{lenet_forward.1} parent=63 // pred_check_branch
              %344 = sbr.rel (0) target = $region68
            $region67: #{lenet_forward.1} parent=63 // pred_region
              // Predicated region
              $region80: #{lenet_forward.1} parent=67 // pred_check
                _
              $region81: #{lenet_forward.1} parent=67 // pred_check_branch
                %381 = sbr.rel (0) target = $region83
              $region82: #{lenet_forward.1} parent=67 // pred_region
                loop: start=0, step=1, limit=1
                $region84: #{lenet_forward.1} parent=82 // loop_pre_header
                  _
                $region85: #{lenet_forward.1} parent=82 // loop_header
                  %s383 = sphi 0, %s387
                  %p384 = scmp.ge.s32.totalorder %s383, 1
                  %s388 = sphi %s340, %s340
                  %s389 = sphi %s337, %s337
                $region86: #{lenet_forward.1} parent=82 // loop_header_branch
                  %386 = sbr.rel (%p384) target = $region90
                $region87: #{lenet_forward.1} parent=82 // loop_body
                  %v390 = vld [vmem:[%s388] sm:$0xff]
                  %391 = vst [vmem:[%s389] sm:$0xff] %v390
                  %v392 = vld [vmem:[%s388 + $0x10] sm:$0xff]
                  %393 = vst [vmem:[%s389 + $0x8] sm:$0xff] %v392
                  %v394 = vld [vmem:[%s388 + $0x20] sm:$0xff]
                  %395 = vst [vmem:[%s389 + $0x10] sm:$0xff] %v394
                  %v396 = vld [vmem:[%s388 + $0x30] sm:$0xff]
                  %397 = vst [vmem:[%s389 + $0x18] sm:$0xff] %v396
                  %v398 = vld [vmem:[%s388 + $0x40] sm:$0xff]
                  %399 = vst [vmem:[%s389 + $0x20] sm:$0xff] %v398
                  %v400 = vld [vmem:[%s388 + $0x50] sm:$0xff]
                  %401 = vst [vmem:[%s389 + $0x28] sm:$0xff] %v400
                  %v402 = vld [vmem:[%s388 + $0x60] sm:$0xff]
                  %403 = vst [vmem:[%s389 + $0x30] sm:$0xff] %v402
                  %v404 = vld [vmem:[%s388 + $0x70] sm:$0xff]
                  %405 = vst [vmem:[%s389 + $0x38] sm:$0xff] %v404
                  %v406 = vld [vmem:[%s388 + $0x80] sm:$0xff]
                  %407 = vst [vmem:[%s389 + $0x40] sm:$0xff] %v406
                  %v408 = vld [vmem:[%s388 + $0x90] sm:$0xff]
                  %409 = vst [vmem:[%s389 + $0x48] sm:$0xff] %v408
                  %v410 = vld [vmem:[%s388 + $0xa0] sm:$0xff]
                  %411 = vst [vmem:[%s389 + $0x50] sm:$0xff] %v410
                  %v412 = vld [vmem:[%s388 + $0xb0] sm:$0xff]
                  %413 = vst [vmem:[%s389 + $0x58] sm:$0xff] %v412
                $region88: #{lenet_forward.1} parent=82 // loop_footer
                  %s387 = sadd.s32 1, %s383
                $region89: #{lenet_forward.1} parent=82 // loop_footer_branch
                  %382 = sbr.rel target = $region85
                $region90: #{lenet_forward.1} parent=82 // loop_exit
                  _
              $region83: #{lenet_forward.1} parent=67 // pred_fallthru
                _
              // Predicated region
              $region91: #{lenet_forward.1} parent=67 // pred_check
                _
              $region92: #{lenet_forward.1} parent=67 // pred_check_branch
                %415 = sbr.rel target = $region94
              $region93: #{lenet_forward.1} parent=67 // pred_region
                _
              $region94: #{lenet_forward.1} parent=67 // pred_fallthru
                _
            $region68: #{lenet_forward.1} parent=63 // pred_fallthru
              _
            // Predicated region
            $region69: #{lenet_forward.1} parent=63 // pred_check
              _
            $region70: #{lenet_forward.1} parent=63 // pred_check_branch
              %346 = sbr.rel target = $region72
            $region71: #{lenet_forward.1} parent=63 // pred_region
              loop: start=0, step=1, limit=1
              $region73: #{lenet_forward.1} parent=71 // loop_pre_header
                _
              $region74: #{lenet_forward.1} parent=71 // loop_header
                %s349 = sphi 0, %s353
                %p350 = scmp.ge.s32.totalorder %s349, 1
                %s354 = sphi %s340, %s340
                %s355 = sphi %s337, %s337
              $region75: #{lenet_forward.1} parent=71 // loop_header_branch
                %352 = sbr.rel (%p350) target = $region79
              $region76: #{lenet_forward.1} parent=71 // loop_body
                %v356 = vld [vmem:[%s354] sm:$0xff]
                %357 = vst [vmem:[%s355] sm:$0xff] %v356
                %v358 = vld [vmem:[%s354 + $0x10] sm:$0xff]
                %359 = vst [vmem:[%s355 + $0x8] sm:$0xff] %v358
                %v360 = vld [vmem:[%s354 + $0x20] sm:$0xff]
                %361 = vst [vmem:[%s355 + $0x10] sm:$0xff] %v360
                %v362 = vld [vmem:[%s354 + $0x30] sm:$0xff]
                %363 = vst [vmem:[%s355 + $0x18] sm:$0xff] %v362
                %v364 = vld [vmem:[%s354 + $0x40] sm:$0xff]
                %365 = vst [vmem:[%s355 + $0x20] sm:$0xff] %v364
                %v366 = vld [vmem:[%s354 + $0x50] sm:$0xff]
                %367 = vst [vmem:[%s355 + $0x28] sm:$0xff] %v366
                %v368 = vld [vmem:[%s354 + $0x60] sm:$0xff]
                %369 = vst [vmem:[%s355 + $0x30] sm:$0xff] %v368
                %v370 = vld [vmem:[%s354 + $0x70] sm:$0xff]
                %371 = vst [vmem:[%s355 + $0x38] sm:$0xff] %v370
                %v372 = vld [vmem:[%s354 + $0x80] sm:$0xff]
                %373 = vst [vmem:[%s355 + $0x40] sm:$0xff] %v372
                %v374 = vld [vmem:[%s354 + $0x90] sm:$0xff]
                %375 = vst [vmem:[%s355 + $0x48] sm:$0xff] %v374
                %v376 = vld [vmem:[%s354 + $0xa0] sm:$0xff]
                %377 = vst [vmem:[%s355 + $0x50] sm:$0xff] %v376
                %v378 = vld [vmem:[%s354 + $0xb0] sm:$0xff]
                %379 = vst [vmem:[%s355 + $0x58] sm:$0xff] %v378
              $region77: #{lenet_forward.1} parent=71 // loop_footer
                %s353 = sadd.s32 1, %s349
              $region78: #{lenet_forward.1} parent=71 // loop_footer_branch
                %348 = sbr.rel target = $region74
              $region79: #{lenet_forward.1} parent=71 // loop_exit
                _
            $region72: #{lenet_forward.1} parent=63 // pred_fallthru
              _
          $region64: #{lenet_forward.1} parent=59 // pred_fallthru
            _
          %416 = vnop
        $region60: #{lenet_forward.1} parent=55 // pred_fallthru
          _
      $region56: #{lenet_forward.1} parent=5 // pred_fallthru
        _
      %p417 = scmp.le.s32.totalorder 1, %s20
      %p418 = scmp.lt.s32.totalorder %s20, 3
      %p419 = pnand %p417, %p418
      %p420 = pneg %p419
      // Predicated region
      $region95: #{lenet_forward.1} parent=5 // pred_check
        _
      $region96: #{lenet_forward.1} parent=5 // pred_check_branch
        %422 = sbr.rel (%p419) target = $region98
      $region97: #{lenet_forward.1} parent=5 // pred_region
        %s423 = ssub.s32 %s20, 1
        %s424 = sand.u32 %s33, 1
        %s425 = sand.u32 %s33, 1
        %s426 = smul.addr %s425, 96
        %s427 = scalar_lea.vmem [#allocation2], %s426
        // Predicated region
        $region99: #{lenet_forward.1} parent=97 // pred_check
          %p428 = pneg %p46
        $region100: #{lenet_forward.1} parent=97 // pred_check_branch
          %430 = sbr.rel (%p428) target = $region102
        $region101: #{lenet_forward.1} parent=97 // pred_region
          _
        $region102: #{lenet_forward.1} parent=97 // pred_fallthru
          _
        %s431 = sand.u32 %s33, 1
        %s432 = sand.u32 %s33, 1
        %s433 = smul.addr %s432, 96
        %s434 = scalar_lea.vmem [#allocation2], %s433
        %p435 = pneg %p46
        %p436 = pneg %p43
        %p437 = pneg %p67
        %p438 = pneg %p64
        %p439 = pneg %p88
        %p440 = pneg %p85
        %p441 = pneg %p109
        %p442 = pneg %p106
        %p443 = pneg %p130
        %p444 = pneg %p127
        %p445 = pneg %p151
        %p446 = pneg %p148
        %p447 = pneg %p172
        %p448 = pneg %p169
        %p449 = pneg %p193
        %p450 = pneg %p190
        %p451 = pneg %p214
        %p452 = pneg %p211
        %p453 = pneg %p235
        %p454 = pneg %p232
        %p455 = pneg %p256
        %p456 = pneg %p253
        %p457 = pneg %p282
        %p458 = pneg %p279
        %s459 = sand.u32 %s269, 1
        %s460 = scalar_lea.sflag [#allocation4], %s459
        %s461 = sand.u32 %s269, 1
        %s462 = smul.addr %s461, 8
        %s463 = scalar_lea.vmem [#allocation3], %s462
        %s464 = smul.u32 2, %s25
        %v466 = vld [vmem:[%s427] sm:$0xff]
        %v467 = vld [vmem:[%s427 + $0x8] sm:$0xff]
        %v468 = vld [vmem:[%s427 + $0x10] sm:$0xff]
        %v469 = vld [vmem:[%s427 + $0x18] sm:$0xff]
        %v470 = vld [vmem:[%s427 + $0x20] sm:$0xff]
        %v471 = vld [vmem:[%s427 + $0x28] sm:$0xff]
        %v472 = vld [vmem:[%s427 + $0x30] sm:$0xff]
        %v473 = vld [vmem:[%s427 + $0x38] sm:$0xff]
        %v474 = vld [vmem:[%s427 + $0x40] sm:$0xff]
        %v475 = vld [vmem:[%s427 + $0x48] sm:$0xff]
        %v476 = vld [vmem:[%s427 + $0x50] sm:$0xff]
        %v477 = vld [vmem:[%s427 + $0x58] sm:$0xff]
        %v490 = vunpack.c.l.b16 %v466
        %v491 = vunpack.c.h.b16 %v466
        %v492 = vunpack.c.l.b16 %v467
        %v493 = vunpack.c.h.b16 %v467
        %v494 = vunpack.c.l.b16 %v468
        %v495 = vunpack.c.h.b16 %v468
        %v496 = vunpack.c.l.b16 %v469
        %v497 = vunpack.c.h.b16 %v469
        %v498 = vunpack.c.l.b16 %v470
        %v499 = vunpack.c.h.b16 %v470
        %v500 = vunpack.c.l.b16 %v471
        %v501 = vunpack.c.h.b16 %v471
        %v502 = vunpack.c.l.b16 %v472
        %v503 = vunpack.c.h.b16 %v472
        %v504 = vunpack.c.l.b16 %v473
        %v505 = vunpack.c.h.b16 %v473
        %v506 = vunpack.c.l.b16 %v474
        %v507 = vunpack.c.h.b16 %v474
        %v508 = vunpack.c.l.b16 %v475
        %v509 = vunpack.c.h.b16 %v475
        %v510 = vunpack.c.l.b16 %v476
        %v511 = vunpack.c.h.b16 %v476
        %v512 = vunpack.c.l.b16 %v477
        %v513 = vunpack.c.h.b16 %v477
        %v514 = vpack.c.b16 %v492, %v490
        %v515 = vpack.c.b16 %v493, %v491
        %v516 = vpack.c.b16 %v496, %v494
        %v517 = vpack.c.b16 %v497, %v495
        %v518 = vpack.c.b16 %v500, %v498
        %v519 = vpack.c.b16 %v501, %v499
        %v520 = vpack.c.b16 %v504, %v502
        %v521 = vpack.c.b16 %v505, %v503
        %v522 = vpack.c.b16 %v508, %v506
        %v523 = vpack.c.b16 %v509, %v507
        %v524 = vpack.c.b16 %v512, %v510
        %v525 = vpack.c.b16 %v513, %v511
        %526 = vrot.lane.b32.xlu0 %v514, 127
        %v527 = vpop.permute.xlu0 %526
        %528 = vrot.lane.b32.xlu0 %v515, 127
        %v529 = vpop.permute.xlu0 %528
        %530 = vrot.lane.b32.xlu0 %v516, 127
        %v531 = vpop.permute.xlu0 %530
        %532 = vrot.lane.b32.xlu0 %v517, 127
        %v533 = vpop.permute.xlu0 %532
        %534 = vrot.lane.b32.xlu0 %v518, 127
        %v535 = vpop.permute.xlu0 %534
        %536 = vrot.lane.b32.xlu0 %v519, 127
        %v537 = vpop.permute.xlu0 %536
        %538 = vrot.lane.b32.xlu0 %v520, 127
        %v539 = vpop.permute.xlu0 %538
        %540 = vrot.lane.b32.xlu0 %v521, 127
        %v541 = vpop.permute.xlu0 %540
        %542 = vrot.lane.b32.xlu0 %v522, 127
        %v543 = vpop.permute.xlu0 %542
        %544 = vrot.lane.b32.xlu0 %v523, 127
        %v545 = vpop.permute.xlu0 %544
        %546 = vrot.lane.b32.xlu0 %v524, 127
        %v547 = vpop.permute.xlu0 %546
        %548 = vrot.lane.b32.xlu0 %v525, 127
        %v549 = vpop.permute.xlu0 %548
        %vm550 = vcmask 1039360
        %v551 = vsel %vm550, %v527, %v529
        %v552 = vsel %vm550, %v531, %v533
        %v553 = vsel %vm550, %v535, %v537
        %v554 = vsel %vm550, %v539, %v541
        %v555 = vsel %vm550, %v543, %v545
        %v556 = vsel %vm550, %v547, %v549
        %vm563 = vcmask 1039360
        %v566 = vsel %vm563, %v529, %v527
        %v570 = vsel %vm563, %v533, %v531
        %v574 = vsel %vm563, %v537, %v535
        %v578 = vsel %vm563, %v541, %v539
        %v582 = vsel %vm563, %v545, %v543
        %v586 = vsel %vm563, %v549, %v547
        %588 = vrot.lane.b32.xlu0 %v514, 126
        %v589 = vpop.permute.xlu0 %588
        %590 = vrot.lane.b32.xlu0 %v515, 126
        %v591 = vpop.permute.xlu0 %590
        %592 = vrot.lane.b32.xlu0 %v516, 126
        %v593 = vpop.permute.xlu0 %592
        %594 = vrot.lane.b32.xlu0 %v517, 126
        %v595 = vpop.permute.xlu0 %594
        %596 = vrot.lane.b32.xlu0 %v518, 126
        %v597 = vpop.permute.xlu0 %596
        %598 = vrot.lane.b32.xlu0 %v519, 126
        %v599 = vpop.permute.xlu0 %598
        %600 = vrot.lane.b32.xlu0 %v520, 126
        %v601 = vpop.permute.xlu0 %600
        %602 = vrot.lane.b32.xlu0 %v521, 126
        %v603 = vpop.permute.xlu0 %602
        %604 = vrot.lane.b32.xlu0 %v522, 126
        %v605 = vpop.permute.xlu0 %604
        %606 = vrot.lane.b32.xlu0 %v523, 126
        %v607 = vpop.permute.xlu0 %606
        %608 = vrot.lane.b32.xlu0 %v524, 126
        %v609 = vpop.permute.xlu0 %608
        %610 = vrot.lane.b32.xlu0 %v525, 126
        %v611 = vpop.permute.xlu0 %610
        %vm612 = vcmask 1031168
        %v613 = vsel %vm612, %v589, %v591
        %v614 = vsel %vm612, %v593, %v595
        %v615 = vsel %vm612, %v597, %v599
        %v616 = vsel %vm612, %v601, %v603
        %v617 = vsel %vm612, %v605, %v607
        %v618 = vsel %vm612, %v609, %v611
        %vm625 = vcmask 1031168
        %v628 = vsel %vm625, %v591, %v589
        %v632 = vsel %vm625, %v595, %v593
        %v636 = vsel %vm625, %v599, %v597
        %v640 = vsel %vm625, %v603, %v601
        %v644 = vsel %vm625, %v607, %v605
        %v648 = vsel %vm625, %v611, %v609
        %650 = vrot.lane.b32.xlu0 %v514, 125
        %v651 = vpop.permute.xlu0 %650
        %652 = vrot.lane.b32.xlu0 %v515, 125
        %v653 = vpop.permute.xlu0 %652
        %654 = vrot.lane.b32.xlu0 %v516, 125
        %v655 = vpop.permute.xlu0 %654
        %656 = vrot.lane.b32.xlu0 %v517, 125
        %v657 = vpop.permute.xlu0 %656
        %658 = vrot.lane.b32.xlu0 %v518, 125
        %v659 = vpop.permute.xlu0 %658
        %660 = vrot.lane.b32.xlu0 %v519, 125
        %v661 = vpop.permute.xlu0 %660
        %662 = vrot.lane.b32.xlu0 %v520, 125
        %v663 = vpop.permute.xlu0 %662
        %664 = vrot.lane.b32.xlu0 %v521, 125
        %v665 = vpop.permute.xlu0 %664
        %666 = vrot.lane.b32.xlu0 %v522, 125
        %v667 = vpop.permute.xlu0 %666
        %668 = vrot.lane.b32.xlu0 %v523, 125
        %v669 = vpop.permute.xlu0 %668
        %670 = vrot.lane.b32.xlu0 %v524, 125
        %v671 = vpop.permute.xlu0 %670
        %672 = vrot.lane.b32.xlu0 %v525, 125
        %v673 = vpop.permute.xlu0 %672
        %vm674 = vcmask 1022976
        %v675 = vsel %vm674, %v651, %v653
        %v676 = vsel %vm674, %v655, %v657
        %v677 = vsel %vm674, %v659, %v661
        %v678 = vsel %vm674, %v663, %v665
        %v679 = vsel %vm674, %v667, %v669
        %v680 = vsel %vm674, %v671, %v673
        %vm687 = vcmask 1022976
        %v690 = vsel %vm687, %v653, %v651
        %v694 = vsel %vm687, %v657, %v655
        %v698 = vsel %vm687, %v661, %v659
        %v702 = vsel %vm687, %v665, %v663
        %v706 = vsel %vm687, %v669, %v667
        %v710 = vsel %vm687, %v673, %v671
        %712 = vrot.lane.b32.xlu0 %v514, 124
        %v713 = vpop.permute.xlu0 %712
        %714 = vrot.lane.b32.xlu0 %v515, 124
        %v715 = vpop.permute.xlu0 %714
        %716 = vrot.lane.b32.xlu0 %v516, 124
        %v717 = vpop.permute.xlu0 %716
        %718 = vrot.lane.b32.xlu0 %v517, 124
        %v719 = vpop.permute.xlu0 %718
        %720 = vrot.lane.b32.xlu0 %v518, 124
        %v721 = vpop.permute.xlu0 %720
        %722 = vrot.lane.b32.xlu0 %v519, 124
        %v723 = vpop.permute.xlu0 %722
        %724 = vrot.lane.b32.xlu0 %v520, 124
        %v725 = vpop.permute.xlu0 %724
        %726 = vrot.lane.b32.xlu0 %v521, 124
        %v727 = vpop.permute.xlu0 %726
        %728 = vrot.lane.b32.xlu0 %v522, 124
        %v729 = vpop.permute.xlu0 %728
        %730 = vrot.lane.b32.xlu0 %v523, 124
        %v731 = vpop.permute.xlu0 %730
        %732 = vrot.lane.b32.xlu0 %v524, 124
        %v733 = vpop.permute.xlu0 %732
        %734 = vrot.lane.b32.xlu0 %v525, 124
        %v735 = vpop.permute.xlu0 %734
        %vm736 = vcmask 1014784
        %v737 = vsel %vm736, %v713, %v715
        %v738 = vsel %vm736, %v717, %v719
        %v739 = vsel %vm736, %v721, %v723
        %v740 = vsel %vm736, %v725, %v727
        %v741 = vsel %vm736, %v729, %v731
        %v742 = vsel %vm736, %v733, %v735
        %vm749 = vcmask 1014784
        %v752 = vsel %vm749, %v715, %v713
        %v756 = vsel %vm749, %v719, %v717
        %v760 = vsel %vm749, %v723, %v721
        %v764 = vsel %vm749, %v727, %v725
        %v768 = vsel %vm749, %v731, %v729
        %v772 = vsel %vm749, %v735, %v733
        %v786 = vld [vmem:[%s1] sm:$0xff]
        %v787 = vld [vmem:[%s1 + $0x8] sm:$0xff]
        %v788 = vld [vmem:[%s1 + $0x10] sm:$0xff]
        %v789 = vld [vmem:[%s1 + $0x18] sm:$0xff]
        %v790 = vld [vmem:[%s1 + $0x20] sm:$0xff]
        %v791 = vld [vmem:[%s1 + $0x28] sm:$0xff]
        %v792 = vld [vmem:[%s1 + $0x30] sm:$0xff]
        %v793 = vld [vmem:[%s1 + $0x38] sm:$0xff]
        %v794 = vld [vmem:[%s1 + $0x40] sm:$0xff]
        %v795 = vld [vmem:[%s1 + $0x48] sm:$0xff]
        %v796 = vld [vmem:[%s1 + $0x50] sm:$0xff]
        %v797 = vld [vmem:[%s1 + $0x58] sm:$0xff]
        %v798 = vld [vmem:[%s1 + $0x60] sm:$0xff]
        %v799 = vld [vmem:[%s1 + $0x68] sm:$0xff]
        %v800 = vld [vmem:[%s1 + $0x70] sm:$0xff]
        %v801 = vld [vmem:[%s1 + $0x78] sm:$0xff]
        %v802 = vld [vmem:[%s1 + $0x80] sm:$0xff]
        %v803 = vld [vmem:[%s1 + $0x88] sm:$0xff]
        %v804 = vld [vmem:[%s1 + $0x90] sm:$0xff]
        %v805 = vld [vmem:[%s1 + $0x98] sm:$0xff]
        %v806 = vld [vmem:[%s1 + $0xa0] sm:$0xff]
        %v807 = vld [vmem:[%s1 + $0xa8] sm:$0xff]
        %v808 = vld [vmem:[%s1 + $0xb0] sm:$0xff]
        %v809 = vld [vmem:[%s1 + $0xb8] sm:$0xff]
        %v810 = vld [vmem:[%s1 + $0xc0] sm:$0xff]
        %v811 = vld [vmem:[%s1 + $0xc8] sm:$0xff]
        %v812 = vld [vmem:[%s1 + $0xd0] sm:$0xff]
        %v813 = vld [vmem:[%s1 + $0xd8] sm:$0xff]
        %v814 = vld [vmem:[%s1 + $0xe0] sm:$0xff]
        %v815 = vld [vmem:[%s1 + $0xe8] sm:$0xff]
        %v816 = vld [vmem:[%s1 + $0xf0] sm:$0xff]
        %v817 = vld [vmem:[%s1 + $0xf8] sm:$0xff]
        %v818 = vld [vmem:[%s1 + $0x100] sm:$0xff]
        %v819 = vld [vmem:[%s1 + $0x108] sm:$0xff]
        %v820 = vld [vmem:[%s1 + $0x110] sm:$0xff]
        %v821 = vld [vmem:[%s1 + $0x118] sm:$0xff]
        %v822 = vld [vmem:[%s1 + $0x120] sm:$0xff]
        %v823 = vld [vmem:[%s1 + $0x128] sm:$0xff]
        %v824 = vld [vmem:[%s1 + $0x130] sm:$0xff]
        %v825 = vld [vmem:[%s1 + $0x138] sm:$0xff]
        %v826 = vld [vmem:[%s1 + $0x140] sm:$0xff]
        %v827 = vld [vmem:[%s1 + $0x148] sm:$0xff]
        %v828 = vld [vmem:[%s1 + $0x150] sm:$0xff]
        %v829 = vld [vmem:[%s1 + $0x158] sm:$0xff]
        %v830 = vld [vmem:[%s1 + $0x160] sm:$0xff]
        %v831 = vld [vmem:[%s1 + $0x168] sm:$0xff]
        %v832 = vld [vmem:[%s1 + $0x170] sm:$0xff]
        %v833 = vld [vmem:[%s1 + $0x178] sm:$0xff]
        %v834 = vld [vmem:[%s2] sm:$0xff]
        %v835 = vld [vmem:[%s2 + $0x8] sm:$0xff]
        %v836 = vld [vmem:[%s2 + $0x10] sm:$0xff]
        %v837 = vld [vmem:[%s2 + $0x18] sm:$0xff]
        %v838 = vld [vmem:[%s2 + $0x20] sm:$0xff]
        %v839 = vld [vmem:[%s2 + $0x28] sm:$0xff]
        %v840 = vld [vmem:[%s2 + $0x30] sm:$0xff]
        %v841 = vld [vmem:[%s2 + $0x38] sm:$0xff]
        %v842 = vld [vmem:[%s2 + $0x40] sm:$0xff]
        %v843 = vld [vmem:[%s2 + $0x48] sm:$0xff]
        %v844 = vld [vmem:[%s2 + $0x50] sm:$0xff]
        %v845 = vld [vmem:[%s2 + $0x58] sm:$0xff]
        %v846 = vld [vmem:[%s2 + $0x60] sm:$0xff]
        %v847 = vld [vmem:[%s2 + $0x68] sm:$0xff]
        %v848 = vld [vmem:[%s2 + $0x70] sm:$0xff]
        %v849 = vld [vmem:[%s2 + $0x78] sm:$0xff]
        %v850 = vld [vmem:[%s2 + $0x80] sm:$0xff]
        %v851 = vld [vmem:[%s2 + $0x88] sm:$0xff]
        %v852 = vld [vmem:[%s2 + $0x90] sm:$0xff]
        %v853 = vld [vmem:[%s2 + $0x98] sm:$0xff]
        %v854 = vld [vmem:[%s2 + $0xa0] sm:$0xff]
        %v855 = vld [vmem:[%s2 + $0xa8] sm:$0xff]
        %v856 = vld [vmem:[%s2 + $0xb0] sm:$0xff]
        %v857 = vld [vmem:[%s2 + $0xb8] sm:$0xff]
        %859 = vset.pattern.permute.xlu0 0
        %860 = vperm.xlu0 %859, %v834
        %v861 = vpop.permute.xlu0 %860
        %864 = vset.pattern.permute.xlu0 0
        %865 = vperm.xlu0 %864, %v835
        %v866 = vpop.permute.xlu0 %865
        %869 = vset.pattern.permute.xlu0 0
        %870 = vperm.xlu0 %869, %v836
        %v871 = vpop.permute.xlu0 %870
        %874 = vset.pattern.permute.xlu0 0
        %875 = vperm.xlu0 %874, %v837
        %v876 = vpop.permute.xlu0 %875
        %879 = vset.pattern.permute.xlu0 0
        %880 = vperm.xlu0 %879, %v838
        %v881 = vpop.permute.xlu0 %880
        %884 = vset.pattern.permute.xlu0 0
        %885 = vperm.xlu0 %884, %v839
        %v886 = vpop.permute.xlu0 %885
        %889 = vset.pattern.permute.xlu0 0
        %890 = vperm.xlu0 %889, %v840
        %v891 = vpop.permute.xlu0 %890
        %894 = vset.pattern.permute.xlu0 0
        %895 = vperm.xlu0 %894, %v841
        %v896 = vpop.permute.xlu0 %895
        %899 = vset.pattern.permute.xlu0 0
        %900 = vperm.xlu0 %899, %v842
        %v901 = vpop.permute.xlu0 %900
        %904 = vset.pattern.permute.xlu0 0
        %905 = vperm.xlu0 %904, %v843
        %v906 = vpop.permute.xlu0 %905
        %909 = vset.pattern.permute.xlu0 0
        %910 = vperm.xlu0 %909, %v844
        %v911 = vpop.permute.xlu0 %910
        %914 = vset.pattern.permute.xlu0 0
        %915 = vperm.xlu0 %914, %v845
        %v916 = vpop.permute.xlu0 %915
        %919 = vset.pattern.permute.xlu0 0
        %920 = vperm.xlu0 %919, %v846
        %v921 = vpop.permute.xlu0 %920
        %924 = vset.pattern.permute.xlu0 0
        %925 = vperm.xlu0 %924, %v847
        %v926 = vpop.permute.xlu0 %925
        %929 = vset.pattern.permute.xlu0 0
        %930 = vperm.xlu0 %929, %v848
        %v931 = vpop.permute.xlu0 %930
        %934 = vset.pattern.permute.xlu0 0
        %935 = vperm.xlu0 %934, %v849
        %v936 = vpop.permute.xlu0 %935
        %939 = vset.pattern.permute.xlu0 0
        %940 = vperm.xlu0 %939, %v850
        %v941 = vpop.permute.xlu0 %940
        %944 = vset.pattern.permute.xlu0 0
        %945 = vperm.xlu0 %944, %v851
        %v946 = vpop.permute.xlu0 %945
        %949 = vset.pattern.permute.xlu0 0
        %950 = vperm.xlu0 %949, %v852
        %v951 = vpop.permute.xlu0 %950
        %954 = vset.pattern.permute.xlu0 0
        %955 = vperm.xlu0 %954, %v853
        %v956 = vpop.permute.xlu0 %955
        %959 = vset.pattern.permute.xlu0 0
        %960 = vperm.xlu0 %959, %v854
        %v961 = vpop.permute.xlu0 %960
        %964 = vset.pattern.permute.xlu0 0
        %965 = vperm.xlu0 %964, %v855
        %v966 = vpop.permute.xlu0 %965
        %969 = vset.pattern.permute.xlu0 0
        %970 = vperm.xlu0 %969, %v856
        %v971 = vpop.permute.xlu0 %970
        %974 = vset.pattern.permute.xlu0 0
        %975 = vperm.xlu0 %974, %v857
        %v976 = vpop.permute.xlu0 %975
        %v1026 = vunpack.c.l.b16 %v786
        %v1027 = vunpack.c.h.b16 %v786
        %v1028 = vunpack.c.l.b16 %v787
        %v1029 = vunpack.c.h.b16 %v787
        %v1030 = vunpack.c.l.b16 %v788
        %v1031 = vunpack.c.h.b16 %v788
        %v1032 = vunpack.c.l.b16 %v789
        %v1033 = vunpack.c.h.b16 %v789
        %v1034 = vunpack.c.l.b16 %v790
        %v1035 = vunpack.c.h.b16 %v790
        %v1036 = vunpack.c.l.b16 %v791
        %v1037 = vunpack.c.h.b16 %v791
        %v1038 = vunpack.c.l.b16 %v792
        %v1039 = vunpack.c.h.b16 %v792
        %v1040 = vunpack.c.l.b16 %v793
        %v1041 = vunpack.c.h.b16 %v793
        %v1042 = vunpack.c.l.b16 %v794
        %v1043 = vunpack.c.h.b16 %v794
        %v1044 = vunpack.c.l.b16 %v795
        %v1045 = vunpack.c.h.b16 %v795
        %v1046 = vunpack.c.l.b16 %v796
        %v1047 = vunpack.c.h.b16 %v796
        %v1048 = vunpack.c.l.b16 %v797
        %v1049 = vunpack.c.h.b16 %v797
        %v1050 = vunpack.c.l.b16 %v798
        %v1051 = vunpack.c.h.b16 %v798
        %v1052 = vunpack.c.l.b16 %v799
        %v1053 = vunpack.c.h.b16 %v799
        %v1054 = vunpack.c.l.b16 %v800
        %v1055 = vunpack.c.h.b16 %v800
        %v1056 = vunpack.c.l.b16 %v801
        %v1057 = vunpack.c.h.b16 %v801
        %v1058 = vunpack.c.l.b16 %v802
        %v1059 = vunpack.c.h.b16 %v802
        %v1060 = vunpack.c.l.b16 %v803
        %v1061 = vunpack.c.h.b16 %v803
        %v1062 = vunpack.c.l.b16 %v804
        %v1063 = vunpack.c.h.b16 %v804
        %v1064 = vunpack.c.l.b16 %v805
        %v1065 = vunpack.c.h.b16 %v805
        %v1066 = vunpack.c.l.b16 %v806
        %v1067 = vunpack.c.h.b16 %v806
        %v1068 = vunpack.c.l.b16 %v807
        %v1069 = vunpack.c.h.b16 %v807
        %v1070 = vunpack.c.l.b16 %v808
        %v1071 = vunpack.c.h.b16 %v808
        %v1072 = vunpack.c.l.b16 %v809
        %v1073 = vunpack.c.h.b16 %v809
        %v1074 = vunpack.c.l.b16 %v810
        %v1075 = vunpack.c.h.b16 %v810
        %v1076 = vunpack.c.l.b16 %v811
        %v1077 = vunpack.c.h.b16 %v811
        %v1078 = vunpack.c.l.b16 %v812
        %v1079 = vunpack.c.h.b16 %v812
        %v1080 = vunpack.c.l.b16 %v813
        %v1081 = vunpack.c.h.b16 %v813
        %v1082 = vunpack.c.l.b16 %v814
        %v1083 = vunpack.c.h.b16 %v814
        %v1084 = vunpack.c.l.b16 %v815
        %v1085 = vunpack.c.h.b16 %v815
        %v1086 = vunpack.c.l.b16 %v816
        %v1087 = vunpack.c.h.b16 %v816
        %v1088 = vunpack.c.l.b16 %v817
        %v1089 = vunpack.c.h.b16 %v817
        %v1090 = vunpack.c.l.b16 %v818
        %v1091 = vunpack.c.h.b16 %v818
        %v1092 = vunpack.c.l.b16 %v819
        %v1093 = vunpack.c.h.b16 %v819
        %v1094 = vunpack.c.l.b16 %v820
        %v1095 = vunpack.c.h.b16 %v820
        %v1096 = vunpack.c.l.b16 %v821
        %v1097 = vunpack.c.h.b16 %v821
        %v1098 = vunpack.c.l.b16 %v822
        %v1099 = vunpack.c.h.b16 %v822
        %v1100 = vunpack.c.l.b16 %v823
        %v1101 = vunpack.c.h.b16 %v823
        %v1102 = vunpack.c.l.b16 %v824
        %v1103 = vunpack.c.h.b16 %v824
        %v1104 = vunpack.c.l.b16 %v825
        %v1105 = vunpack.c.h.b16 %v825
        %v1106 = vunpack.c.l.b16 %v826
        %v1107 = vunpack.c.h.b16 %v826
        %v1108 = vunpack.c.l.b16 %v827
        %v1109 = vunpack.c.h.b16 %v827
        %v1110 = vunpack.c.l.b16 %v828
        %v1111 = vunpack.c.h.b16 %v828
        %v1112 = vunpack.c.l.b16 %v829
        %v1113 = vunpack.c.h.b16 %v829
        %v1114 = vunpack.c.l.b16 %v830
        %v1115 = vunpack.c.h.b16 %v830
        %v1116 = vunpack.c.l.b16 %v831
        %v1117 = vunpack.c.h.b16 %v831
        %v1118 = vunpack.c.l.b16 %v832
        %v1119 = vunpack.c.h.b16 %v832
        %v1120 = vunpack.c.l.b16 %v833
        %v1121 = vunpack.c.h.b16 %v833
        %v1122 = vpack.c.b16 %v1030, %v1026
        %v1123 = vpack.c.b16 %v1031, %v1027
        %v1124 = vpack.c.b16 %v1032, %v1028
        %v1125 = vpack.c.b16 %v1033, %v1029
        %v1126 = vpack.c.b16 %v1038, %v1034
        %v1127 = vpack.c.b16 %v1039, %v1035
        %v1128 = vpack.c.b16 %v1040, %v1036
        %v1129 = vpack.c.b16 %v1041, %v1037
        %v1130 = vpack.c.b16 %v1046, %v1042
        %v1131 = vpack.c.b16 %v1047, %v1043
        %v1132 = vpack.c.b16 %v1048, %v1044
        %v1133 = vpack.c.b16 %v1049, %v1045
        %v1134 = vpack.c.b16 %v1054, %v1050
        %v1135 = vpack.c.b16 %v1055, %v1051
        %v1136 = vpack.c.b16 %v1056, %v1052
        %v1137 = vpack.c.b16 %v1057, %v1053
        %v1138 = vpack.c.b16 %v1062, %v1058
        %v1139 = vpack.c.b16 %v1063, %v1059
        %v1140 = vpack.c.b16 %v1064, %v1060
        %v1141 = vpack.c.b16 %v1065, %v1061
        %v1142 = vpack.c.b16 %v1070, %v1066
        %v1143 = vpack.c.b16 %v1071, %v1067
        %v1144 = vpack.c.b16 %v1072, %v1068
        %v1145 = vpack.c.b16 %v1073, %v1069
        %v1146 = vpack.c.b16 %v1078, %v1074
        %v1147 = vpack.c.b16 %v1079, %v1075
        %v1148 = vpack.c.b16 %v1080, %v1076
        %v1149 = vpack.c.b16 %v1081, %v1077
        %v1150 = vpack.c.b16 %v1086, %v1082
        %v1151 = vpack.c.b16 %v1087, %v1083
        %v1152 = vpack.c.b16 %v1088, %v1084
        %v1153 = vpack.c.b16 %v1089, %v1085
        %v1154 = vpack.c.b16 %v1094, %v1090
        %v1155 = vpack.c.b16 %v1095, %v1091
        %v1156 = vpack.c.b16 %v1096, %v1092
        %v1157 = vpack.c.b16 %v1097, %v1093
        %v1158 = vpack.c.b16 %v1102, %v1098
        %v1159 = vpack.c.b16 %v1103, %v1099
        %v1160 = vpack.c.b16 %v1104, %v1100
        %v1161 = vpack.c.b16 %v1105, %v1101
        %v1162 = vpack.c.b16 %v1110, %v1106
        %v1163 = vpack.c.b16 %v1111, %v1107
        %v1164 = vpack.c.b16 %v1112, %v1108
        %v1165 = vpack.c.b16 %v1113, %v1109
        %v1166 = vpack.c.b16 %v1118, %v1114
        %v1167 = vpack.c.b16 %v1119, %v1115
        %v1168 = vpack.c.b16 %v1120, %v1116
        %v1169 = vpack.c.b16 %v1121, %v1117
        %vm1206 = vcmask 785408
        %v1208 = vsel %vm1206, %v1125, 0
        %v1211 = vsel %vm1206, %v1129, 0
        %v1214 = vsel %vm1206, %v1133, 0
        %v1217 = vsel %vm1206, %v1137, 0
        %v1220 = vsel %vm1206, %v1141, 0
        %v1223 = vsel %vm1206, %v1145, 0
        %v1226 = vsel %vm1206, %v1149, 0
        %v1229 = vsel %vm1206, %v1153, 0
        %v1232 = vsel %vm1206, %v1157, 0
        %v1235 = vsel %vm1206, %v1161, 0
        %v1238 = vsel %vm1206, %v1165, 0
        %v1241 = vsel %vm1206, %v1169, 0
        %1243 = vmatprep.subr.bf16.mxu0 %v515
        %1244 = vmatpush1.bf16.msra.mxu0 %v514
        %1245 = vmatprep.subr.bf16.mxu0 %v517
        %1246 = vmatpush1.bf16.msra.mxu0 %v516
        %1247 = vmatprep.subr.bf16.mxu0 %v519
        %1248 = vmatpush1.bf16.msra.mxu0 %v518
        %1249 = vmatprep.subr.bf16.mxu0 %v521
        %1250 = vmatpush1.bf16.msra.mxu0 %v520
        %1251 = vmatprep.subr.bf16.mxu0 %v523
        %1252 = vmatpush1.bf16.msra.mxu0 %v522
        %1253 = vmatprep.subr.bf16.mxu0 %v525
        %1254 = vmatpush1.bf16.msra.mxu0 %v524
        %1255 = vmatprep.subr.bf16.mxu0 %v566
        %1256 = vmatpush1.bf16.msra.mxu0 %v551
        %1257 = vmatprep.subr.bf16.mxu0 %v570
        %1258 = vmatpush1.bf16.msra.mxu0 %v552
        %1259 = vmatprep.subr.bf16.mxu0 %v574
        %1260 = vmatpush1.bf16.msra.mxu0 %v553
        %1261 = vmatprep.subr.bf16.mxu0 %v578
        %1262 = vmatpush1.bf16.msra.mxu0 %v554
        %1263 = vmatprep.subr.bf16.mxu0 %v582
        %1264 = vmatpush1.bf16.msra.mxu0 %v555
        %1265 = vmatprep.subr.bf16.mxu0 %v586
        %1266 = vmatpush1.bf16.msra.mxu0 %v556
        %1267 = vmatprep.subr.bf16.mxu0 %v628
        %1268 = vmatpush1.bf16.msra.mxu0 %v613
        %1269 = vmatprep.subr.bf16.mxu0 %v632
        %1270 = vmatpush1.bf16.msra.mxu0 %v614
        %1271 = vmatprep.subr.bf16.mxu0 %v636
        %1272 = vmatpush1.bf16.msra.mxu0 %v615
        %1273 = vmatprep.subr.bf16.mxu0 %v640
        %1274 = vmatpush1.bf16.msra.mxu0 %v616
        %1275 = vmatprep.mubr.bf16.mxu0 %v1123
        %1276 = vmatmul.mubr.bf16.gmra.mrb[0].mxu0 %v1122
        %v1277 = vpop.f32.mrb[0].mxu0
        %v1278 = vadd.f32 %v861, %v1277
        %v1279 = vpop.f32.mrb[0].mxu0
        %v1280 = vadd.f32 %v861, %v1279
        %v1281 = vpop.f32.mrb[0].mxu0
        %v1282 = vadd.f32 %v866, %v1281
        %v1283 = vpop.f32.mrb[0].mxu0
        %v1284 = vadd.f32 %v866, %v1283
        %1285 = vmatprep.mubr.bf16.mxu0 %v1127
        %1286 = vmatmul.mubr.bf16.gmra.mrb[0].mxu0 %v1126
        %v1287 = vpop.f32.mrb[0].mxu0
        %v1288 = vadd.f32 %v871, %v1287
        %v1289 = vpop.f32.mrb[0].mxu0
        %v1290 = vadd.f32 %v871, %v1289
        %v1291 = vpop.f32.mrb[0].mxu0
        %v1292 = vadd.f32 %v876, %v1291
        %v1293 = vpop.f32.mrb[0].mxu0
        %v1294 = vadd.f32 %v876, %v1293
        %1295 = vmatprep.mubr.bf16.mxu0 %v1131
        %1296 = vmatmul.mubr.bf16.gmra.mrb[0].mxu0 %v1130
        %v1297 = vpop.f32.mrb[0].mxu0
        %v1298 = vadd.f32 %v881, %v1297
        %v1299 = vpop.f32.mrb[0].mxu0
        %v1300 = vadd.f32 %v881, %v1299
        %v1301 = vpop.f32.mrb[0].mxu0
        %v1302 = vadd.f32 %v886, %v1301
        %v1303 = vpop.f32.mrb[0].mxu0
        %v1304 = vadd.f32 %v886, %v1303
        %1305 = vmatprep.mubr.bf16.mxu0 %v1135
        %1306 = vmatmul.mubr.bf16.gmra.mrb[0].mxu0 %v1134
        %v1307 = vpop.f32.mrb[0].mxu0
        %v1308 = vadd.f32 %v891, %v1307
        %v1309 = vpop.f32.mrb[0].mxu0
        %v1310 = vadd.f32 %v891, %v1309
        %v1311 = vpop.f32.mrb[0].mxu0
        %v1312 = vadd.f32 %v896, %v1311
        %v1313 = vpop.f32.mrb[0].mxu0
        %v1314 = vadd.f32 %v896, %v1313
        %1315 = vmatprep.mubr.bf16.mxu0 %v1139
        %1316 = vmatmul.mubr.bf16.gmra.mrb[0].mxu0 %v1138
        %v1317 = vpop.f32.mrb[0].mxu0
        %v1318 = vadd.f32 %v901, %v1317
        %v1319 = vpop.f32.mrb[0].mxu0
        %v1320 = vadd.f32 %v901, %v1319
        %v1321 = vpop.f32.mrb[0].mxu0
        %v1322 = vadd.f32 %v906, %v1321
        %v1323 = vpop.f32.mrb[0].mxu0
        %v1324 = vadd.f32 %v906, %v1323
        %1325 = vmatprep.mubr.bf16.mxu0 %v1143
        %1326 = vmatmul.mubr.bf16.gmra.mrb[0].mxu0 %v1142
        %v1327 = vpop.f32.mrb[0].mxu0
        %v1328 = vadd.f32 %v911, %v1327
        %v1329 = vpop.f32.mrb[0].mxu0
        %v1330 = vadd.f32 %v911, %v1329
        %v1331 = vpop.f32.mrb[0].mxu0
        %v1332 = vadd.f32 %v916, %v1331
        %v1333 = vpop.f32.mrb[0].mxu0
        %v1334 = vadd.f32 %v916, %v1333
        %1335 = vmatprep.mubr.bf16.mxu0 %v1147
        %1336 = vmatmul.mubr.bf16.gmra.mrb[0].mxu0 %v1146
        %v1337 = vpop.f32.mrb[0].mxu0
        %v1338 = vadd.f32 %v921, %v1337
        %v1339 = vpop.f32.mrb[0].mxu0
        %v1340 = vadd.f32 %v921, %v1339
        %v1341 = vpop.f32.mrb[0].mxu0
        %v1342 = vadd.f32 %v926, %v1341
        %v1343 = vpop.f32.mrb[0].mxu0
        %v1344 = vadd.f32 %v926, %v1343
        %1345 = vmatprep.mubr.bf16.mxu0 %v1151
        %1346 = vmatmul.mubr.bf16.gmra.mrb[0].mxu0 %v1150
        %v1347 = vpop.f32.mrb[0].mxu0
        %v1348 = vadd.f32 %v931, %v1347
        %v1349 = vpop.f32.mrb[0].mxu0
        %v1350 = vadd.f32 %v931, %v1349
        %v1351 = vpop.f32.mrb[0].mxu0
        %v1352 = vadd.f32 %v936, %v1351
        %v1353 = vpop.f32.mrb[0].mxu0
        %v1354 = vadd.f32 %v936, %v1353
        %1355 = vmatprep.mubr.bf16.mxu0 %v1155
        %1356 = vmatmul.mubr.bf16.gmra.mrb[0].mxu0 %v1154
        %v1357 = vpop.f32.mrb[0].mxu0
        %v1358 = vadd.f32 %v941, %v1357
        %v1359 = vpop.f32.mrb[0].mxu0
        %v1360 = vadd.f32 %v941, %v1359
        %v1361 = vpop.f32.mrb[0].mxu0
        %v1362 = vadd.f32 %v946, %v1361
        %v1363 = vpop.f32.mrb[0].mxu0
        %v1364 = vadd.f32 %v946, %v1363
        %1365 = vmatprep.mubr.bf16.mxu0 %v1159
        %1366 = vmatmul.mubr.bf16.gmra.mrb[0].mxu0 %v1158
        %v1367 = vpop.f32.mrb[0].mxu0
        %v1368 = vadd.f32 %v951, %v1367
        %v1369 = vpop.f32.mrb[0].mxu0
        %v1370 = vadd.f32 %v951, %v1369
        %v1371 = vpop.f32.mrb[0].mxu0
        %v1372 = vadd.f32 %v956, %v1371
        %v1373 = vpop.f32.mrb[0].mxu0
        %v1374 = vadd.f32 %v956, %v1373
        %1375 = vmatprep.mubr.bf16.mxu0 %v1163
        %1376 = vmatmul.mubr.bf16.gmra.mrb[0].mxu0 %v1162
        %v1377 = vpop.f32.mrb[0].mxu0
        %v1378 = vadd.f32 %v961, %v1377
        %v1379 = vpop.f32.mrb[0].mxu0
        %v1380 = vadd.f32 %v961, %v1379
        %v1381 = vpop.f32.mrb[0].mxu0
        %v1382 = vadd.f32 %v966, %v1381
        %v1383 = vpop.f32.mrb[0].mxu0
        %v1384 = vadd.f32 %v966, %v1383
        %1385 = vmatprep.mubr.bf16.mxu0 %v1167
        %1386 = vmatmul.mubr.bf16.gmra.mrb[0].mxu0 %v1166
        %v1387 = vpop.f32.mrb[0].mxu0
        %v1388 = vadd.f32 %v971, %v1387
        %v1389 = vpop.f32.mrb[0].mxu0
        %v1390 = vadd.f32 %v971, %v1389
        %v1391 = vpop.f32.mrb[0].mxu0
        %v1392 = vadd.f32 %v976, %v1391
        %v1393 = vpop.f32.mrb[0].mxu0
        %v1394 = vadd.f32 %v976, %v1393
        %1395 = vdwg.mxu0
        %1396 = vmatprep.subr.bf16.mxu0 %v644
        %1397 = vmatpush1.bf16.msra.mxu0 %v617
        %1398 = vmatprep.subr.bf16.mxu0 %v648
        %1399 = vmatpush1.bf16.msra.mxu0 %v618
        %1400 = vmatprep.subr.bf16.mxu0 %v690
        %1401 = vmatpush1.bf16.msra.mxu0 %v675
        %1402 = vmatprep.subr.bf16.mxu0 %v694
        %1403 = vmatpush1.bf16.msra.mxu0 %v676
        %1404 = vmatprep.subr.bf16.mxu0 %v698
        %1405 = vmatpush1.bf16.msra.mxu0 %v677
        %1406 = vmatprep.subr.bf16.mxu0 %v702
        %1407 = vmatpush1.bf16.msra.mxu0 %v678
        %1408 = vmatprep.subr.bf16.mxu0 %v706
        %1409 = vmatpush1.bf16.msra.mxu0 %v679
        %1410 = vmatprep.subr.bf16.mxu0 %v710
        %1411 = vmatpush1.bf16.msra.mxu0 %v680
        %1412 = vmatprep.subr.bf16.mxu0 %v752
        %1413 = vmatpush1.bf16.msra.mxu0 %v737
        %1414 = vmatprep.subr.bf16.mxu0 %v756
        %1415 = vmatpush1.bf16.msra.mxu0 %v738
        %1416 = vmatprep.subr.bf16.mxu0 %v760
        %1417 = vmatpush1.bf16.msra.mxu0 %v739
        %1418 = vmatprep.subr.bf16.mxu0 %v764
        %1419 = vmatpush1.bf16.msra.mxu0 %v740
        %1420 = vmatprep.subr.bf16.mxu0 %v768
        %1421 = vmatpush1.bf16.msra.mxu0 %v741
        %1422 = vmatprep.subr.bf16.mxu0 %v772
        %1423 = vmatpush1.bf16.msra.mxu0 %v742
        %1424 = vmatprep.subr.bf16.mxu0 0
        %1425 = vmatpush1.bf16.msra.mxu0 0
        %1426 = vmatprep.subr.bf16.mxu0 0
        %1427 = vmatpush1.bf16.msra.mxu0 0
        %1428 = vmatprep.mubr.bf16.mxu0 %v1208
        %1429 = vmatmul.mubr.bf16.gmra.mrb[0].mxu0 %v1124
        %v1430 = vpop.f32.mrb[0].mxu0
        %v1431 = vadd.f32 %v1278, %v1430
        %v1432 = vpop.f32.mrb[0].mxu0
        %v1433 = vadd.f32 %v1280, %v1432
        %v1434 = vpop.f32.mrb[0].mxu0
        %v1435 = vadd.f32 %v1282, %v1434
        %v1436 = vpop.f32.mrb[0].mxu0
        %v1437 = vadd.f32 %v1284, %v1436
        %1438 = vmatprep.mubr.bf16.mxu0 %v1211
        %1439 = vmatmul.mubr.bf16.gmra.mrb[0].mxu0 %v1128
        %v1440 = vpop.f32.mrb[0].mxu0
        %v1441 = vadd.f32 %v1288, %v1440
        %v1442 = vpop.f32.mrb[0].mxu0
        %v1443 = vadd.f32 %v1290, %v1442
        %v1444 = vpop.f32.mrb[0].mxu0
        %v1445 = vadd.f32 %v1292, %v1444
        %v1446 = vpop.f32.mrb[0].mxu0
        %v1447 = vadd.f32 %v1294, %v1446
        %1448 = vmatprep.mubr.bf16.mxu0 %v1214
        %1449 = vmatmul.mubr.bf16.gmra.mrb[0].mxu0 %v1132
        %v1450 = vpop.f32.mrb[0].mxu0
        %v1451 = vadd.f32 %v1298, %v1450
        %v1452 = vpop.f32.mrb[0].mxu0
        %v1453 = vadd.f32 %v1300, %v1452
        %v1454 = vpop.f32.mrb[0].mxu0
        %v1455 = vadd.f32 %v1302, %v1454
        %v1456 = vpop.f32.mrb[0].mxu0
        %v1457 = vadd.f32 %v1304, %v1456
        %1458 = vmatprep.mubr.bf16.mxu0 %v1217
        %1459 = vmatmul.mubr.bf16.gmra.mrb[0].mxu0 %v1136
        %v1460 = vpop.f32.mrb[0].mxu0
        %v1461 = vadd.f32 %v1308, %v1460
        %v1462 = vpop.f32.mrb[0].mxu0
        %v1463 = vadd.f32 %v1310, %v1462
        %v1464 = vpop.f32.mrb[0].mxu0
        %v1465 = vadd.f32 %v1312, %v1464
        %v1466 = vpop.f32.mrb[0].mxu0
        %v1467 = vadd.f32 %v1314, %v1466
        %1468 = vmatprep.mubr.bf16.mxu0 %v1220
        %1469 = vmatmul.mubr.bf16.gmra.mrb[0].mxu0 %v1140
        %v1470 = vpop.f32.mrb[0].mxu0
        %v1471 = vadd.f32 %v1318, %v1470
        %v1472 = vpop.f32.mrb[0].mxu0
        %v1473 = vadd.f32 %v1320, %v1472
        %v1474 = vpop.f32.mrb[0].mxu0
        %v1475 = vadd.f32 %v1322, %v1474
        %v1476 = vpop.f32.mrb[0].mxu0
        %v1477 = vadd.f32 %v1324, %v1476
        %1478 = vmatprep.mubr.bf16.mxu0 %v1223
        %1479 = vmatmul.mubr.bf16.gmra.mrb[0].mxu0 %v1144
        %v1480 = vpop.f32.mrb[0].mxu0
        %v1481 = vadd.f32 %v1328, %v1480
        %v1482 = vpop.f32.mrb[0].mxu0
        %v1483 = vadd.f32 %v1330, %v1482
        %v1484 = vpop.f32.mrb[0].mxu0
        %v1485 = vadd.f32 %v1332, %v1484
        %v1486 = vpop.f32.mrb[0].mxu0
        %v1487 = vadd.f32 %v1334, %v1486
        %1488 = vmatprep.mubr.bf16.mxu0 %v1226
        %1489 = vmatmul.mubr.bf16.gmra.mrb[0].mxu0 %v1148
        %v1490 = vpop.f32.mrb[0].mxu0
        %v1491 = vadd.f32 %v1338, %v1490
        %v1492 = vpop.f32.mrb[0].mxu0
        %v1493 = vadd.f32 %v1340, %v1492
        %v1494 = vpop.f32.mrb[0].mxu0
        %v1495 = vadd.f32 %v1342, %v1494
        %v1496 = vpop.f32.mrb[0].mxu0
        %v1497 = vadd.f32 %v1344, %v1496
        %1498 = vmatprep.mubr.bf16.mxu0 %v1229
        %1499 = vmatmul.mubr.bf16.gmra.mrb[0].mxu0 %v1152
        %v1500 = vpop.f32.mrb[0].mxu0
        %v1501 = vadd.f32 %v1348, %v1500
        %v1502 = vpop.f32.mrb[0].mxu0
        %v1503 = vadd.f32 %v1350, %v1502
        %v1504 = vpop.f32.mrb[0].mxu0
        %v1505 = vadd.f32 %v1352, %v1504
        %v1506 = vpop.f32.mrb[0].mxu0
        %v1507 = vadd.f32 %v1354, %v1506
        %1508 = vmatprep.mubr.bf16.mxu0 %v1232
        %1509 = vmatmul.mubr.bf16.gmra.mrb[0].mxu0 %v1156
        %v1510 = vpop.f32.mrb[0].mxu0
        %v1511 = vadd.f32 %v1358, %v1510
        %v1512 = vpop.f32.mrb[0].mxu0
        %v1513 = vadd.f32 %v1360, %v1512
        %v1514 = vpop.f32.mrb[0].mxu0
        %v1515 = vadd.f32 %v1362, %v1514
        %v1516 = vpop.f32.mrb[0].mxu0
        %v1517 = vadd.f32 %v1364, %v1516
        %1518 = vmatprep.mubr.bf16.mxu0 %v1235
        %1519 = vmatmul.mubr.bf16.gmra.mrb[0].mxu0 %v1160
        %v1520 = vpop.f32.mrb[0].mxu0
        %v1521 = vadd.f32 %v1368, %v1520
        %v1522 = vpop.f32.mrb[0].mxu0
        %v1523 = vadd.f32 %v1370, %v1522
        %v1524 = vpop.f32.mrb[0].mxu0
        %v1525 = vadd.f32 %v1372, %v1524
        %v1526 = vpop.f32.mrb[0].mxu0
        %v1527 = vadd.f32 %v1374, %v1526
        %1528 = vmatprep.mubr.bf16.mxu0 %v1238
        %1529 = vmatmul.mubr.bf16.gmra.mrb[0].mxu0 %v1164
        %v1530 = vpop.f32.mrb[0].mxu0
        %v1531 = vadd.f32 %v1378, %v1530
        %v1532 = vpop.f32.mrb[0].mxu0
        %v1533 = vadd.f32 %v1380, %v1532
        %v1534 = vpop.f32.mrb[0].mxu0
        %v1535 = vadd.f32 %v1382, %v1534
        %v1536 = vpop.f32.mrb[0].mxu0
        %v1537 = vadd.f32 %v1384, %v1536
        %1538 = vmatprep.mubr.bf16.mxu0 %v1241
        %1539 = vmatmul.mubr.bf16.gmra.mrb[0].mxu0 %v1168
        %v1540 = vpop.f32.mrb[0].mxu0
        %v1541 = vadd.f32 %v1388, %v1540
        %v1542 = vpop.f32.mrb[0].mxu0
        %v1543 = vadd.f32 %v1390, %v1542
        %v1544 = vpop.f32.mrb[0].mxu0
        %v1545 = vadd.f32 %v1392, %v1544
        %v1546 = vpop.f32.mrb[0].mxu0
        %v1547 = vadd.f32 %v1394, %v1546
        %1548 = vdwg.mxu0
        %v1549 = vmax.f32 %v1431, 0.0
        %v1550 = vmax.f32 %v1433, 0.0
        %v1551 = vmax.f32 %v1435, 0.0
        %v1552 = vmax.f32 %v1437, 0.0
        %v1553 = vmax.f32 %v1441, 0.0
        %v1554 = vmax.f32 %v1443, 0.0
        %v1555 = vmax.f32 %v1445, 0.0
        %v1556 = vmax.f32 %v1447, 0.0
        %v1557 = vmax.f32 %v1451, 0.0
        %v1558 = vmax.f32 %v1453, 0.0
        %v1559 = vmax.f32 %v1455, 0.0
        %v1560 = vmax.f32 %v1457, 0.0
        %v1561 = vmax.f32 %v1461, 0.0
        %v1562 = vmax.f32 %v1463, 0.0
        %v1563 = vmax.f32 %v1465, 0.0
        %v1564 = vmax.f32 %v1467, 0.0
        %v1565 = vmax.f32 %v1471, 0.0
        %v1566 = vmax.f32 %v1473, 0.0
        %v1567 = vmax.f32 %v1475, 0.0
        %v1568 = vmax.f32 %v1477, 0.0
        %v1569 = vmax.f32 %v1481, 0.0
        %v1570 = vmax.f32 %v1483, 0.0
        %v1571 = vmax.f32 %v1485, 0.0
        %v1572 = vmax.f32 %v1487, 0.0
        %v1573 = vmax.f32 %v1491, 0.0
        %v1574 = vmax.f32 %v1493, 0.0
        %v1575 = vmax.f32 %v1495, 0.0
        %v1576 = vmax.f32 %v1497, 0.0
        %v1577 = vmax.f32 %v1501, 0.0
        %v1578 = vmax.f32 %v1503, 0.0
        %v1579 = vmax.f32 %v1505, 0.0
        %v1580 = vmax.f32 %v1507, 0.0
        %v1581 = vmax.f32 %v1511, 0.0
        %v1582 = vmax.f32 %v1513, 0.0
        %v1583 = vmax.f32 %v1515, 0.0
        %v1584 = vmax.f32 %v1517, 0.0
        %v1585 = vmax.f32 %v1521, 0.0
        %v1586 = vmax.f32 %v1523, 0.0
        %v1587 = vmax.f32 %v1525, 0.0
        %v1588 = vmax.f32 %v1527, 0.0
        %v1589 = vmax.f32 %v1531, 0.0
        %v1590 = vmax.f32 %v1533, 0.0
        %v1591 = vmax.f32 %v1535, 0.0
        %v1592 = vmax.f32 %v1537, 0.0
        %v1593 = vmax.f32 %v1541, 0.0
        %v1594 = vmax.f32 %v1543, 0.0
        %v1595 = vmax.f32 %v1545, 0.0
        %v1596 = vmax.f32 %v1547, 0.0
        %v1597 = vpack.c.bf16 %v1551, %v1549
        %v1598 = vpack.c.bf16 %v1552, %v1550
        %v1599 = vpack.c.bf16 %v1555, %v1553
        %v1600 = vpack.c.bf16 %v1556, %v1554
        %v1601 = vpack.c.bf16 %v1559, %v1557
        %v1602 = vpack.c.bf16 %v1560, %v1558
        %v1603 = vpack.c.bf16 %v1563, %v1561
        %v1604 = vpack.c.bf16 %v1564, %v1562
        %v1605 = vpack.c.bf16 %v1567, %v1565
        %v1606 = vpack.c.bf16 %v1568, %v1566
        %v1607 = vpack.c.bf16 %v1571, %v1569
        %v1608 = vpack.c.bf16 %v1572, %v1570
        %v1609 = vpack.c.bf16 %v1575, %v1573
        %v1610 = vpack.c.bf16 %v1576, %v1574
        %v1611 = vpack.c.bf16 %v1579, %v1577
        %v1612 = vpack.c.bf16 %v1580, %v1578
        %v1613 = vpack.c.bf16 %v1583, %v1581
        %v1614 = vpack.c.bf16 %v1584, %v1582
        %v1615 = vpack.c.bf16 %v1587, %v1585
        %v1616 = vpack.c.bf16 %v1588, %v1586
        %v1617 = vpack.c.bf16 %v1591, %v1589
        %v1618 = vpack.c.bf16 %v1592, %v1590
        %v1619 = vpack.c.bf16 %v1595, %v1593
        %v1620 = vpack.c.bf16 %v1596, %v1594
        %vm1621 = vsmask.f32 7424
        %v1623 = vshrl.u32 %v1597, 16
        %v1625 = vshll.u32 %v1597, 16
        %v1627 = vrot.slane %v1625, 1
        %v1628 = vor.u32 %v1623, %v1627
        %v1630 = vshll.u32 %v1599, 16
        %v1632 = vrot.slane %v1630, 1
        %v1633 = vsel %vm1621, %v1628, %v1632
        %v1635 = vshrl.u32 %v1598, 16
        %v1637 = vshll.u32 %v1598, 16
        %v1639 = vrot.slane %v1637, 1
        %v1640 = vor.u32 %v1635, %v1639
        %v1642 = vshll.u32 %v1600, 16
        %v1644 = vrot.slane %v1642, 1
        %v1645 = vsel %vm1621, %v1640, %v1644
        %v1646 = vshrl.u32 %v1599, 16
        %v1648 = vor.u32 %v1646, %v1632
        %v1650 = vshll.u32 %v1601, 16
        %v1652 = vrot.slane %v1650, 1
        %v1653 = vsel %vm1621, %v1648, %v1652
        %v1654 = vshrl.u32 %v1600, 16
        %v1656 = vor.u32 %v1654, %v1644
        %v1658 = vshll.u32 %v1602, 16
        %v1660 = vrot.slane %v1658, 1
        %v1661 = vsel %vm1621, %v1656, %v1660
        %v1662 = vshrl.u32 %v1601, 16
        %v1664 = vor.u32 %v1662, %v1652
        %v1666 = vshll.u32 %v1603, 16
        %v1668 = vrot.slane %v1666, 1
        %v1669 = vsel %vm1621, %v1664, %v1668
        %v1670 = vshrl.u32 %v1602, 16
        %v1672 = vor.u32 %v1670, %v1660
        %v1674 = vshll.u32 %v1604, 16
        %v1676 = vrot.slane %v1674, 1
        %v1677 = vsel %vm1621, %v1672, %v1676
        %v1678 = vshrl.u32 %v1603, 16
        %v1680 = vor.u32 %v1678, %v1668
        %v1682 = vshll.u32 %v1605, 16
        %v1684 = vrot.slane %v1682, 1
        %v1685 = vsel %vm1621, %v1680, %v1684
        %v1686 = vshrl.u32 %v1604, 16
        %v1688 = vor.u32 %v1686, %v1676
        %v1690 = vshll.u32 %v1606, 16
        %v1692 = vrot.slane %v1690, 1
        %v1693 = vsel %vm1621, %v1688, %v1692
        %v1694 = vshrl.u32 %v1605, 16
        %v1696 = vor.u32 %v1694, %v1684
        %v1698 = vshll.u32 %v1607, 16
        %v1700 = vrot.slane %v1698, 1
        %v1701 = vsel %vm1621, %v1696, %v1700
        %v1702 = vshrl.u32 %v1606, 16
        %v1704 = vor.u32 %v1702, %v1692
        %v1706 = vshll.u32 %v1608, 16
        %v1708 = vrot.slane %v1706, 1
        %v1709 = vsel %vm1621, %v1704, %v1708
        %v1710 = vshrl.u32 %v1607, 16
        %v1712 = vor.u32 %v1710, %v1700
        %v1714 = vshll.u32 %v1609, 16
        %v1716 = vrot.slane %v1714, 1
        %v1717 = vsel %vm1621, %v1712, %v1716
        %v1718 = vshrl.u32 %v1608, 16
        %v1720 = vor.u32 %v1718, %v1708
        %v1722 = vshll.u32 %v1610, 16
        %v1724 = vrot.slane %v1722, 1
        %v1725 = vsel %vm1621, %v1720, %v1724
        %v1726 = vshrl.u32 %v1609, 16
        %v1728 = vor.u32 %v1726, %v1716
        %v1730 = vshll.u32 %v1611, 16
        %v1732 = vrot.slane %v1730, 1
        %v1733 = vsel %vm1621, %v1728, %v1732
        %v1734 = vshrl.u32 %v1610, 16
        %v1736 = vor.u32 %v1734, %v1724
        %v1738 = vshll.u32 %v1612, 16
        %v1740 = vrot.slane %v1738, 1
        %v1741 = vsel %vm1621, %v1736, %v1740
        %v1742 = vshrl.u32 %v1611, 16
        %v1744 = vor.u32 %v1742, %v1732
        %v1746 = vshll.u32 %v1613, 16
        %v1748 = vrot.slane %v1746, 1
        %v1749 = vsel %vm1621, %v1744, %v1748
        %v1750 = vshrl.u32 %v1612, 16
        %v1752 = vor.u32 %v1750, %v1740
        %v1754 = vshll.u32 %v1614, 16
        %v1756 = vrot.slane %v1754, 1
        %v1757 = vsel %vm1621, %v1752, %v1756
        %v1758 = vshrl.u32 %v1613, 16
        %v1760 = vor.u32 %v1758, %v1748
        %v1762 = vshll.u32 %v1615, 16
        %v1764 = vrot.slane %v1762, 1
        %v1765 = vsel %vm1621, %v1760, %v1764
        %v1766 = vshrl.u32 %v1614, 16
        %v1768 = vor.u32 %v1766, %v1756
        %v1770 = vshll.u32 %v1616, 16
        %v1772 = vrot.slane %v1770, 1
        %v1773 = vsel %vm1621, %v1768, %v1772
        %v1774 = vshrl.u32 %v1615, 16
        %v1776 = vor.u32 %v1774, %v1764
        %v1778 = vshll.u32 %v1617, 16
        %v1780 = vrot.slane %v1778, 1
        %v1781 = vsel %vm1621, %v1776, %v1780
        %v1782 = vshrl.u32 %v1616, 16
        %v1784 = vor.u32 %v1782, %v1772
        %v1786 = vshll.u32 %v1618, 16
        %v1788 = vrot.slane %v1786, 1
        %v1789 = vsel %vm1621, %v1784, %v1788
        %v1790 = vshrl.u32 %v1617, 16
        %v1792 = vor.u32 %v1790, %v1780
        %v1794 = vshll.u32 %v1619, 16
        %v1796 = vrot.slane %v1794, 1
        %v1797 = vsel %vm1621, %v1792, %v1796
        %v1798 = vshrl.u32 %v1618, 16
        %v1800 = vor.u32 %v1798, %v1788
        %v1802 = vshll.u32 %v1620, 16
        %v1804 = vrot.slane %v1802, 1
        %v1805 = vsel %vm1621, %v1800, %v1804
        %v1806 = vshrl.u32 %v1619, 16
        %v1808 = vor.u32 %v1806, %v1796
        %v1809 = vshrl.u32 %v1620, 16
        %v1811 = vor.u32 %v1809, %v1804
        %vm1838 = vcmask 1047552
        %vm1839 = vmand %vm1838, %vm1621
        %v1840 = vsel %vm1839, %v1808, %v1627
        %v1841 = vsel %vm1839, %v1811, %v1639
        %v1842 = vmax.bf16 %v1597, %v1633
        %v1843 = vmax.bf16 %v1598, %v1645
        %v1844 = vmax.bf16 %v1599, %v1653
        %v1845 = vmax.bf16 %v1600, %v1661
        %v1846 = vmax.bf16 %v1601, %v1669
        %v1847 = vmax.bf16 %v1602, %v1677
        %v1848 = vmax.bf16 %v1603, %v1685
        %v1849 = vmax.bf16 %v1604, %v1693
        %v1850 = vmax.bf16 %v1605, %v1701
        %v1851 = vmax.bf16 %v1606, %v1709
        %v1852 = vmax.bf16 %v1607, %v1717
        %v1853 = vmax.bf16 %v1608, %v1725
        %v1854 = vmax.bf16 %v1609, %v1733
        %v1855 = vmax.bf16 %v1610, %v1741
        %v1856 = vmax.bf16 %v1611, %v1749
        %v1857 = vmax.bf16 %v1612, %v1757
        %v1858 = vmax.bf16 %v1613, %v1765
        %v1859 = vmax.bf16 %v1614, %v1773
        %v1860 = vmax.bf16 %v1615, %v1781
        %v1861 = vmax.bf16 %v1616, %v1789
        %v1862 = vmax.bf16 %v1617, %v1797
        %v1863 = vmax.bf16 %v1618, %v1805
        %v1864 = vmax.bf16 %v1619, %v1840
        %v1865 = vmax.bf16 %v1620, %v1841
        %1890 = vrot.lane.b32.xlu0 %v1842, 127
        %v1891 = vpop.permute.xlu0 %1890
        %1892 = vrot.lane.b32.xlu0 %v1843, 127
        %v1893 = vpop.permute.xlu0 %1892
        %1894 = vrot.lane.b32.xlu0 %v1844, 127
        %v1895 = vpop.permute.xlu0 %1894
        %1896 = vrot.lane.b32.xlu0 %v1845, 127
        %v1897 = vpop.permute.xlu0 %1896
        %1898 = vrot.lane.b32.xlu0 %v1846, 127
        %v1899 = vpop.permute.xlu0 %1898
        %1900 = vrot.lane.b32.xlu0 %v1847, 127
        %v1901 = vpop.permute.xlu0 %1900
        %1902 = vrot.lane.b32.xlu0 %v1848, 127
        %v1903 = vpop.permute.xlu0 %1902
        %1904 = vrot.lane.b32.xlu0 %v1849, 127
        %v1905 = vpop.permute.xlu0 %1904
        %1906 = vrot.lane.b32.xlu0 %v1850, 127
        %v1907 = vpop.permute.xlu0 %1906
        %1908 = vrot.lane.b32.xlu0 %v1851, 127
        %v1909 = vpop.permute.xlu0 %1908
        %1910 = vrot.lane.b32.xlu0 %v1852, 127
        %v1911 = vpop.permute.xlu0 %1910
        %1912 = vrot.lane.b32.xlu0 %v1853, 127
        %v1913 = vpop.permute.xlu0 %1912
        %1914 = vrot.lane.b32.xlu0 %v1854, 127
        %v1915 = vpop.permute.xlu0 %1914
        %1916 = vrot.lane.b32.xlu0 %v1855, 127
        %v1917 = vpop.permute.xlu0 %1916
        %1918 = vrot.lane.b32.xlu0 %v1856, 127
        %v1919 = vpop.permute.xlu0 %1918
        %1920 = vrot.lane.b32.xlu0 %v1857, 127
        %v1921 = vpop.permute.xlu0 %1920
        %1922 = vrot.lane.b32.xlu0 %v1858, 127
        %v1923 = vpop.permute.xlu0 %1922
        %1924 = vrot.lane.b32.xlu0 %v1859, 127
        %v1925 = vpop.permute.xlu0 %1924
        %1926 = vrot.lane.b32.xlu0 %v1860, 127
        %v1927 = vpop.permute.xlu0 %1926
        %1928 = vrot.lane.b32.xlu0 %v1861, 127
        %v1929 = vpop.permute.xlu0 %1928
        %1930 = vrot.lane.b32.xlu0 %v1862, 127
        %v1931 = vpop.permute.xlu0 %1930
        %1932 = vrot.lane.b32.xlu0 %v1863, 127
        %v1933 = vpop.permute.xlu0 %1932
        %1934 = vrot.lane.b32.xlu0 %v1864, 127
        %v1935 = vpop.permute.xlu0 %1934
        %1936 = vrot.lane.b32.xlu0 %v1865, 127
        %v1937 = vpop.permute.xlu0 %1936
        %v1938 = vsel %vm550, %v1891, %v1893
        %v1939 = vsel %vm550, %v1895, %v1897
        %v1940 = vsel %vm550, %v1899, %v1901
        %v1941 = vsel %vm550, %v1903, %v1905
        %v1942 = vsel %vm550, %v1907, %v1909
        %v1943 = vsel %vm550, %v1911, %v1913
        %v1944 = vsel %vm550, %v1915, %v1917
        %v1945 = vsel %vm550, %v1919, %v1921
        %v1946 = vsel %vm550, %v1923, %v1925
        %v1947 = vsel %vm550, %v1927, %v1929
        %v1948 = vsel %vm550, %v1931, %v1933
        %v1949 = vsel %vm550, %v1935, %v1937
        %v1964 = vsel %vm563, %v1893, %v1891
        %v1968 = vsel %vm563, %v1897, %v1895
        %v1972 = vsel %vm563, %v1901, %v1899
        %v1976 = vsel %vm563, %v1905, %v1903
        %v1980 = vsel %vm563, %v1909, %v1907
        %v1984 = vsel %vm563, %v1913, %v1911
        %v1988 = vsel %vm563, %v1917, %v1915
        %v1992 = vsel %vm563, %v1921, %v1919
        %v1996 = vsel %vm563, %v1925, %v1923
        %v2000 = vsel %vm563, %v1929, %v1927
        %v2004 = vsel %vm563, %v1933, %v1931
        %v2008 = vsel %vm563, %v1937, %v1935
        %v2010 = vmax.bf16 %v1842, %v1938
        %v2011 = vmax.bf16 %v1843, %v1964
        %v2012 = vmax.bf16 %v1844, %v1939
        %v2013 = vmax.bf16 %v1845, %v1968
        %v2014 = vmax.bf16 %v1846, %v1940
        %v2015 = vmax.bf16 %v1847, %v1972
        %v2016 = vmax.bf16 %v1848, %v1941
        %v2017 = vmax.bf16 %v1849, %v1976
        %v2018 = vmax.bf16 %v1850, %v1942
        %v2019 = vmax.bf16 %v1851, %v1980
        %v2020 = vmax.bf16 %v1852, %v1943
        %v2021 = vmax.bf16 %v1853, %v1984
        %v2022 = vmax.bf16 %v1854, %v1944
        %v2023 = vmax.bf16 %v1855, %v1988
        %v2024 = vmax.bf16 %v1856, %v1945
        %v2025 = vmax.bf16 %v1857, %v1992
        %v2026 = vmax.bf16 %v1858, %v1946
        %v2027 = vmax.bf16 %v1859, %v1996
        %v2028 = vmax.bf16 %v1860, %v1947
        %v2029 = vmax.bf16 %v1861, %v2000
        %v2030 = vmax.bf16 %v1862, %v1948
        %v2031 = vmax.bf16 %v1863, %v2004
        %v2032 = vmax.bf16 %v1864, %v1949
        %v2033 = vmax.bf16 %v1865, %v2008
        %2058 = vrot.lane.b32.xlu0 %v2010, 126
        %v2059 = vpop.permute.xlu0 %2058
        %2060 = vrot.lane.b32.xlu0 %v2011, 126
        %v2061 = vpop.permute.xlu0 %2060
        %2062 = vrot.lane.b32.xlu0 %v2012, 126
        %v2063 = vpop.permute.xlu0 %2062
        %2064 = vrot.lane.b32.xlu0 %v2013, 126
        %v2065 = vpop.permute.xlu0 %2064
        %2066 = vrot.lane.b32.xlu0 %v2014, 126
        %v2067 = vpop.permute.xlu0 %2066
        %2068 = vrot.lane.b32.xlu0 %v2015, 126
        %v2069 = vpop.permute.xlu0 %2068
        %2070 = vrot.lane.b32.xlu0 %v2016, 126
        %v2071 = vpop.permute.xlu0 %2070
        %2072 = vrot.lane.b32.xlu0 %v2017, 126
        %v2073 = vpop.permute.xlu0 %2072
        %2074 = vrot.lane.b32.xlu0 %v2018, 126
        %v2075 = vpop.permute.xlu0 %2074
        %2076 = vrot.lane.b32.xlu0 %v2019, 126
        %v2077 = vpop.permute.xlu0 %2076
        %2078 = vrot.lane.b32.xlu0 %v2020, 126
        %v2079 = vpop.permute.xlu0 %2078
        %2080 = vrot.lane.b32.xlu0 %v2021, 126
        %v2081 = vpop.permute.xlu0 %2080
        %2082 = vrot.lane.b32.xlu0 %v2022, 126
        %v2083 = vpop.permute.xlu0 %2082
        %2084 = vrot.lane.b32.xlu0 %v2023, 126
        %v2085 = vpop.permute.xlu0 %2084
        %2086 = vrot.lane.b32.xlu0 %v2024, 126
        %v2087 = vpop.permute.xlu0 %2086
        %2088 = vrot.lane.b32.xlu0 %v2025, 126
        %v2089 = vpop.permute.xlu0 %2088
        %2090 = vrot.lane.b32.xlu0 %v2026, 126
        %v2091 = vpop.permute.xlu0 %2090
        %2092 = vrot.lane.b32.xlu0 %v2027, 126
        %v2093 = vpop.permute.xlu0 %2092
        %2094 = vrot.lane.b32.xlu0 %v2028, 126
        %v2095 = vpop.permute.xlu0 %2094
        %2096 = vrot.lane.b32.xlu0 %v2029, 126
        %v2097 = vpop.permute.xlu0 %2096
        %2098 = vrot.lane.b32.xlu0 %v2030, 126
        %v2099 = vpop.permute.xlu0 %2098
        %2100 = vrot.lane.b32.xlu0 %v2031, 126
        %v2101 = vpop.permute.xlu0 %2100
        %2102 = vrot.lane.b32.xlu0 %v2032, 126
        %v2103 = vpop.permute.xlu0 %2102
        %2104 = vrot.lane.b32.xlu0 %v2033, 126
        %v2105 = vpop.permute.xlu0 %2104
        %v2106 = vsel %vm612, %v2059, %v2061
        %v2107 = vsel %vm612, %v2063, %v2065
        %v2108 = vsel %vm612, %v2067, %v2069
        %v2109 = vsel %vm612, %v2071, %v2073
        %v2110 = vsel %vm612, %v2075, %v2077
        %v2111 = vsel %vm612, %v2079, %v2081
        %v2112 = vsel %vm612, %v2083, %v2085
        %v2113 = vsel %vm612, %v2087, %v2089
        %v2114 = vsel %vm612, %v2091, %v2093
        %v2115 = vsel %vm612, %v2095, %v2097
        %v2116 = vsel %vm612, %v2099, %v2101
        %v2117 = vsel %vm612, %v2103, %v2105
        %v2132 = vsel %vm625, %v2061, %v2059
        %v2136 = vsel %vm625, %v2065, %v2063
        %v2140 = vsel %vm625, %v2069, %v2067
        %v2144 = vsel %vm625, %v2073, %v2071
        %v2148 = vsel %vm625, %v2077, %v2075
        %v2152 = vsel %vm625, %v2081, %v2079
        %v2156 = vsel %vm625, %v2085, %v2083
        %v2160 = vsel %vm625, %v2089, %v2087
        %v2164 = vsel %vm625, %v2093, %v2091
        %v2168 = vsel %vm625, %v2097, %v2095
        %v2172 = vsel %vm625, %v2101, %v2099
        %v2176 = vsel %vm625, %v2105, %v2103
        %2178 = vrot.lane.b32.xlu0 %v2010, 124
        %v2179 = vpop.permute.xlu0 %2178
        %2180 = vrot.lane.b32.xlu0 %v2011, 124
        %v2181 = vpop.permute.xlu0 %2180
        %2182 = vrot.lane.b32.xlu0 %v2012, 124
        %v2183 = vpop.permute.xlu0 %2182
        %2184 = vrot.lane.b32.xlu0 %v2013, 124
        %v2185 = vpop.permute.xlu0 %2184
        %2186 = vrot.lane.b32.xlu0 %v2014, 124
        %v2187 = vpop.permute.xlu0 %2186
        %2188 = vrot.lane.b32.xlu0 %v2015, 124
        %v2189 = vpop.permute.xlu0 %2188
        %2190 = vrot.lane.b32.xlu0 %v2016, 124
        %v2191 = vpop.permute.xlu0 %2190
        %2192 = vrot.lane.b32.xlu0 %v2017, 124
        %v2193 = vpop.permute.xlu0 %2192
        %2194 = vrot.lane.b32.xlu0 %v2018, 124
        %v2195 = vpop.permute.xlu0 %2194
        %2196 = vrot.lane.b32.xlu0 %v2019, 124
        %v2197 = vpop.permute.xlu0 %2196
        %2198 = vrot.lane.b32.xlu0 %v2020, 124
        %v2199 = vpop.permute.xlu0 %2198
        %2200 = vrot.lane.b32.xlu0 %v2021, 124
        %v2201 = vpop.permute.xlu0 %2200
        %2202 = vrot.lane.b32.xlu0 %v2022, 124
        %v2203 = vpop.permute.xlu0 %2202
        %2204 = vrot.lane.b32.xlu0 %v2023, 124
        %v2205 = vpop.permute.xlu0 %2204
        %2206 = vrot.lane.b32.xlu0 %v2024, 124
        %v2207 = vpop.permute.xlu0 %2206
        %2208 = vrot.lane.b32.xlu0 %v2025, 124
        %v2209 = vpop.permute.xlu0 %2208
        %2210 = vrot.lane.b32.xlu0 %v2026, 124
        %v2211 = vpop.permute.xlu0 %2210
        %2212 = vrot.lane.b32.xlu0 %v2027, 124
        %v2213 = vpop.permute.xlu0 %2212
        %2214 = vrot.lane.b32.xlu0 %v2028, 124
        %v2215 = vpop.permute.xlu0 %2214
        %2216 = vrot.lane.b32.xlu0 %v2029, 124
        %v2217 = vpop.permute.xlu0 %2216
        %2218 = vrot.lane.b32.xlu0 %v2030, 124
        %v2219 = vpop.permute.xlu0 %2218
        %2220 = vrot.lane.b32.xlu0 %v2031, 124
        %v2221 = vpop.permute.xlu0 %2220
        %2222 = vrot.lane.b32.xlu0 %v2032, 124
        %v2223 = vpop.permute.xlu0 %2222
        %2224 = vrot.lane.b32.xlu0 %v2033, 124
        %v2225 = vpop.permute.xlu0 %2224
        %v2226 = vsel %vm736, %v2179, %v2181
        %v2227 = vsel %vm736, %v2183, %v2185
        %v2228 = vsel %vm736, %v2187, %v2189
        %v2229 = vsel %vm736, %v2191, %v2193
        %v2230 = vsel %vm736, %v2195, %v2197
        %v2231 = vsel %vm736, %v2199, %v2201
        %v2232 = vsel %vm736, %v2203, %v2205
        %v2233 = vsel %vm736, %v2207, %v2209
        %v2234 = vsel %vm736, %v2211, %v2213
        %v2235 = vsel %vm736, %v2215, %v2217
        %v2236 = vsel %vm736, %v2219, %v2221
        %v2237 = vsel %vm736, %v2223, %v2225
        %v2252 = vsel %vm749, %v2181, %v2179
        %v2256 = vsel %vm749, %v2185, %v2183
        %v2260 = vsel %vm749, %v2189, %v2187
        %v2264 = vsel %vm749, %v2193, %v2191
        %v2268 = vsel %vm749, %v2197, %v2195
        %v2272 = vsel %vm749, %v2201, %v2199
        %v2276 = vsel %vm749, %v2205, %v2203
        %v2280 = vsel %vm749, %v2209, %v2207
        %v2284 = vsel %vm749, %v2213, %v2211
        %v2288 = vsel %vm749, %v2217, %v2215
        %v2292 = vsel %vm749, %v2221, %v2219
        %v2296 = vsel %vm749, %v2225, %v2223
        %2298 = vrot.lane.b32.xlu0 %v2010, 122
        %v2299 = vpop.permute.xlu0 %2298
        %2300 = vrot.lane.b32.xlu0 %v2011, 122
        %v2301 = vpop.permute.xlu0 %2300
        %2302 = vrot.lane.b32.xlu0 %v2012, 122
        %v2303 = vpop.permute.xlu0 %2302
        %2304 = vrot.lane.b32.xlu0 %v2013, 122
        %v2305 = vpop.permute.xlu0 %2304
        %2306 = vrot.lane.b32.xlu0 %v2014, 122
        %v2307 = vpop.permute.xlu0 %2306
        %2308 = vrot.lane.b32.xlu0 %v2015, 122
        %v2309 = vpop.permute.xlu0 %2308
        %2310 = vrot.lane.b32.xlu0 %v2016, 122
        %v2311 = vpop.permute.xlu0 %2310
        %2312 = vrot.lane.b32.xlu0 %v2017, 122
        %v2313 = vpop.permute.xlu0 %2312
        %2314 = vrot.lane.b32.xlu0 %v2018, 122
        %v2315 = vpop.permute.xlu0 %2314
        %2316 = vrot.lane.b32.xlu0 %v2019, 122
        %v2317 = vpop.permute.xlu0 %2316
        %2318 = vrot.lane.b32.xlu0 %v2020, 122
        %v2319 = vpop.permute.xlu0 %2318
        %2320 = vrot.lane.b32.xlu0 %v2021, 122
        %v2321 = vpop.permute.xlu0 %2320
        %2322 = vrot.lane.b32.xlu0 %v2022, 122
        %v2323 = vpop.permute.xlu0 %2322
        %2324 = vrot.lane.b32.xlu0 %v2023, 122
        %v2325 = vpop.permute.xlu0 %2324
        %2326 = vrot.lane.b32.xlu0 %v2024, 122
        %v2327 = vpop.permute.xlu0 %2326
        %2328 = vrot.lane.b32.xlu0 %v2025, 122
        %v2329 = vpop.permute.xlu0 %2328
        %2330 = vrot.lane.b32.xlu0 %v2026, 122
        %v2331 = vpop.permute.xlu0 %2330
        %2332 = vrot.lane.b32.xlu0 %v2027, 122
        %v2333 = vpop.permute.xlu0 %2332
        %2334 = vrot.lane.b32.xlu0 %v2028, 122
        %v2335 = vpop.permute.xlu0 %2334
        %2336 = vrot.lane.b32.xlu0 %v2029, 122
        %v2337 = vpop.permute.xlu0 %2336
        %2338 = vrot.lane.b32.xlu0 %v2030, 122
        %v2339 = vpop.permute.xlu0 %2338
        %2340 = vrot.lane.b32.xlu0 %v2031, 122
        %v2341 = vpop.permute.xlu0 %2340
        %2342 = vrot.lane.b32.xlu0 %v2032, 122
        %v2343 = vpop.permute.xlu0 %2342
        %2344 = vrot.lane.b32.xlu0 %v2033, 122
        %v2345 = vpop.permute.xlu0 %2344
        %vm2346 = vcmask 998400
        %v2347 = vsel %vm2346, %v2299, %v2301
        %v2348 = vsel %vm2346, %v2303, %v2305
        %v2349 = vsel %vm2346, %v2307, %v2309
        %v2350 = vsel %vm2346, %v2311, %v2313
        %v2351 = vsel %vm2346, %v2315, %v2317
        %v2352 = vsel %vm2346, %v2319, %v2321
        %v2353 = vsel %vm2346, %v2323, %v2325
        %v2354 = vsel %vm2346, %v2327, %v2329
        %v2355 = vsel %vm2346, %v2331, %v2333
        %v2356 = vsel %vm2346, %v2335, %v2337
        %v2357 = vsel %vm2346, %v2339, %v2341
        %v2358 = vsel %vm2346, %v2343, %v2345
        %vm2371 = vcmask 998400
        %v2374 = vsel %vm2371, %v2301, %v2299
        %v2378 = vsel %vm2371, %v2305, %v2303
        %v2382 = vsel %vm2371, %v2309, %v2307
        %v2386 = vsel %vm2371, %v2313, %v2311
        %v2390 = vsel %vm2371, %v2317, %v2315
        %v2394 = vsel %vm2371, %v2321, %v2319
        %v2398 = vsel %vm2371, %v2325, %v2323
        %v2402 = vsel %vm2371, %v2329, %v2327
        %v2406 = vsel %vm2371, %v2333, %v2331
        %v2410 = vsel %vm2371, %v2337, %v2335
        %v2414 = vsel %vm2371, %v2341, %v2339
        %v2418 = vsel %vm2371, %v2345, %v2343
        %2420 = vrot.lane.b32.xlu0 %v2010, 120
        %v2421 = vpop.permute.xlu0 %2420
        %2422 = vrot.lane.b32.xlu0 %v2011, 120
        %v2423 = vpop.permute.xlu0 %2422
        %2424 = vrot.lane.b32.xlu0 %v2012, 120
        %v2425 = vpop.permute.xlu0 %2424
        %2426 = vrot.lane.b32.xlu0 %v2013, 120
        %v2427 = vpop.permute.xlu0 %2426
        %2428 = vrot.lane.b32.xlu0 %v2014, 120
        %v2429 = vpop.permute.xlu0 %2428
        %2430 = vrot.lane.b32.xlu0 %v2015, 120
        %v2431 = vpop.permute.xlu0 %2430
        %2432 = vrot.lane.b32.xlu0 %v2016, 120
        %v2433 = vpop.permute.xlu0 %2432
        %2434 = vrot.lane.b32.xlu0 %v2017, 120
        %v2435 = vpop.permute.xlu0 %2434
        %2436 = vrot.lane.b32.xlu0 %v2018, 120
        %v2437 = vpop.permute.xlu0 %2436
        %2438 = vrot.lane.b32.xlu0 %v2019, 120
        %v2439 = vpop.permute.xlu0 %2438
        %2440 = vrot.lane.b32.xlu0 %v2020, 120
        %v2441 = vpop.permute.xlu0 %2440
        %2442 = vrot.lane.b32.xlu0 %v2021, 120
        %v2443 = vpop.permute.xlu0 %2442
        %2444 = vrot.lane.b32.xlu0 %v2022, 120
        %v2445 = vpop.permute.xlu0 %2444
        %2446 = vrot.lane.b32.xlu0 %v2023, 120
        %v2447 = vpop.permute.xlu0 %2446
        %2448 = vrot.lane.b32.xlu0 %v2024, 120
        %v2449 = vpop.permute.xlu0 %2448
        %2450 = vrot.lane.b32.xlu0 %v2025, 120
        %v2451 = vpop.permute.xlu0 %2450
        %2452 = vrot.lane.b32.xlu0 %v2026, 120
        %v2453 = vpop.permute.xlu0 %2452
        %2454 = vrot.lane.b32.xlu0 %v2027, 120
        %v2455 = vpop.permute.xlu0 %2454
        %2456 = vrot.lane.b32.xlu0 %v2028, 120
        %v2457 = vpop.permute.xlu0 %2456
        %2458 = vrot.lane.b32.xlu0 %v2029, 120
        %v2459 = vpop.permute.xlu0 %2458
        %2460 = vrot.lane.b32.xlu0 %v2030, 120
        %v2461 = vpop.permute.xlu0 %2460
        %2462 = vrot.lane.b32.xlu0 %v2031, 120
        %v2463 = vpop.permute.xlu0 %2462
        %2464 = vrot.lane.b32.xlu0 %v2032, 120
        %v2465 = vpop.permute.xlu0 %2464
        %2466 = vrot.lane.b32.xlu0 %v2033, 120
        %v2467 = vpop.permute.xlu0 %2466
        %vm2468 = vcmask 982016
        %v2469 = vsel %vm2468, %v2421, %v2423
        %v2470 = vsel %vm2468, %v2425, %v2427
        %v2471 = vsel %vm2468, %v2429, %v2431
        %v2472 = vsel %vm2468, %v2433, %v2435
        %v2473 = vsel %vm2468, %v2437, %v2439
        %v2474 = vsel %vm2468, %v2441, %v2443
        %v2475 = vsel %vm2468, %v2445, %v2447
        %v2476 = vsel %vm2468, %v2449, %v2451
        %v2477 = vsel %vm2468, %v2453, %v2455
        %v2478 = vsel %vm2468, %v2457, %v2459
        %v2479 = vsel %vm2468, %v2461, %v2463
        %v2480 = vsel %vm2468, %v2465, %v2467
        %vm2493 = vcmask 982016
        %v2496 = vsel %vm2493, %v2423, %v2421
        %v2500 = vsel %vm2493, %v2427, %v2425
        %v2504 = vsel %vm2493, %v2431, %v2429
        %v2508 = vsel %vm2493, %v2435, %v2433
        %v2512 = vsel %vm2493, %v2439, %v2437
        %v2516 = vsel %vm2493, %v2443, %v2441
        %v2520 = vsel %vm2493, %v2447, %v2445
        %v2524 = vsel %vm2493, %v2451, %v2449
        %v2528 = vsel %vm2493, %v2455, %v2453
        %v2532 = vsel %vm2493, %v2459, %v2457
        %v2536 = vsel %vm2493, %v2463, %v2461
        %v2540 = vsel %vm2493, %v2467, %v2465
        %v2542 = vld [vmem:[%s3] sm:$0xff]
        %v2543 = vld [vmem:[%s3 + $0x8] sm:$0xff]
        %v2544 = vld [vmem:[%s3 + $0x10] sm:$0xff]
        %v2545 = vld [vmem:[%s3 + $0x18] sm:$0xff]
        %v2546 = vld [vmem:[%s3 + $0x20] sm:$0xff]
        %v2547 = vld [vmem:[%s3 + $0x28] sm:$0xff]
        %v2548 = vld [vmem:[%s3 + $0x30] sm:$0xff]
        %v2549 = vld [vmem:[%s3 + $0x38] sm:$0xff]
        %v2550 = vld [vmem:[%s3 + $0x40] sm:$0xff]
        %v2551 = vld [vmem:[%s3 + $0x48] sm:$0xff]
        %v2552 = vld [vmem:[%s3 + $0x50] sm:$0xff]
        %v2553 = vld [vmem:[%s3 + $0x58] sm:$0xff]
        %v2554 = vld [vmem:[%s3 + $0x60] sm:$0xff]
        %v2555 = vld [vmem:[%s3 + $0x68] sm:$0xff]
        %v2556 = vld [vmem:[%s3 + $0x70] sm:$0xff]
        %v2557 = vld [vmem:[%s3 + $0x78] sm:$0xff]
        %v2558 = vld [vmem:[%s3 + $0x80] sm:$0xff]
        %v2559 = vld [vmem:[%s3 + $0x88] sm:$0xff]
        %v2560 = vld [vmem:[%s3 + $0x90] sm:$0xff]
        %v2561 = vld [vmem:[%s3 + $0x98] sm:$0xff]
        %v2562 = vld [vmem:[%s3 + $0xa0] sm:$0xff]
        %v2563 = vld [vmem:[%s3 + $0xa8] sm:$0xff]
        %v2564 = vld [vmem:[%s3 + $0xb0] sm:$0xff]
        %v2565 = vld [vmem:[%s3 + $0xb8] sm:$0xff]
        %v2566 = vld [vmem:[%s3 + $0xc0] sm:$0xff]
        %v2567 = vld [vmem:[%s3 + $0xc8] sm:$0xff]
        %v2568 = vld [vmem:[%s3 + $0xd0] sm:$0xff]
        %v2569 = vld [vmem:[%s3 + $0xd8] sm:$0xff]
        %v2570 = vld [vmem:[%s3 + $0xe0] sm:$0xff]
        %v2571 = vld [vmem:[%s3 + $0xe8] sm:$0xff]
        %v2572 = vld [vmem:[%s3 + $0xf0] sm:$0xff]
        %v2573 = vld [vmem:[%s3 + $0xf8] sm:$0xff]
        %v2574 = vld [vmem:[%s3 + $0x100] sm:$0xff]
        %v2575 = vld [vmem:[%s3 + $0x108] sm:$0xff]
        %v2576 = vld [vmem:[%s3 + $0x110] sm:$0xff]
        %v2577 = vld [vmem:[%s3 + $0x118] sm:$0xff]
        %v2578 = vld [vmem:[%s3 + $0x120] sm:$0xff]
        %v2579 = vld [vmem:[%s3 + $0x128] sm:$0xff]
        %v2580 = vld [vmem:[%s3 + $0x130] sm:$0xff]
        %v2581 = vld [vmem:[%s3 + $0x138] sm:$0xff]
        %v2582 = vld [vmem:[%s3 + $0x140] sm:$0xff]
        %v2583 = vld [vmem:[%s3 + $0x148] sm:$0xff]
        %v2584 = vld [vmem:[%s3 + $0x150] sm:$0xff]
        %v2585 = vld [vmem:[%s3 + $0x158] sm:$0xff]
        %v2586 = vld [vmem:[%s3 + $0x160] sm:$0xff]
        %v2587 = vld [vmem:[%s3 + $0x168] sm:$0xff]
        %v2588 = vld [vmem:[%s3 + $0x170] sm:$0xff]
        %v2589 = vld [vmem:[%s3 + $0x178] sm:$0xff]
        %v2590 = vld [vmem:[%s3 + $0x180] sm:$0xff]
        %v2591 = vld [vmem:[%s3 + $0x188] sm:$0xff]
        %v2592 = vld [vmem:[%s3 + $0x190] sm:$0xff]
        %v2593 = vld [vmem:[%s3 + $0x198] sm:$0xff]
        %v2594 = vld [vmem:[%s3 + $0x1a0] sm:$0xff]
        %v2595 = vld [vmem:[%s3 + $0x1a8] sm:$0xff]
        %v2596 = vld [vmem:[%s3 + $0x1b0] sm:$0xff]
        %v2597 = vld [vmem:[%s3 + $0x1b8] sm:$0xff]
        %v2598 = vld [vmem:[%s3 + $0x1c0] sm:$0xff]
        %v2599 = vld [vmem:[%s3 + $0x1c8] sm:$0xff]
        %v2600 = vld [vmem:[%s3 + $0x1d0] sm:$0xff]
        %v2601 = vld [vmem:[%s3 + $0x1d8] sm:$0xff]
        %v2602 = vld [vmem:[%s3 + $0x1e0] sm:$0xff]
        %v2603 = vld [vmem:[%s3 + $0x1e8] sm:$0xff]
        %v2604 = vld [vmem:[%s3 + $0x1f0] sm:$0xff]
        %v2605 = vld [vmem:[%s3 + $0x1f8] sm:$0xff]
        %v2606 = vld [vmem:[%s3 + $0x200] sm:$0xff]
        %v2607 = vld [vmem:[%s3 + $0x208] sm:$0xff]
        %v2608 = vld [vmem:[%s3 + $0x210] sm:$0xff]
        %v2609 = vld [vmem:[%s3 + $0x218] sm:$0xff]
        %v2610 = vld [vmem:[%s3 + $0x220] sm:$0xff]
        %v2611 = vld [vmem:[%s3 + $0x228] sm:$0xff]
        %v2612 = vld [vmem:[%s3 + $0x230] sm:$0xff]
        %v2613 = vld [vmem:[%s3 + $0x238] sm:$0xff]
        %v2614 = vld [vmem:[%s3 + $0x240] sm:$0xff]
        %v2615 = vld [vmem:[%s3 + $0x248] sm:$0xff]
        %v2616 = vld [vmem:[%s3 + $0x250] sm:$0xff]
        %v2617 = vld [vmem:[%s3 + $0x258] sm:$0xff]
        %v2618 = vld [vmem:[%s3 + $0x260] sm:$0xff]
        %v2619 = vld [vmem:[%s3 + $0x268] sm:$0xff]
        %v2620 = vld [vmem:[%s3 + $0x270] sm:$0xff]
        %v2621 = vld [vmem:[%s3 + $0x278] sm:$0xff]
        %v2622 = vld [vmem:[%s4] sm:$0xff]
        %v2623 = vld [vmem:[%s4 + $0x8] sm:$0xff]
        %v2624 = vld [vmem:[%s4 + $0x10] sm:$0xff]
        %v2625 = vld [vmem:[%s4 + $0x18] sm:$0xff]
        %v2626 = vld [vmem:[%s4 + $0x20] sm:$0xff]
        %v2627 = vld [vmem:[%s4 + $0x28] sm:$0xff]
        %v2628 = vld [vmem:[%s4 + $0x30] sm:$0xff]
        %v2629 = vld [vmem:[%s4 + $0x38] sm:$0xff]
        %v2630 = vld [vmem:[%s4 + $0x40] sm:$0xff]
        %v2631 = vld [vmem:[%s4 + $0x48] sm:$0xff]
        %v2632 = vld [vmem:[%s4 + $0x50] sm:$0xff]
        %v2633 = vld [vmem:[%s4 + $0x58] sm:$0xff]
        %v2634 = vld [vmem:[%s4 + $0x60] sm:$0xff]
        %v2635 = vld [vmem:[%s4 + $0x68] sm:$0xff]
        %v2636 = vld [vmem:[%s4 + $0x70] sm:$0xff]
        %v2637 = vld [vmem:[%s4 + $0x78] sm:$0xff]
        %v2638 = vld [vmem:[%s4 + $0x80] sm:$0xff]
        %v2639 = vld [vmem:[%s4 + $0x88] sm:$0xff]
        %v2640 = vld [vmem:[%s4 + $0x90] sm:$0xff]
        %v2641 = vld [vmem:[%s4 + $0x98] sm:$0xff]
        %2643 = vset.pattern.permute.xlu0 0
        %2644 = vperm.xlu0 %2643, %v2622
        %v2645 = vpop.permute.xlu0 %2644
        %2648 = vset.pattern.permute.xlu0 0
        %2649 = vperm.xlu0 %2648, %v2623
        %v2650 = vpop.permute.xlu0 %2649
        %2653 = vset.pattern.permute.xlu0 0
        %2654 = vperm.xlu0 %2653, %v2624
        %v2655 = vpop.permute.xlu0 %2654
        %2658 = vset.pattern.permute.xlu0 0
        %2659 = vperm.xlu0 %2658, %v2625
        %v2660 = vpop.permute.xlu0 %2659
        %2663 = vset.pattern.permute.xlu0 0
        %2664 = vperm.xlu0 %2663, %v2626
        %v2665 = vpop.permute.xlu0 %2664
        %2668 = vset.pattern.permute.xlu0 0
        %2669 = vperm.xlu0 %2668, %v2627
        %v2670 = vpop.permute.xlu0 %2669
        %2673 = vset.pattern.permute.xlu0 0
        %2674 = vperm.xlu0 %2673, %v2628
        %v2675 = vpop.permute.xlu0 %2674
        %2678 = vset.pattern.permute.xlu0 0
        %2679 = vperm.xlu0 %2678, %v2629
        %v2680 = vpop.permute.xlu0 %2679
        %2683 = vset.pattern.permute.xlu0 0
        %2684 = vperm.xlu0 %2683, %v2630
        %v2685 = vpop.permute.xlu0 %2684
        %2688 = vset.pattern.permute.xlu0 0
        %2689 = vperm.xlu0 %2688, %v2631
        %v2690 = vpop.permute.xlu0 %2689
        %2693 = vset.pattern.permute.xlu0 0
        %2694 = vperm.xlu0 %2693, %v2632
        %v2695 = vpop.permute.xlu0 %2694
        %2698 = vset.pattern.permute.xlu0 0
        %2699 = vperm.xlu0 %2698, %v2633
        %v2700 = vpop.permute.xlu0 %2699
        %2703 = vset.pattern.permute.xlu0 0
        %2704 = vperm.xlu0 %2703, %v2634
        %v2705 = vpop.permute.xlu0 %2704
        %2708 = vset.pattern.permute.xlu0 0
        %2709 = vperm.xlu0 %2708, %v2635
        %v2710 = vpop.permute.xlu0 %2709
        %2713 = vset.pattern.permute.xlu0 0
        %2714 = vperm.xlu0 %2713, %v2636
        %v2715 = vpop.permute.xlu0 %2714
        %2718 = vset.pattern.permute.xlu0 0
        %2719 = vperm.xlu0 %2718, %v2637
        %v2720 = vpop.permute.xlu0 %2719
        %2723 = vset.pattern.permute.xlu0 0
        %2724 = vperm.xlu0 %2723, %v2638
        %v2725 = vpop.permute.xlu0 %2724
        %2728 = vset.pattern.permute.xlu0 0
        %2729 = vperm.xlu0 %2728, %v2639
        %v2730 = vpop.permute.xlu0 %2729
        %2733 = vset.pattern.permute.xlu0 0
        %2734 = vperm.xlu0 %2733, %v2640
        %v2735 = vpop.permute.xlu0 %2734
        %2738 = vset.pattern.permute.xlu0 0
        %2739 = vperm.xlu0 %2738, %v2641
        %v2740 = vpop.permute.xlu0 %2739
        %v2822 = vunpack.c.l.b16 %v2542
        %v2823 = vunpack.c.h.b16 %v2542
        %v2824 = vunpack.c.l.b16 %v2543
        %v2825 = vunpack.c.h.b16 %v2543
        %v2826 = vunpack.c.l.b16 %v2544
        %v2827 = vunpack.c.h.b16 %v2544
        %v2828 = vunpack.c.l.b16 %v2545
        %v2829 = vunpack.c.h.b16 %v2545
        %v2830 = vunpack.c.l.b16 %v2546
        %v2831 = vunpack.c.h.b16 %v2546
        %v2832 = vunpack.c.l.b16 %v2547
        %v2833 = vunpack.c.h.b16 %v2547
        %v2834 = vunpack.c.l.b16 %v2548
        %v2835 = vunpack.c.h.b16 %v2548
        %v2836 = vunpack.c.l.b16 %v2549
        %v2837 = vunpack.c.h.b16 %v2549
        %v2838 = vunpack.c.l.b16 %v2550
        %v2839 = vunpack.c.h.b16 %v2550
        %v2840 = vunpack.c.l.b16 %v2551
        %v2841 = vunpack.c.h.b16 %v2551
        %v2842 = vunpack.c.l.b16 %v2552
        %v2843 = vunpack.c.h.b16 %v2552
        %v2844 = vunpack.c.l.b16 %v2553
        %v2845 = vunpack.c.h.b16 %v2553
        %v2846 = vunpack.c.l.b16 %v2554
        %v2847 = vunpack.c.h.b16 %v2554
        %v2848 = vunpack.c.l.b16 %v2555
        %v2849 = vunpack.c.h.b16 %v2555
        %v2850 = vunpack.c.l.b16 %v2556
        %v2851 = vunpack.c.h.b16 %v2556
        %v2852 = vunpack.c.l.b16 %v2557
        %v2853 = vunpack.c.h.b16 %v2557
        %v2854 = vunpack.c.l.b16 %v2558
        %v2855 = vunpack.c.h.b16 %v2558
        %v2856 = vunpack.c.l.b16 %v2559
        %v2857 = vunpack.c.h.b16 %v2559
        %v2858 = vunpack.c.l.b16 %v2560
        %v2859 = vunpack.c.h.b16 %v2560
        %v2860 = vunpack.c.l.b16 %v2561
        %v2861 = vunpack.c.h.b16 %v2561
        %v2862 = vunpack.c.l.b16 %v2562
        %v2863 = vunpack.c.h.b16 %v2562
        %v2864 = vunpack.c.l.b16 %v2563
        %v2865 = vunpack.c.h.b16 %v2563
        %v2866 = vunpack.c.l.b16 %v2564
        %v2867 = vunpack.c.h.b16 %v2564
        %v2868 = vunpack.c.l.b16 %v2565
        %v2869 = vunpack.c.h.b16 %v2565
        %v2870 = vunpack.c.l.b16 %v2566
        %v2871 = vunpack.c.h.b16 %v2566
        %v2872 = vunpack.c.l.b16 %v2567
        %v2873 = vunpack.c.h.b16 %v2567
        %v2874 = vunpack.c.l.b16 %v2568
        %v2875 = vunpack.c.h.b16 %v2568
        %v2876 = vunpack.c.l.b16 %v2569
        %v2877 = vunpack.c.h.b16 %v2569
        %v2878 = vunpack.c.l.b16 %v2570
        %v2879 = vunpack.c.h.b16 %v2570
        %v2880 = vunpack.c.l.b16 %v2571
        %v2881 = vunpack.c.h.b16 %v2571
        %v2882 = vunpack.c.l.b16 %v2572
        %v2883 = vunpack.c.h.b16 %v2572
        %v2884 = vunpack.c.l.b16 %v2573
        %v2885 = vunpack.c.h.b16 %v2573
        %v2886 = vunpack.c.l.b16 %v2574
        %v2887 = vunpack.c.h.b16 %v2574
        %v2888 = vunpack.c.l.b16 %v2575
        %v2889 = vunpack.c.h.b16 %v2575
        %v2890 = vunpack.c.l.b16 %v2576
        %v2891 = vunpack.c.h.b16 %v2576
        %v2892 = vunpack.c.l.b16 %v2577
        %v2893 = vunpack.c.h.b16 %v2577
        %v2894 = vunpack.c.l.b16 %v2578
        %v2895 = vunpack.c.h.b16 %v2578
        %v2896 = vunpack.c.l.b16 %v2579
        %v2897 = vunpack.c.h.b16 %v2579
        %v2898 = vunpack.c.l.b16 %v2580
        %v2899 = vunpack.c.h.b16 %v2580
        %v2900 = vunpack.c.l.b16 %v2581
        %v2901 = vunpack.c.h.b16 %v2581
        %v2902 = vunpack.c.l.b16 %v2582
        %v2903 = vunpack.c.h.b16 %v2582
        %v2904 = vunpack.c.l.b16 %v2583
        %v2905 = vunpack.c.h.b16 %v2583
        %v2906 = vunpack.c.l.b16 %v2584
        %v2907 = vunpack.c.h.b16 %v2584
        %v2908 = vunpack.c.l.b16 %v2585
        %v2909 = vunpack.c.h.b16 %v2585
        %v2910 = vunpack.c.l.b16 %v2586
        %v2911 = vunpack.c.h.b16 %v2586
        %v2912 = vunpack.c.l.b16 %v2587
        %v2913 = vunpack.c.h.b16 %v2587
        %v2914 = vunpack.c.l.b16 %v2588
        %v2915 = vunpack.c.h.b16 %v2588
        %v2916 = vunpack.c.l.b16 %v2589
        %v2917 = vunpack.c.h.b16 %v2589
        %v2918 = vunpack.c.l.b16 %v2590
        %v2919 = vunpack.c.h.b16 %v2590
        %v2920 = vunpack.c.l.b16 %v2591
        %v2921 = vunpack.c.h.b16 %v2591
        %v2922 = vunpack.c.l.b16 %v2592
        %v2923 = vunpack.c.h.b16 %v2592
        %v2924 = vunpack.c.l.b16 %v2593
        %v2925 = vunpack.c.h.b16 %v2593
        %v2926 = vunpack.c.l.b16 %v2594
        %v2927 = vunpack.c.h.b16 %v2594
        %v2928 = vunpack.c.l.b16 %v2595
        %v2929 = vunpack.c.h.b16 %v2595
        %v2930 = vunpack.c.l.b16 %v2596
        %v2931 = vunpack.c.h.b16 %v2596
        %v2932 = vunpack.c.l.b16 %v2597
        %v2933 = vunpack.c.h.b16 %v2597
        %v2934 = vunpack.c.l.b16 %v2598
        %v2935 = vunpack.c.h.b16 %v2598
        %v2936 = vunpack.c.l.b16 %v2599
        %v2937 = vunpack.c.h.b16 %v2599
        %v2938 = vunpack.c.l.b16 %v2600
        %v2939 = vunpack.c.h.b16 %v2600
        %v2940 = vunpack.c.l.b16 %v2601
        %v2941 = vunpack.c.h.b16 %v2601
        %v2942 = vunpack.c.l.b16 %v2602
        %v2943 = vunpack.c.h.b16 %v2602
        %v2944 = vunpack.c.l.b16 %v2603
        %v2945 = vunpack.c.h.b16 %v2603
        %v2946 = vunpack.c.l.b16 %v2604
        %v2947 = vunpack.c.h.b16 %v2604
        %v2948 = vunpack.c.l.b16 %v2605
        %v2949 = vunpack.c.h.b16 %v2605
        %v2950 = vunpack.c.l.b16 %v2606
        %v2951 = vunpack.c.h.b16 %v2606
        %v2952 = vunpack.c.l.b16 %v2607
        %v2953 = vunpack.c.h.b16 %v2607
        %v2954 = vunpack.c.l.b16 %v2608
        %v2955 = vunpack.c.h.b16 %v2608
        %v2956 = vunpack.c.l.b16 %v2609
        %v2957 = vunpack.c.h.b16 %v2609
        %v2958 = vunpack.c.l.b16 %v2610
        %v2959 = vunpack.c.h.b16 %v2610
        %v2960 = vunpack.c.l.b16 %v2611
        %v2961 = vunpack.c.h.b16 %v2611
        %v2962 = vunpack.c.l.b16 %v2612
        %v2963 = vunpack.c.h.b16 %v2612
        %v2964 = vunpack.c.l.b16 %v2613
        %v2965 = vunpack.c.h.b16 %v2613
        %v2966 = vunpack.c.l.b16 %v2614
        %v2967 = vunpack.c.h.b16 %v2614
        %v2968 = vunpack.c.l.b16 %v2615
        %v2969 = vunpack.c.h.b16 %v2615
        %v2970 = vunpack.c.l.b16 %v2616
        %v2971 = vunpack.c.h.b16 %v2616
        %v2972 = vunpack.c.l.b16 %v2617
        %v2973 = vunpack.c.h.b16 %v2617
        %v2974 = vunpack.c.l.b16 %v2618
        %v2975 = vunpack.c.h.b16 %v2618
        %v2976 = vunpack.c.l.b16 %v2619
        %v2977 = vunpack.c.h.b16 %v2619
        %v2978 = vunpack.c.l.b16 %v2620
        %v2979 = vunpack.c.h.b16 %v2620
        %v2980 = vunpack.c.l.b16 %v2621
        %v2981 = vunpack.c.h.b16 %v2621
        %v2982 = vpack.c.b16 %v2830, %v2822
        %v2983 = vpack.c.b16 %v2831, %v2823
        %v2984 = vpack.c.b16 %v2832, %v2824
        %v2985 = vpack.c.b16 %v2833, %v2825
        %v2986 = vpack.c.b16 %v2834, %v2826
        %v2987 = vpack.c.b16 %v2835, %v2827
        %v2988 = vpack.c.b16 %v2836, %v2828
        %v2989 = vpack.c.b16 %v2837, %v2829
        %v2990 = vpack.c.b16 %v2846, %v2838
        %v2991 = vpack.c.b16 %v2847, %v2839
        %v2992 = vpack.c.b16 %v2848, %v2840
        %v2993 = vpack.c.b16 %v2849, %v2841
        %v2994 = vpack.c.b16 %v2850, %v2842
        %v2995 = vpack.c.b16 %v2851, %v2843
        %v2996 = vpack.c.b16 %v2852, %v2844
        %v2997 = vpack.c.b16 %v2853, %v2845
        %v2998 = vpack.c.b16 %v2862, %v2854
        %v2999 = vpack.c.b16 %v2863, %v2855
        %v3000 = vpack.c.b16 %v2864, %v2856
        %v3001 = vpack.c.b16 %v2865, %v2857
        %v3002 = vpack.c.b16 %v2866, %v2858
        %v3003 = vpack.c.b16 %v2867, %v2859
        %v3004 = vpack.c.b16 %v2868, %v2860
        %v3005 = vpack.c.b16 %v2869, %v2861
        %v3006 = vpack.c.b16 %v2878, %v2870
        %v3007 = vpack.c.b16 %v2879, %v2871
        %v3008 = vpack.c.b16 %v2880, %v2872
        %v3009 = vpack.c.b16 %v2881, %v2873
        %v3010 = vpack.c.b16 %v2882, %v2874
        %v3011 = vpack.c.b16 %v2883, %v2875
        %v3012 = vpack.c.b16 %v2884, %v2876
        %v3013 = vpack.c.b16 %v2885, %v2877
        %v3014 = vpack.c.b16 %v2894, %v2886
        %v3015 = vpack.c.b16 %v2895, %v2887
        %v3016 = vpack.c.b16 %v2896, %v2888
        %v3017 = vpack.c.b16 %v2897, %v2889
        %v3018 = vpack.c.b16 %v2898, %v2890
        %v3019 = vpack.c.b16 %v2899, %v2891
        %v3020 = vpack.c.b16 %v2900, %v2892
        %v3021 = vpack.c.b16 %v2901, %v2893
        %v3022 = vpack.c.b16 %v2910, %v2902
        %v3023 = vpack.c.b16 %v2911, %v2903
        %v3024 = vpack.c.b16 %v2912, %v2904
        %v3025 = vpack.c.b16 %v2913, %v2905
        %v3026 = vpack.c.b16 %v2914, %v2906
        %v3027 = vpack.c.b16 %v2915, %v2907
        %v3028 = vpack.c.b16 %v2916, %v2908
        %v3029 = vpack.c.b16 %v2917, %v2909
        %v3030 = vpack.c.b16 %v2926, %v2918
        %v3031 = vpack.c.b16 %v2927, %v2919
        %v3032 = vpack.c.b16 %v2928, %v2920
        %v3033 = vpack.c.b16 %v2929, %v2921
        %v3034 = vpack.c.b16 %v2930, %v2922
        %v3035 = vpack.c.b16 %v2931, %v2923
        %v3036 = vpack.c.b16 %v2932, %v2924
        %v3037 = vpack.c.b16 %v2933, %v2925
        %v3038 = vpack.c.b16 %v2942, %v2934
        %v3039 = vpack.c.b16 %v2943, %v2935
        %v3040 = vpack.c.b16 %v2944, %v2936
        %v3041 = vpack.c.b16 %v2945, %v2937
        %v3042 = vpack.c.b16 %v2946, %v2938
        %v3043 = vpack.c.b16 %v2947, %v2939
        %v3044 = vpack.c.b16 %v2948, %v2940
        %v3045 = vpack.c.b16 %v2949, %v2941
        %v3046 = vpack.c.b16 %v2958, %v2950
        %v3047 = vpack.c.b16 %v2959, %v2951
        %v3048 = vpack.c.b16 %v2960, %v2952
        %v3049 = vpack.c.b16 %v2961, %v2953
        %v3050 = vpack.c.b16 %v2962, %v2954
        %v3051 = vpack.c.b16 %v2963, %v2955
        %v3052 = vpack.c.b16 %v2964, %v2956
        %v3053 = vpack.c.b16 %v2965, %v2957
        %v3054 = vpack.c.b16 %v2974, %v2966
        %v3055 = vpack.c.b16 %v2975, %v2967
        %v3056 = vpack.c.b16 %v2976, %v2968
        %v3057 = vpack.c.b16 %v2977, %v2969
        %v3058 = vpack.c.b16 %v2978, %v2970
        %v3059 = vpack.c.b16 %v2979, %v2971
        %v3060 = vpack.c.b16 %v2980, %v2972
        %v3061 = vpack.c.b16 %v2981, %v2973
        %vm3132 = vcmask 523264
        %v3134 = vsel %vm3132, %v2989, 0
        %v3137 = vsel %vm3132, %v2997, 0
        %v3140 = vsel %vm3132, %v3005, 0
        %v3143 = vsel %vm3132, %v3013, 0
        %v3146 = vsel %vm3132, %v3021, 0
        %v3149 = vsel %vm3132, %v3029, 0
        %v3152 = vsel %vm3132, %v3037, 0
        %v3155 = vsel %vm3132, %v3045, 0
        %v3158 = vsel %vm3132, %v3053, 0
        %v3161 = vsel %vm3132, %v3061, 0
        %3163 = vmatprep.subr.bf16.mxu0 %v2011
        %3164 = vmatpush1.bf16.msra.mxu0 %v2010
        %3165 = vmatprep.subr.bf16.mxu0 %v2013
        %3166 = vmatpush1.bf16.msra.mxu0 %v2012
        %3167 = vmatprep.subr.bf16.mxu0 %v2015
        %3168 = vmatpush1.bf16.msra.mxu0 %v2014
        %3169 = vmatprep.subr.bf16.mxu0 %v2017
        %3170 = vmatpush1.bf16.msra.mxu0 %v2016
        %3171 = vmatprep.subr.bf16.mxu0 %v2019
        %3172 = vmatpush1.bf16.msra.mxu0 %v2018
        %3173 = vmatprep.subr.bf16.mxu0 %v2021
        %3174 = vmatpush1.bf16.msra.mxu0 %v2020
        %3175 = vmatprep.subr.bf16.mxu0 %v2023
        %3176 = vmatpush1.bf16.msra.mxu0 %v2022
        %3177 = vmatprep.subr.bf16.mxu0 %v2025
        %3178 = vmatpush1.bf16.msra.mxu0 %v2024
        %3179 = vmatprep.subr.bf16.mxu0 %v2027
        %3180 = vmatpush1.bf16.msra.mxu0 %v2026
        %3181 = vmatprep.subr.bf16.mxu0 %v2029
        %3182 = vmatpush1.bf16.msra.mxu0 %v2028
        %3183 = vmatprep.subr.bf16.mxu0 %v2031
        %3184 = vmatpush1.bf16.msra.mxu0 %v2030
        %3185 = vmatprep.subr.bf16.mxu0 %v2033
        %3186 = vmatpush1.bf16.msra.mxu0 %v2032
        %3187 = vmatprep.subr.bf16.mxu0 %v2132
        %3188 = vmatpush1.bf16.msra.mxu0 %v2106
        %3189 = vmatprep.subr.bf16.mxu0 %v2136
        %3190 = vmatpush1.bf16.msra.mxu0 %v2107
        %3191 = vmatprep.subr.bf16.mxu0 %v2140
        %3192 = vmatpush1.bf16.msra.mxu0 %v2108
        %3193 = vmatprep.subr.bf16.mxu0 %v2144
        %3194 = vmatpush1.bf16.msra.mxu0 %v2109
        %3195 = vmatprep.mubr.bf16.mxu0 %v2983
        %3196 = vmatmul.mubr.bf16.gmra.mrb[0].mxu0 %v2982
        %v3197 = vpop.f32.mrb[0].mxu0
        %v3198 = vadd.f32 %v2645, %v3197
        %v3199 = vpop.f32.mrb[0].mxu0
        %v3200 = vadd.f32 %v2645, %v3199
        %v3201 = vpop.f32.mrb[0].mxu0
        %v3202 = vadd.f32 %v2650, %v3201
        %v3203 = vpop.f32.mrb[0].mxu0
        %v3204 = vadd.f32 %v2650, %v3203
        %3205 = vmatprep.mubr.bf16.mxu0 %v2991
        %3206 = vmatmul.mubr.bf16.gmra.mrb[0].mxu0 %v2990
        %v3207 = vpop.f32.mrb[0].mxu0
        %v3208 = vadd.f32 %v2655, %v3207
        %v3209 = vpop.f32.mrb[0].mxu0
        %v3210 = vadd.f32 %v2655, %v3209
        %v3211 = vpop.f32.mrb[0].mxu0
        %v3212 = vadd.f32 %v2660, %v3211
        %v3213 = vpop.f32.mrb[0].mxu0
        %v3214 = vadd.f32 %v2660, %v3213
        %3215 = vmatprep.mubr.bf16.mxu0 %v2999
        %3216 = vmatmul.mubr.bf16.gmra.mrb[0].mxu0 %v2998
        %v3217 = vpop.f32.mrb[0].mxu0
        %v3218 = vadd.f32 %v2665, %v3217
        %v3219 = vpop.f32.mrb[0].mxu0
        %v3220 = vadd.f32 %v2665, %v3219
        %v3221 = vpop.f32.mrb[0].mxu0
        %v3222 = vadd.f32 %v2670, %v3221
        %v3223 = vpop.f32.mrb[0].mxu0
        %v3224 = vadd.f32 %v2670, %v3223
        %3225 = vmatprep.mubr.bf16.mxu0 %v3007
        %3226 = vmatmul.mubr.bf16.gmra.mrb[0].mxu0 %v3006
        %v3227 = vpop.f32.mrb[0].mxu0
        %v3228 = vadd.f32 %v2675, %v3227
        %v3229 = vpop.f32.mrb[0].mxu0
        %v3230 = vadd.f32 %v2675, %v3229
        %v3231 = vpop.f32.mrb[0].mxu0
        %v3232 = vadd.f32 %v2680, %v3231
        %v3233 = vpop.f32.mrb[0].mxu0
        %v3234 = vadd.f32 %v2680, %v3233
        %3235 = vmatprep.mubr.bf16.mxu0 %v3015
        %3236 = vmatmul.mubr.bf16.gmra.mrb[0].mxu0 %v3014
        %v3237 = vpop.f32.mrb[0].mxu0
        %v3238 = vadd.f32 %v2685, %v3237
        %v3239 = vpop.f32.mrb[0].mxu0
        %v3240 = vadd.f32 %v2685, %v3239
        %v3241 = vpop.f32.mrb[0].mxu0
        %v3242 = vadd.f32 %v2690, %v3241
        %v3243 = vpop.f32.mrb[0].mxu0
        %v3244 = vadd.f32 %v2690, %v3243
        %3245 = vmatprep.mubr.bf16.mxu0 %v3023
        %3246 = vmatmul.mubr.bf16.gmra.mrb[0].mxu0 %v3022
        %v3247 = vpop.f32.mrb[0].mxu0
        %v3248 = vadd.f32 %v2695, %v3247
        %v3249 = vpop.f32.mrb[0].mxu0
        %v3250 = vadd.f32 %v2695, %v3249
        %v3251 = vpop.f32.mrb[0].mxu0
        %v3252 = vadd.f32 %v2700, %v3251
        %v3253 = vpop.f32.mrb[0].mxu0
        %v3254 = vadd.f32 %v2700, %v3253
        %3255 = vmatprep.mubr.bf16.mxu0 %v3031
        %3256 = vmatmul.mubr.bf16.gmra.mrb[0].mxu0 %v3030
        %v3257 = vpop.f32.mrb[0].mxu0
        %v3258 = vadd.f32 %v2705, %v3257
        %v3259 = vpop.f32.mrb[0].mxu0
        %v3260 = vadd.f32 %v2705, %v3259
        %v3261 = vpop.f32.mrb[0].mxu0
        %v3262 = vadd.f32 %v2710, %v3261
        %v3263 = vpop.f32.mrb[0].mxu0
        %v3264 = vadd.f32 %v2710, %v3263
        %3265 = vmatprep.mubr.bf16.mxu0 %v3039
        %3266 = vmatmul.mubr.bf16.gmra.mrb[0].mxu0 %v3038
        %v3267 = vpop.f32.mrb[0].mxu0
        %v3268 = vadd.f32 %v2715, %v3267
        %v3269 = vpop.f32.mrb[0].mxu0
        %v3270 = vadd.f32 %v2715, %v3269
        %v3271 = vpop.f32.mrb[0].mxu0
        %v3272 = vadd.f32 %v2720, %v3271
        %v3273 = vpop.f32.mrb[0].mxu0
        %v3274 = vadd.f32 %v2720, %v3273
        %3275 = vmatprep.mubr.bf16.mxu0 %v3047
        %3276 = vmatmul.mubr.bf16.gmra.mrb[0].mxu0 %v3046
        %v3277 = vpop.f32.mrb[0].mxu0
        %v3278 = vadd.f32 %v2725, %v3277
        %v3279 = vpop.f32.mrb[0].mxu0
        %v3280 = vadd.f32 %v2725, %v3279
        %v3281 = vpop.f32.mrb[0].mxu0
        %v3282 = vadd.f32 %v2730, %v3281
        %v3283 = vpop.f32.mrb[0].mxu0
        %v3284 = vadd.f32 %v2730, %v3283
        %3285 = vmatprep.mubr.bf16.mxu0 %v3055
        %3286 = vmatmul.mubr.bf16.gmra.mrb[0].mxu0 %v3054
        %v3287 = vpop.f32.mrb[0].mxu0
        %v3288 = vadd.f32 %v2735, %v3287
        %v3289 = vpop.f32.mrb[0].mxu0
        %v3290 = vadd.f32 %v2735, %v3289
        %v3291 = vpop.f32.mrb[0].mxu0
        %v3292 = vadd.f32 %v2740, %v3291
        %v3293 = vpop.f32.mrb[0].mxu0
        %v3294 = vadd.f32 %v2740, %v3293
        %3295 = vdwg.mxu0
        %3296 = vmatprep.subr.bf16.mxu0 %v2148
        %3297 = vmatpush1.bf16.msra.mxu0 %v2110
        %3298 = vmatprep.subr.bf16.mxu0 %v2152
        %3299 = vmatpush1.bf16.msra.mxu0 %v2111
        %3300 = vmatprep.subr.bf16.mxu0 %v2156
        %3301 = vmatpush1.bf16.msra.mxu0 %v2112
        %3302 = vmatprep.subr.bf16.mxu0 %v2160
        %3303 = vmatpush1.bf16.msra.mxu0 %v2113
        %3304 = vmatprep.subr.bf16.mxu0 %v2164
        %3305 = vmatpush1.bf16.msra.mxu0 %v2114
        %3306 = vmatprep.subr.bf16.mxu0 %v2168
        %3307 = vmatpush1.bf16.msra.mxu0 %v2115
        %3308 = vmatprep.subr.bf16.mxu0 %v2172
        %3309 = vmatpush1.bf16.msra.mxu0 %v2116
        %3310 = vmatprep.subr.bf16.mxu0 %v2176
        %3311 = vmatpush1.bf16.msra.mxu0 %v2117
        %3312 = vmatprep.subr.bf16.mxu0 %v2252
        %3313 = vmatpush1.bf16.msra.mxu0 %v2226
        %3314 = vmatprep.subr.bf16.mxu0 %v2256
        %3315 = vmatpush1.bf16.msra.mxu0 %v2227
        %3316 = vmatprep.subr.bf16.mxu0 %v2260
        %3317 = vmatpush1.bf16.msra.mxu0 %v2228
        %3318 = vmatprep.subr.bf16.mxu0 %v2264
        %3319 = vmatpush1.bf16.msra.mxu0 %v2229
        %3320 = vmatprep.subr.bf16.mxu0 %v2268
        %3321 = vmatpush1.bf16.msra.mxu0 %v2230
        %3322 = vmatprep.subr.bf16.mxu0 %v2272
        %3323 = vmatpush1.bf16.msra.mxu0 %v2231
        %3324 = vmatprep.subr.bf16.mxu0 %v2276
        %3325 = vmatpush1.bf16.msra.mxu0 %v2232
        %3326 = vmatprep.subr.bf16.mxu0 %v2280
        %3327 = vmatpush1.bf16.msra.mxu0 %v2233
        %3328 = vmatprep.mubr.bf16.mxu0 %v2985
        %3329 = vmatmul.mubr.bf16.gmra.mrb[0].mxu0 %v2984
        %v3330 = vpop.f32.mrb[0].mxu0
        %v3331 = vadd.f32 %v3198, %v3330
        %v3332 = vpop.f32.mrb[0].mxu0
        %v3333 = vadd.f32 %v3200, %v3332
        %v3334 = vpop.f32.mrb[0].mxu0
        %v3335 = vadd.f32 %v3202, %v3334
        %v3336 = vpop.f32.mrb[0].mxu0
        %v3337 = vadd.f32 %v3204, %v3336
        %3338 = vmatprep.mubr.bf16.mxu0 %v2993
        %3339 = vmatmul.mubr.bf16.gmra.mrb[0].mxu0 %v2992
        %v3340 = vpop.f32.mrb[0].mxu0
        %v3341 = vadd.f32 %v3208, %v3340
        %v3342 = vpop.f32.mrb[0].mxu0
        %v3343 = vadd.f32 %v3210, %v3342
        %v3344 = vpop.f32.mrb[0].mxu0
        %v3345 = vadd.f32 %v3212, %v3344
        %v3346 = vpop.f32.mrb[0].mxu0
        %v3347 = vadd.f32 %v3214, %v3346
        %3348 = vmatprep.mubr.bf16.mxu0 %v3001
        %3349 = vmatmul.mubr.bf16.gmra.mrb[0].mxu0 %v3000
        %v3350 = vpop.f32.mrb[0].mxu0
        %v3351 = vadd.f32 %v3218, %v3350
        %v3352 = vpop.f32.mrb[0].mxu0
        %v3353 = vadd.f32 %v3220, %v3352
        %v3354 = vpop.f32.mrb[0].mxu0
        %v3355 = vadd.f32 %v3222, %v3354
        %v3356 = vpop.f32.mrb[0].mxu0
        %v3357 = vadd.f32 %v3224, %v3356
        %3358 = vmatprep.mubr.bf16.mxu0 %v3009
        %3359 = vmatmul.mubr.bf16.gmra.mrb[0].mxu0 %v3008
        %v3360 = vpop.f32.mrb[0].mxu0
        %v3361 = vadd.f32 %v3228, %v3360
        %v3362 = vpop.f32.mrb[0].mxu0
        %v3363 = vadd.f32 %v3230, %v3362
        %v3364 = vpop.f32.mrb[0].mxu0
        %v3365 = vadd.f32 %v3232, %v3364
        %v3366 = vpop.f32.mrb[0].mxu0
        %v3367 = vadd.f32 %v3234, %v3366
        %3368 = vmatprep.mubr.bf16.mxu0 %v3017
        %3369 = vmatmul.mubr.bf16.gmra.mrb[0].mxu0 %v3016
        %v3370 = vpop.f32.mrb[0].mxu0
        %v3371 = vadd.f32 %v3238, %v3370
        %v3372 = vpop.f32.mrb[0].mxu0
        %v3373 = vadd.f32 %v3240, %v3372
        %v3374 = vpop.f32.mrb[0].mxu0
        %v3375 = vadd.f32 %v3242, %v3374
        %v3376 = vpop.f32.mrb[0].mxu0
        %v3377 = vadd.f32 %v3244, %v3376
        %3378 = vmatprep.mubr.bf16.mxu0 %v3025
        %3379 = vmatmul.mubr.bf16.gmra.mrb[0].mxu0 %v3024
        %v3380 = vpop.f32.mrb[0].mxu0
        %v3381 = vadd.f32 %v3248, %v3380
        %v3382 = vpop.f32.mrb[0].mxu0
        %v3383 = vadd.f32 %v3250, %v3382
        %v3384 = vpop.f32.mrb[0].mxu0
        %v3385 = vadd.f32 %v3252, %v3384
        %v3386 = vpop.f32.mrb[0].mxu0
        %v3387 = vadd.f32 %v3254, %v3386
        %3388 = vmatprep.mubr.bf16.mxu0 %v3033
        %3389 = vmatmul.mubr.bf16.gmra.mrb[0].mxu0 %v3032
        %v3390 = vpop.f32.mrb[0].mxu0
        %v3391 = vadd.f32 %v3258, %v3390
        %v3392 = vpop.f32.mrb[0].mxu0
        %v3393 = vadd.f32 %v3260, %v3392
        %v3394 = vpop.f32.mrb[0].mxu0
        %v3395 = vadd.f32 %v3262, %v3394
        %v3396 = vpop.f32.mrb[0].mxu0
        %v3397 = vadd.f32 %v3264, %v3396
        %3398 = vmatprep.mubr.bf16.mxu0 %v3041
        %3399 = vmatmul.mubr.bf16.gmra.mrb[0].mxu0 %v3040
        %v3400 = vpop.f32.mrb[0].mxu0
        %v3401 = vadd.f32 %v3268, %v3400
        %v3402 = vpop.f32.mrb[0].mxu0
        %v3403 = vadd.f32 %v3270, %v3402
        %v3404 = vpop.f32.mrb[0].mxu0
        %v3405 = vadd.f32 %v3272, %v3404
        %v3406 = vpop.f32.mrb[0].mxu0
        %v3407 = vadd.f32 %v3274, %v3406
        %3408 = vmatprep.mubr.bf16.mxu0 %v3049
        %3409 = vmatmul.mubr.bf16.gmra.mrb[0].mxu0 %v3048
        %v3410 = vpop.f32.mrb[0].mxu0
        %v3411 = vadd.f32 %v3278, %v3410
        %v3412 = vpop.f32.mrb[0].mxu0
        %v3413 = vadd.f32 %v3280, %v3412
        %v3414 = vpop.f32.mrb[0].mxu0
        %v3415 = vadd.f32 %v3282, %v3414
        %v3416 = vpop.f32.mrb[0].mxu0
        %v3417 = vadd.f32 %v3284, %v3416
        %3418 = vmatprep.mubr.bf16.mxu0 %v3057
        %3419 = vmatmul.mubr.bf16.gmra.mrb[0].mxu0 %v3056
        %v3420 = vpop.f32.mrb[0].mxu0
        %v3421 = vadd.f32 %v3288, %v3420
        %v3422 = vpop.f32.mrb[0].mxu0
        %v3423 = vadd.f32 %v3290, %v3422
        %v3424 = vpop.f32.mrb[0].mxu0
        %v3425 = vadd.f32 %v3292, %v3424
        %v3426 = vpop.f32.mrb[0].mxu0
        %v3427 = vadd.f32 %v3294, %v3426
        %3428 = vdwg.mxu0
        %3429 = vmatprep.subr.bf16.mxu0 %v2284
        %3430 = vmatpush1.bf16.msra.mxu0 %v2234
        %3431 = vmatprep.subr.bf16.mxu0 %v2288
        %3432 = vmatpush1.bf16.msra.mxu0 %v2235
        %3433 = vmatprep.subr.bf16.mxu0 %v2292
        %3434 = vmatpush1.bf16.msra.mxu0 %v2236
        %3435 = vmatprep.subr.bf16.mxu0 %v2296
        %3436 = vmatpush1.bf16.msra.mxu0 %v2237
        %3437 = vmatprep.subr.bf16.mxu0 %v2374
        %3438 = vmatpush1.bf16.msra.mxu0 %v2347
        %3439 = vmatprep.subr.bf16.mxu0 %v2378
        %3440 = vmatpush1.bf16.msra.mxu0 %v2348
        %3441 = vmatprep.subr.bf16.mxu0 %v2382
        %3442 = vmatpush1.bf16.msra.mxu0 %v2349
        %3443 = vmatprep.subr.bf16.mxu0 %v2386
        %3444 = vmatpush1.bf16.msra.mxu0 %v2350
        %3445 = vmatprep.subr.bf16.mxu0 %v2390
        %3446 = vmatpush1.bf16.msra.mxu0 %v2351
        %3447 = vmatprep.subr.bf16.mxu0 %v2394
        %3448 = vmatpush1.bf16.msra.mxu0 %v2352
        %3449 = vmatprep.subr.bf16.mxu0 %v2398
        %3450 = vmatpush1.bf16.msra.mxu0 %v2353
        %3451 = vmatprep.subr.bf16.mxu0 %v2402
        %3452 = vmatpush1.bf16.msra.mxu0 %v2354
        %3453 = vmatprep.subr.bf16.mxu0 %v2406
        %3454 = vmatpush1.bf16.msra.mxu0 %v2355
        %3455 = vmatprep.subr.bf16.mxu0 %v2410
        %3456 = vmatpush1.bf16.msra.mxu0 %v2356
        %3457 = vmatprep.subr.bf16.mxu0 %v2414
        %3458 = vmatpush1.bf16.msra.mxu0 %v2357
        %3459 = vmatprep.subr.bf16.mxu0 %v2418
        %3460 = vmatpush1.bf16.msra.mxu0 %v2358
        %3461 = vmatprep.mubr.bf16.mxu0 %v2987
        %3462 = vmatmul.mubr.bf16.gmra.mrb[0].mxu0 %v2986
        %v3463 = vpop.f32.mrb[0].mxu0
        %v3464 = vadd.f32 %v3331, %v3463
        %v3465 = vpop.f32.mrb[0].mxu0
        %v3466 = vadd.f32 %v3333, %v3465
        %v3467 = vpop.f32.mrb[0].mxu0
        %v3468 = vadd.f32 %v3335, %v3467
        %v3469 = vpop.f32.mrb[0].mxu0
        %v3470 = vadd.f32 %v3337, %v3469
        %3471 = vmatprep.mubr.bf16.mxu0 %v2995
        %3472 = vmatmul.mubr.bf16.gmra.mrb[0].mxu0 %v2994
        %v3473 = vpop.f32.mrb[0].mxu0
        %v3474 = vadd.f32 %v3341, %v3473
        %v3475 = vpop.f32.mrb[0].mxu0
        %v3476 = vadd.f32 %v3343, %v3475
        %v3477 = vpop.f32.mrb[0].mxu0
        %v3478 = vadd.f32 %v3345, %v3477
        %v3479 = vpop.f32.mrb[0].mxu0
        %v3480 = vadd.f32 %v3347, %v3479
        %3481 = vmatprep.mubr.bf16.mxu0 %v3003
        %3482 = vmatmul.mubr.bf16.gmra.mrb[0].mxu0 %v3002
        %v3483 = vpop.f32.mrb[0].mxu0
        %v3484 = vadd.f32 %v3351, %v3483
        %v3485 = vpop.f32.mrb[0].mxu0
        %v3486 = vadd.f32 %v3353, %v3485
        %v3487 = vpop.f32.mrb[0].mxu0
        %v3488 = vadd.f32 %v3355, %v3487
        %v3489 = vpop.f32.mrb[0].mxu0
        %v3490 = vadd.f32 %v3357, %v3489
        %3491 = vmatprep.mubr.bf16.mxu0 %v3011
        %3492 = vmatmul.mubr.bf16.gmra.mrb[0].mxu0 %v3010
        %v3493 = vpop.f32.mrb[0].mxu0
        %v3494 = vadd.f32 %v3361, %v3493
        %v3495 = vpop.f32.mrb[0].mxu0
        %v3496 = vadd.f32 %v3363, %v3495
        %v3497 = vpop.f32.mrb[0].mxu0
        %v3498 = vadd.f32 %v3365, %v3497
        %v3499 = vpop.f32.mrb[0].mxu0
        %v3500 = vadd.f32 %v3367, %v3499
        %3501 = vmatprep.mubr.bf16.mxu0 %v3019
        %3502 = vmatmul.mubr.bf16.gmra.mrb[0].mxu0 %v3018
        %v3503 = vpop.f32.mrb[0].mxu0
        %v3504 = vadd.f32 %v3371, %v3503
        %v3505 = vpop.f32.mrb[0].mxu0
        %v3506 = vadd.f32 %v3373, %v3505
        %v3507 = vpop.f32.mrb[0].mxu0
        %v3508 = vadd.f32 %v3375, %v3507
        %v3509 = vpop.f32.mrb[0].mxu0
        %v3510 = vadd.f32 %v3377, %v3509
        %3511 = vmatprep.mubr.bf16.mxu0 %v3027
        %3512 = vmatmul.mubr.bf16.gmra.mrb[0].mxu0 %v3026
        %v3513 = vpop.f32.mrb[0].mxu0
        %v3514 = vadd.f32 %v3381, %v3513
        %v3515 = vpop.f32.mrb[0].mxu0
        %v3516 = vadd.f32 %v3383, %v3515
        %v3517 = vpop.f32.mrb[0].mxu0
        %v3518 = vadd.f32 %v3385, %v3517
        %v3519 = vpop.f32.mrb[0].mxu0
        %v3520 = vadd.f32 %v3387, %v3519
        %3521 = vmatprep.mubr.bf16.mxu0 %v3035
        %3522 = vmatmul.mubr.bf16.gmra.mrb[0].mxu0 %v3034
        %v3523 = vpop.f32.mrb[0].mxu0
        %v3524 = vadd.f32 %v3391, %v3523
        %v3525 = vpop.f32.mrb[0].mxu0
        %v3526 = vadd.f32 %v3393, %v3525
        %v3527 = vpop.f32.mrb[0].mxu0
        %v3528 = vadd.f32 %v3395, %v3527
        %v3529 = vpop.f32.mrb[0].mxu0
        %v3530 = vadd.f32 %v3397, %v3529
        %3531 = vmatprep.mubr.bf16.mxu0 %v3043
        %3532 = vmatmul.mubr.bf16.gmra.mrb[0].mxu0 %v3042
        %v3533 = vpop.f32.mrb[0].mxu0
        %v3534 = vadd.f32 %v3401, %v3533
        %v3535 = vpop.f32.mrb[0].mxu0
        %v3536 = vadd.f32 %v3403, %v3535
        %v3537 = vpop.f32.mrb[0].mxu0
        %v3538 = vadd.f32 %v3405, %v3537
        %v3539 = vpop.f32.mrb[0].mxu0
        %v3540 = vadd.f32 %v3407, %v3539
        %3541 = vmatprep.mubr.bf16.mxu0 %v3051
        %3542 = vmatmul.mubr.bf16.gmra.mrb[0].mxu0 %v3050
        %v3543 = vpop.f32.mrb[0].mxu0
        %v3544 = vadd.f32 %v3411, %v3543
        %v3545 = vpop.f32.mrb[0].mxu0
        %v3546 = vadd.f32 %v3413, %v3545
        %v3547 = vpop.f32.mrb[0].mxu0
        %v3548 = vadd.f32 %v3415, %v3547
        %v3549 = vpop.f32.mrb[0].mxu0
        %v3550 = vadd.f32 %v3417, %v3549
        %3551 = vmatprep.mubr.bf16.mxu0 %v3059
        %3552 = vmatmul.mubr.bf16.gmra.mrb[0].mxu0 %v3058
        %v3553 = vpop.f32.mrb[0].mxu0
        %v3554 = vadd.f32 %v3421, %v3553
        %v3555 = vpop.f32.mrb[0].mxu0
        %v3556 = vadd.f32 %v3423, %v3555
        %v3557 = vpop.f32.mrb[0].mxu0
        %v3558 = vadd.f32 %v3425, %v3557
        %v3559 = vpop.f32.mrb[0].mxu0
        %v3560 = vadd.f32 %v3427, %v3559
        %3561 = vdwg.mxu0
        %3562 = vmatprep.subr.bf16.mxu0 %v2496
        %3563 = vmatpush1.bf16.msra.mxu0 %v2469
        %3564 = vmatprep.subr.bf16.mxu0 %v2500
        %3565 = vmatpush1.bf16.msra.mxu0 %v2470
        %3566 = vmatprep.subr.bf16.mxu0 %v2504
        %3567 = vmatpush1.bf16.msra.mxu0 %v2471
        %3568 = vmatprep.subr.bf16.mxu0 %v2508
        %3569 = vmatpush1.bf16.msra.mxu0 %v2472
        %3570 = vmatprep.subr.bf16.mxu0 %v2512
        %3571 = vmatpush1.bf16.msra.mxu0 %v2473
        %3572 = vmatprep.subr.bf16.mxu0 %v2516
        %3573 = vmatpush1.bf16.msra.mxu0 %v2474
        %3574 = vmatprep.subr.bf16.mxu0 %v2520
        %3575 = vmatpush1.bf16.msra.mxu0 %v2475
        %3576 = vmatprep.subr.bf16.mxu0 %v2524
        %3577 = vmatpush1.bf16.msra.mxu0 %v2476
        %3578 = vmatprep.subr.bf16.mxu0 %v2528
        %3579 = vmatpush1.bf16.msra.mxu0 %v2477
        %3580 = vmatprep.subr.bf16.mxu0 %v2532
        %3581 = vmatpush1.bf16.msra.mxu0 %v2478
        %3582 = vmatprep.subr.bf16.mxu0 %v2536
        %3583 = vmatpush1.bf16.msra.mxu0 %v2479
        %3584 = vmatprep.subr.bf16.mxu0 %v2540
        %3585 = vmatpush1.bf16.msra.mxu0 %v2480
        %3586 = vmatprep.subr.bf16.mxu0 0
        %3587 = vmatpush1.bf16.msra.mxu0 0
        %3588 = vmatprep.subr.bf16.mxu0 0
        %3589 = vmatpush1.bf16.msra.mxu0 0
        %3590 = vmatprep.subr.bf16.mxu0 0
        %3591 = vmatpush1.bf16.msra.mxu0 0
        %3592 = vmatprep.subr.bf16.mxu0 0
        %3593 = vmatpush1.bf16.msra.mxu0 0
        %3594 = vmatprep.mubr.bf16.mxu0 %v3134
        %3595 = vmatmul.mubr.bf16.gmra.mrb[0].mxu0 %v2988
        %v3596 = vpop.f32.mrb[0].mxu0
        %v3597 = vadd.f32 %v3464, %v3596
        %v3598 = vpop.f32.mrb[0].mxu0
        %v3599 = vadd.f32 %v3466, %v3598
        %v3600 = vpop.f32.mrb[0].mxu0
        %v3601 = vadd.f32 %v3468, %v3600
        %v3602 = vpop.f32.mrb[0].mxu0
        %v3603 = vadd.f32 %v3470, %v3602
        %3604 = vmatprep.mubr.bf16.mxu0 %v3137
        %3605 = vmatmul.mubr.bf16.gmra.mrb[0].mxu0 %v2996
        %v3606 = vpop.f32.mrb[0].mxu0
        %v3607 = vadd.f32 %v3474, %v3606
        %v3608 = vpop.f32.mrb[0].mxu0
        %v3609 = vadd.f32 %v3476, %v3608
        %v3610 = vpop.f32.mrb[0].mxu0
        %v3611 = vadd.f32 %v3478, %v3610
        %v3612 = vpop.f32.mrb[0].mxu0
        %v3613 = vadd.f32 %v3480, %v3612
        %3614 = vmatprep.mubr.bf16.mxu0 %v3140
        %3615 = vmatmul.mubr.bf16.gmra.mrb[0].mxu0 %v3004
        %v3616 = vpop.f32.mrb[0].mxu0
        %v3617 = vadd.f32 %v3484, %v3616
        %v3618 = vpop.f32.mrb[0].mxu0
        %v3619 = vadd.f32 %v3486, %v3618
        %v3620 = vpop.f32.mrb[0].mxu0
        %v3621 = vadd.f32 %v3488, %v3620
        %v3622 = vpop.f32.mrb[0].mxu0
        %v3623 = vadd.f32 %v3490, %v3622
        %3624 = vmatprep.mubr.bf16.mxu0 %v3143
        %3625 = vmatmul.mubr.bf16.gmra.mrb[0].mxu0 %v3012
        %v3626 = vpop.f32.mrb[0].mxu0
        %v3627 = vadd.f32 %v3494, %v3626
        %v3628 = vpop.f32.mrb[0].mxu0
        %v3629 = vadd.f32 %v3496, %v3628
        %v3630 = vpop.f32.mrb[0].mxu0
        %v3631 = vadd.f32 %v3498, %v3630
        %v3632 = vpop.f32.mrb[0].mxu0
        %v3633 = vadd.f32 %v3500, %v3632
        %3634 = vmatprep.mubr.bf16.mxu0 %v3146
        %3635 = vmatmul.mubr.bf16.gmra.mrb[0].mxu0 %v3020
        %v3636 = vpop.f32.mrb[0].mxu0
        %v3637 = vadd.f32 %v3504, %v3636
        %v3638 = vpop.f32.mrb[0].mxu0
        %v3639 = vadd.f32 %v3506, %v3638
        %v3640 = vpop.f32.mrb[0].mxu0
        %v3641 = vadd.f32 %v3508, %v3640
        %v3642 = vpop.f32.mrb[0].mxu0
        %v3643 = vadd.f32 %v3510, %v3642
        %3644 = vmatprep.mubr.bf16.mxu0 %v3149
        %3645 = vmatmul.mubr.bf16.gmra.mrb[0].mxu0 %v3028
        %v3646 = vpop.f32.mrb[0].mxu0
        %v3647 = vadd.f32 %v3514, %v3646
        %v3648 = vpop.f32.mrb[0].mxu0
        %v3649 = vadd.f32 %v3516, %v3648
        %v3650 = vpop.f32.mrb[0].mxu0
        %v3651 = vadd.f32 %v3518, %v3650
        %v3652 = vpop.f32.mrb[0].mxu0
        %v3653 = vadd.f32 %v3520, %v3652
        %3654 = vmatprep.mubr.bf16.mxu0 %v3152
        %3655 = vmatmul.mubr.bf16.gmra.mrb[0].mxu0 %v3036
        %v3656 = vpop.f32.mrb[0].mxu0
        %v3657 = vadd.f32 %v3524, %v3656
        %v3658 = vpop.f32.mrb[0].mxu0
        %v3659 = vadd.f32 %v3526, %v3658
        %v3660 = vpop.f32.mrb[0].mxu0
        %v3661 = vadd.f32 %v3528, %v3660
        %v3662 = vpop.f32.mrb[0].mxu0
        %v3663 = vadd.f32 %v3530, %v3662
        %3664 = vmatprep.mubr.bf16.mxu0 %v3155
        %3665 = vmatmul.mubr.bf16.gmra.mrb[0].mxu0 %v3044
        %v3666 = vpop.f32.mrb[0].mxu0
        %v3667 = vadd.f32 %v3534, %v3666
        %v3668 = vpop.f32.mrb[0].mxu0
        %v3669 = vadd.f32 %v3536, %v3668
        %v3670 = vpop.f32.mrb[0].mxu0
        %v3671 = vadd.f32 %v3538, %v3670
        %v3672 = vpop.f32.mrb[0].mxu0
        %v3673 = vadd.f32 %v3540, %v3672
        %3674 = vmatprep.mubr.bf16.mxu0 %v3158
        %3675 = vmatmul.mubr.bf16.gmra.mrb[0].mxu0 %v3052
        %v3676 = vpop.f32.mrb[0].mxu0
        %v3677 = vadd.f32 %v3544, %v3676
        %v3678 = vpop.f32.mrb[0].mxu0
        %v3679 = vadd.f32 %v3546, %v3678
        %v3680 = vpop.f32.mrb[0].mxu0
        %v3681 = vadd.f32 %v3548, %v3680
        %v3682 = vpop.f32.mrb[0].mxu0
        %v3683 = vadd.f32 %v3550, %v3682
        %3684 = vmatprep.mubr.bf16.mxu0 %v3161
        %3685 = vmatmul.mubr.bf16.gmra.mrb[0].mxu0 %v3060
        %v3686 = vpop.f32.mrb[0].mxu0
        %v3687 = vadd.f32 %v3554, %v3686
        %v3688 = vpop.f32.mrb[0].mxu0
        %v3689 = vadd.f32 %v3556, %v3688
        %v3690 = vpop.f32.mrb[0].mxu0
        %v3691 = vadd.f32 %v3558, %v3690
        %v3692 = vpop.f32.mrb[0].mxu0
        %v3693 = vadd.f32 %v3560, %v3692
        %3694 = vdwg.mxu0
        %v3695 = vmax.f32 %v3597, 0.0
        %v3696 = vmax.f32 %v3599, 0.0
        %v3697 = vmax.f32 %v3601, 0.0
        %v3698 = vmax.f32 %v3603, 0.0
        %v3699 = vmax.f32 %v3607, 0.0
        %v3700 = vmax.f32 %v3609, 0.0
        %v3701 = vmax.f32 %v3611, 0.0
        %v3702 = vmax.f32 %v3613, 0.0
        %v3703 = vmax.f32 %v3617, 0.0
        %v3704 = vmax.f32 %v3619, 0.0
        %v3705 = vmax.f32 %v3621, 0.0
        %v3706 = vmax.f32 %v3623, 0.0
        %v3707 = vmax.f32 %v3627, 0.0
        %v3708 = vmax.f32 %v3629, 0.0
        %v3709 = vmax.f32 %v3631, 0.0
        %v3710 = vmax.f32 %v3633, 0.0
        %v3711 = vmax.f32 %v3637, 0.0
        %v3712 = vmax.f32 %v3639, 0.0
        %v3713 = vmax.f32 %v3641, 0.0
        %v3714 = vmax.f32 %v3643, 0.0
        %v3715 = vmax.f32 %v3647, 0.0
        %v3716 = vmax.f32 %v3649, 0.0
        %v3717 = vmax.f32 %v3651, 0.0
        %v3718 = vmax.f32 %v3653, 0.0
        %v3719 = vmax.f32 %v3657, 0.0
        %v3720 = vmax.f32 %v3659, 0.0
        %v3721 = vmax.f32 %v3661, 0.0
        %v3722 = vmax.f32 %v3663, 0.0
        %v3723 = vmax.f32 %v3667, 0.0
        %v3724 = vmax.f32 %v3669, 0.0
        %v3725 = vmax.f32 %v3671, 0.0
        %v3726 = vmax.f32 %v3673, 0.0
        %v3727 = vmax.f32 %v3677, 0.0
        %v3728 = vmax.f32 %v3679, 0.0
        %v3729 = vmax.f32 %v3681, 0.0
        %v3730 = vmax.f32 %v3683, 0.0
        %v3731 = vmax.f32 %v3687, 0.0
        %v3732 = vmax.f32 %v3689, 0.0
        %v3733 = vmax.f32 %v3691, 0.0
        %v3734 = vmax.f32 %v3693, 0.0
        %v3735 = vpack.c.bf16 %v3697, %v3695
        %v3736 = vpack.c.bf16 %v3698, %v3696
        %v3737 = vpack.c.bf16 %v3701, %v3699
        %v3738 = vpack.c.bf16 %v3702, %v3700
        %v3739 = vpack.c.bf16 %v3705, %v3703
        %v3740 = vpack.c.bf16 %v3706, %v3704
        %v3741 = vpack.c.bf16 %v3709, %v3707
        %v3742 = vpack.c.bf16 %v3710, %v3708
        %v3743 = vpack.c.bf16 %v3713, %v3711
        %v3744 = vpack.c.bf16 %v3714, %v3712
        %v3745 = vpack.c.bf16 %v3717, %v3715
        %v3746 = vpack.c.bf16 %v3718, %v3716
        %v3747 = vpack.c.bf16 %v3721, %v3719
        %v3748 = vpack.c.bf16 %v3722, %v3720
        %v3749 = vpack.c.bf16 %v3725, %v3723
        %v3750 = vpack.c.bf16 %v3726, %v3724
        %v3751 = vpack.c.bf16 %v3729, %v3727
        %v3752 = vpack.c.bf16 %v3730, %v3728
        %v3753 = vpack.c.bf16 %v3733, %v3731
        %v3754 = vpack.c.bf16 %v3734, %v3732
        %v3756 = vshrl.u32 %v3735, 16
        %v3758 = vshll.u32 %v3735, 16
        %v3760 = vrot.slane %v3758, 1
        %v3761 = vor.u32 %v3756, %v3760
        %v3763 = vshll.u32 %v3737, 16
        %v3765 = vrot.slane %v3763, 1
        %v3766 = vsel %vm1621, %v3761, %v3765
        %v3768 = vshrl.u32 %v3736, 16
        %v3770 = vshll.u32 %v3736, 16
        %v3772 = vrot.slane %v3770, 1
        %v3773 = vor.u32 %v3768, %v3772
        %v3775 = vshll.u32 %v3738, 16
        %v3777 = vrot.slane %v3775, 1
        %v3778 = vsel %vm1621, %v3773, %v3777
        %v3779 = vshrl.u32 %v3737, 16
        %v3781 = vor.u32 %v3779, %v3765
        %v3783 = vshll.u32 %v3739, 16
        %v3785 = vrot.slane %v3783, 1
        %v3786 = vsel %vm1621, %v3781, %v3785
        %v3787 = vshrl.u32 %v3738, 16
        %v3789 = vor.u32 %v3787, %v3777
        %v3791 = vshll.u32 %v3740, 16
        %v3793 = vrot.slane %v3791, 1
        %v3794 = vsel %vm1621, %v3789, %v3793
        %v3795 = vshrl.u32 %v3739, 16
        %v3797 = vor.u32 %v3795, %v3785
        %v3799 = vshll.u32 %v3741, 16
        %v3801 = vrot.slane %v3799, 1
        %v3802 = vsel %vm1621, %v3797, %v3801
        %v3803 = vshrl.u32 %v3740, 16
        %v3805 = vor.u32 %v3803, %v3793
        %v3807 = vshll.u32 %v3742, 16
        %v3809 = vrot.slane %v3807, 1
        %v3810 = vsel %vm1621, %v3805, %v3809
        %v3811 = vshrl.u32 %v3741, 16
        %v3813 = vor.u32 %v3811, %v3801
        %v3815 = vshll.u32 %v3743, 16
        %v3817 = vrot.slane %v3815, 1
        %v3818 = vsel %vm1621, %v3813, %v3817
        %v3819 = vshrl.u32 %v3742, 16
        %v3821 = vor.u32 %v3819, %v3809
        %v3823 = vshll.u32 %v3744, 16
        %v3825 = vrot.slane %v3823, 1
        %v3826 = vsel %vm1621, %v3821, %v3825
        %v3827 = vshrl.u32 %v3743, 16
        %v3829 = vor.u32 %v3827, %v3817
        %v3831 = vshll.u32 %v3745, 16
        %v3833 = vrot.slane %v3831, 1
        %v3834 = vsel %vm1621, %v3829, %v3833
        %v3835 = vshrl.u32 %v3744, 16
        %v3837 = vor.u32 %v3835, %v3825
        %v3839 = vshll.u32 %v3746, 16
        %v3841 = vrot.slane %v3839, 1
        %v3842 = vsel %vm1621, %v3837, %v3841
        %v3843 = vshrl.u32 %v3745, 16
        %v3845 = vor.u32 %v3843, %v3833
        %v3847 = vshll.u32 %v3747, 16
        %v3849 = vrot.slane %v3847, 1
        %v3850 = vsel %vm1621, %v3845, %v3849
        %v3851 = vshrl.u32 %v3746, 16
        %v3853 = vor.u32 %v3851, %v3841
        %v3855 = vshll.u32 %v3748, 16
        %v3857 = vrot.slane %v3855, 1
        %v3858 = vsel %vm1621, %v3853, %v3857
        %v3859 = vshrl.u32 %v3747, 16
        %v3861 = vor.u32 %v3859, %v3849
        %v3863 = vshll.u32 %v3749, 16
        %v3865 = vrot.slane %v3863, 1
        %v3866 = vsel %vm1621, %v3861, %v3865
        %v3867 = vshrl.u32 %v3748, 16
        %v3869 = vor.u32 %v3867, %v3857
        %v3871 = vshll.u32 %v3750, 16
        %v3873 = vrot.slane %v3871, 1
        %v3874 = vsel %vm1621, %v3869, %v3873
        %v3875 = vshrl.u32 %v3749, 16
        %v3877 = vor.u32 %v3875, %v3865
        %v3879 = vshll.u32 %v3751, 16
        %v3881 = vrot.slane %v3879, 1
        %v3882 = vsel %vm1621, %v3877, %v3881
        %v3883 = vshrl.u32 %v3750, 16
        %v3885 = vor.u32 %v3883, %v3873
        %v3887 = vshll.u32 %v3752, 16
        %v3889 = vrot.slane %v3887, 1
        %v3890 = vsel %vm1621, %v3885, %v3889
        %v3891 = vshrl.u32 %v3751, 16
        %v3893 = vor.u32 %v3891, %v3881
        %v3895 = vshll.u32 %v3753, 16
        %v3897 = vrot.slane %v3895, 1
        %v3898 = vsel %vm1621, %v3893, %v3897
        %v3899 = vshrl.u32 %v3752, 16
        %v3901 = vor.u32 %v3899, %v3889
        %v3903 = vshll.u32 %v3754, 16
        %v3905 = vrot.slane %v3903, 1
        %v3906 = vsel %vm1621, %v3901, %v3905
        %v3907 = vshrl.u32 %v3753, 16
        %v3909 = vor.u32 %v3907, %v3897
        %v3910 = vshrl.u32 %v3754, 16
        %v3912 = vor.u32 %v3910, %v3905
        %v3935 = vsel %vm1839, %v3909, %v3760
        %v3936 = vsel %vm1839, %v3912, %v3772
        %v3937 = vmax.bf16 %v3735, %v3766
        %v3938 = vmax.bf16 %v3736, %v3778
        %v3939 = vmax.bf16 %v3737, %v3786
        %v3940 = vmax.bf16 %v3738, %v3794
        %v3941 = vmax.bf16 %v3739, %v3802
        %v3942 = vmax.bf16 %v3740, %v3810
        %v3943 = vmax.bf16 %v3741, %v3818
        %v3944 = vmax.bf16 %v3742, %v3826
        %v3945 = vmax.bf16 %v3743, %v3834
        %v3946 = vmax.bf16 %v3744, %v3842
        %v3947 = vmax.bf16 %v3745, %v3850
        %v3948 = vmax.bf16 %v3746, %v3858
        %v3949 = vmax.bf16 %v3747, %v3866
        %v3950 = vmax.bf16 %v3748, %v3874
        %v3951 = vmax.bf16 %v3749, %v3882
        %v3952 = vmax.bf16 %v3750, %v3890
        %v3953 = vmax.bf16 %v3751, %v3898
        %v3954 = vmax.bf16 %v3752, %v3906
        %v3955 = vmax.bf16 %v3753, %v3935
        %v3956 = vmax.bf16 %v3754, %v3936
        %3977 = vrot.lane.b32.xlu0 %v3937, 126
        %v3978 = vpop.permute.xlu0 %3977
        %3979 = vrot.lane.b32.xlu0 %v3938, 126
        %v3980 = vpop.permute.xlu0 %3979
        %3981 = vrot.lane.b32.xlu0 %v3939, 126
        %v3982 = vpop.permute.xlu0 %3981
        %3983 = vrot.lane.b32.xlu0 %v3940, 126
        %v3984 = vpop.permute.xlu0 %3983
        %3985 = vrot.lane.b32.xlu0 %v3941, 126
        %v3986 = vpop.permute.xlu0 %3985
        %3987 = vrot.lane.b32.xlu0 %v3942, 126
        %v3988 = vpop.permute.xlu0 %3987
        %3989 = vrot.lane.b32.xlu0 %v3943, 126
        %v3990 = vpop.permute.xlu0 %3989
        %3991 = vrot.lane.b32.xlu0 %v3944, 126
        %v3992 = vpop.permute.xlu0 %3991
        %3993 = vrot.lane.b32.xlu0 %v3945, 126
        %v3994 = vpop.permute.xlu0 %3993
        %3995 = vrot.lane.b32.xlu0 %v3946, 126
        %v3996 = vpop.permute.xlu0 %3995
        %3997 = vrot.lane.b32.xlu0 %v3947, 126
        %v3998 = vpop.permute.xlu0 %3997
        %3999 = vrot.lane.b32.xlu0 %v3948, 126
        %v4000 = vpop.permute.xlu0 %3999
        %4001 = vrot.lane.b32.xlu0 %v3949, 126
        %v4002 = vpop.permute.xlu0 %4001
        %4003 = vrot.lane.b32.xlu0 %v3950, 126
        %v4004 = vpop.permute.xlu0 %4003
        %4005 = vrot.lane.b32.xlu0 %v3951, 126
        %v4006 = vpop.permute.xlu0 %4005
        %4007 = vrot.lane.b32.xlu0 %v3952, 126
        %v4008 = vpop.permute.xlu0 %4007
        %4009 = vrot.lane.b32.xlu0 %v3953, 126
        %v4010 = vpop.permute.xlu0 %4009
        %4011 = vrot.lane.b32.xlu0 %v3954, 126
        %v4012 = vpop.permute.xlu0 %4011
        %4013 = vrot.lane.b32.xlu0 %v3955, 126
        %v4014 = vpop.permute.xlu0 %4013
        %4015 = vrot.lane.b32.xlu0 %v3956, 126
        %v4016 = vpop.permute.xlu0 %4015
        %v4017 = vsel %vm612, %v3978, %v3980
        %v4018 = vsel %vm612, %v3982, %v3984
        %v4019 = vsel %vm612, %v3986, %v3988
        %v4020 = vsel %vm612, %v3990, %v3992
        %v4021 = vsel %vm612, %v3994, %v3996
        %v4022 = vsel %vm612, %v3998, %v4000
        %v4023 = vsel %vm612, %v4002, %v4004
        %v4024 = vsel %vm612, %v4006, %v4008
        %v4025 = vsel %vm612, %v4010, %v4012
        %v4026 = vsel %vm612, %v4014, %v4016
        %v4039 = vsel %vm625, %v3980, %v3978
        %v4043 = vsel %vm625, %v3984, %v3982
        %v4047 = vsel %vm625, %v3988, %v3986
        %v4051 = vsel %vm625, %v3992, %v3990
        %v4055 = vsel %vm625, %v3996, %v3994
        %v4059 = vsel %vm625, %v4000, %v3998
        %v4063 = vsel %vm625, %v4004, %v4002
        %v4067 = vsel %vm625, %v4008, %v4006
        %v4071 = vsel %vm625, %v4012, %v4010
        %v4075 = vsel %vm625, %v4016, %v4014
        %v4077 = vmax.bf16 %v3937, %v4017
        %v4078 = vmax.bf16 %v3938, %v4039
        %v4079 = vmax.bf16 %v3939, %v4018
        %v4080 = vmax.bf16 %v3940, %v4043
        %v4081 = vmax.bf16 %v3941, %v4019
        %v4082 = vmax.bf16 %v3942, %v4047
        %v4083 = vmax.bf16 %v3943, %v4020
        %v4084 = vmax.bf16 %v3944, %v4051
        %v4085 = vmax.bf16 %v3945, %v4021
        %v4086 = vmax.bf16 %v3946, %v4055
        %v4087 = vmax.bf16 %v3947, %v4022
        %v4088 = vmax.bf16 %v3948, %v4059
        %v4089 = vmax.bf16 %v3949, %v4023
        %v4090 = vmax.bf16 %v3950, %v4063
        %v4091 = vmax.bf16 %v3951, %v4024
        %v4092 = vmax.bf16 %v3952, %v4067
        %v4093 = vmax.bf16 %v3953, %v4025
        %v4094 = vmax.bf16 %v3954, %v4071
        %v4095 = vmax.bf16 %v3955, %v4026
        %v4096 = vmax.bf16 %v3956, %v4075
        %v4097 = vlaneseq
        %v4098 = vshrl.u32 %v4097, 7
        %v4099 = vadd.s32 %v4098, 8
        %v4100 = vadd.s32 %v4098, 16
        %v4101 = vadd.s32 %v4098, 24
        %v4102 = vadd.s32 %v4098, 32
        %v4103 = vadd.s32 %v4098, 40
        %v4104 = vadd.s32 %v4098, 48
        %v4105 = vadd.s32 %v4098, 56
        %v4106 = vadd.s32 %v4098, 64
        %v4107 = vadd.s32 %v4098, 72
        %v4108 = vadd.s32 %v4098, 80
        %v4109 = vadd.s32 %v4098, 88
        %v4110 = vadd.s32 %v4098, 96
        %v4111 = vadd.s32 %v4098, 104
        %v4112 = vadd.s32 %v4098, 112
        %v4113 = vadd.s32 %v4098, 120
        %v4114 = vadd.s32 %v4098, 128
        %v4115 = vadd.s32 %v4098, 136
        %v4116 = vadd.s32 %v4098, 144
        %v4117 = vadd.s32 %v4098, 152
        %v4118 = vadd.s32 %v4098, 160
        %v4119 = vadd.s32 %v4098, 168
        %v4120 = vadd.s32 %v4098, 176
        %v4121 = vadd.s32 %v4098, 184
        %v4122 = vadd.s32 %v4098, 192
        %v4123 = vadd.s32 %v4098, 200
        %v4124 = vadd.s32 %v4098, 208
        %v4125 = vadd.s32 %v4098, 216
        %v4126 = vadd.s32 %v4098, 224
        %v4127 = vadd.s32 %v4098, 232
        %v4128 = vadd.s32 %v4098, 240
        %v4129 = vadd.s32 %v4098, 248
        %v4130 = vlaneseq
        %v4131 = vand.u32 %v4130, 127
        %v4132 = vmul.u32 %v4131, 32
        %vm4133 = vcmp.eq.s32.totalorder %v4098, %v4132
        %vm4134 = vcmp.eq.s32.totalorder %v4099, %v4132
        %vm4135 = vcmp.eq.s32.totalorder %v4100, %v4132
        %vm4136 = vcmp.eq.s32.totalorder %v4101, %v4132
        %vm4137 = vcmp.eq.s32.totalorder %v4102, %v4132
        %vm4138 = vcmp.eq.s32.totalorder %v4103, %v4132
        %vm4139 = vcmp.eq.s32.totalorder %v4104, %v4132
        %vm4140 = vcmp.eq.s32.totalorder %v4105, %v4132
        %vm4141 = vcmp.eq.s32.totalorder %v4106, %v4132
        %vm4142 = vcmp.eq.s32.totalorder %v4107, %v4132
        %vm4143 = vcmp.eq.s32.totalorder %v4108, %v4132
        %vm4144 = vcmp.eq.s32.totalorder %v4109, %v4132
        %vm4145 = vcmp.eq.s32.totalorder %v4110, %v4132
        %vm4146 = vcmp.eq.s32.totalorder %v4111, %v4132
        %vm4147 = vcmp.eq.s32.totalorder %v4112, %v4132
        %vm4148 = vcmp.eq.s32.totalorder %v4113, %v4132
        %vm4149 = vcmp.eq.s32.totalorder %v4114, %v4132
        %vm4150 = vcmp.eq.s32.totalorder %v4115, %v4132
        %vm4151 = vcmp.eq.s32.totalorder %v4116, %v4132
        %vm4152 = vcmp.eq.s32.totalorder %v4117, %v4132
        %vm4153 = vcmp.eq.s32.totalorder %v4118, %v4132
        %vm4154 = vcmp.eq.s32.totalorder %v4119, %v4132
        %vm4155 = vcmp.eq.s32.totalorder %v4120, %v4132
        %vm4156 = vcmp.eq.s32.totalorder %v4121, %v4132
        %vm4157 = vcmp.eq.s32.totalorder %v4122, %v4132
        %vm4158 = vcmp.eq.s32.totalorder %v4123, %v4132
        %vm4159 = vcmp.eq.s32.totalorder %v4124, %v4132
        %vm4160 = vcmp.eq.s32.totalorder %v4125, %v4132
        %vm4161 = vcmp.eq.s32.totalorder %v4126, %v4132
        %vm4162 = vcmp.eq.s32.totalorder %v4127, %v4132
        %vm4163 = vcmp.eq.s32.totalorder %v4128, %v4132
        %vm4164 = vcmp.eq.s32.totalorder %v4129, %v4132
        %v4165 = vsel %vm4133, 1, 0
        %v4166 = vsel %vm4134, 1, 0
        %v4167 = vsel %vm4135, 1, 0
        %v4168 = vsel %vm4136, 1, 0
        %v4169 = vsel %vm4137, 1, 0
        %v4170 = vsel %vm4138, 1, 0
        %v4171 = vsel %vm4139, 1, 0
        %v4172 = vsel %vm4140, 1, 0
        %v4173 = vsel %vm4141, 1, 0
        %v4174 = vsel %vm4142, 1, 0
        %v4175 = vsel %vm4143, 1, 0
        %v4176 = vsel %vm4144, 1, 0
        %v4177 = vsel %vm4145, 1, 0
        %v4178 = vsel %vm4146, 1, 0
        %v4179 = vsel %vm4147, 1, 0
        %v4180 = vsel %vm4148, 1, 0
        %v4181 = vsel %vm4149, 1, 0
        %v4182 = vsel %vm4150, 1, 0
        %v4183 = vsel %vm4151, 1, 0
        %v4184 = vsel %vm4152, 1, 0
        %v4185 = vsel %vm4153, 1, 0
        %v4186 = vsel %vm4154, 1, 0
        %v4187 = vsel %vm4155, 1, 0
        %v4188 = vsel %vm4156, 1, 0
        %v4189 = vsel %vm4157, 1, 0
        %v4190 = vsel %vm4158, 1, 0
        %v4191 = vsel %vm4159, 1, 0
        %v4192 = vsel %vm4160, 1, 0
        %v4193 = vsel %vm4161, 1, 0
        %v4194 = vsel %vm4162, 1, 0
        %v4195 = vsel %vm4163, 1, 0
        %v4196 = vsel %vm4164, 1, 0
        %v4197 = vcvt.s32.f32 %v4165
        %v4198 = vcvt.s32.f32 %v4166
        %v4199 = vcvt.s32.f32 %v4167
        %v4200 = vcvt.s32.f32 %v4168
        %v4201 = vcvt.s32.f32 %v4169
        %v4202 = vcvt.s32.f32 %v4170
        %v4203 = vcvt.s32.f32 %v4171
        %v4204 = vcvt.s32.f32 %v4172
        %v4205 = vcvt.s32.f32 %v4173
        %v4206 = vcvt.s32.f32 %v4174
        %v4207 = vcvt.s32.f32 %v4175
        %v4208 = vcvt.s32.f32 %v4176
        %v4209 = vcvt.s32.f32 %v4177
        %v4210 = vcvt.s32.f32 %v4178
        %v4211 = vcvt.s32.f32 %v4179
        %v4212 = vcvt.s32.f32 %v4180
        %v4213 = vcvt.s32.f32 %v4181
        %v4214 = vcvt.s32.f32 %v4182
        %v4215 = vcvt.s32.f32 %v4183
        %v4216 = vcvt.s32.f32 %v4184
        %v4217 = vcvt.s32.f32 %v4185
        %v4218 = vcvt.s32.f32 %v4186
        %v4219 = vcvt.s32.f32 %v4187
        %v4220 = vcvt.s32.f32 %v4188
        %v4221 = vcvt.s32.f32 %v4189
        %v4222 = vcvt.s32.f32 %v4190
        %v4223 = vcvt.s32.f32 %v4191
        %v4224 = vcvt.s32.f32 %v4192
        %v4225 = vcvt.s32.f32 %v4193
        %v4226 = vcvt.s32.f32 %v4194
        %v4227 = vcvt.s32.f32 %v4195
        %v4228 = vcvt.s32.f32 %v4196
        %v4229 = vpack.c.bf16 %v4198, %v4197
        %v4230 = vpack.c.bf16 %v4200, %v4199
        %v4231 = vpack.c.bf16 %v4202, %v4201
        %v4232 = vpack.c.bf16 %v4204, %v4203
        %v4233 = vpack.c.bf16 %v4206, %v4205
        %v4234 = vpack.c.bf16 %v4208, %v4207
        %v4235 = vpack.c.bf16 %v4210, %v4209
        %v4236 = vpack.c.bf16 %v4212, %v4211
        %v4237 = vpack.c.bf16 %v4214, %v4213
        %v4238 = vpack.c.bf16 %v4216, %v4215
        %v4239 = vpack.c.bf16 %v4218, %v4217
        %v4240 = vpack.c.bf16 %v4220, %v4219
        %v4241 = vpack.c.bf16 %v4222, %v4221
        %v4242 = vpack.c.bf16 %v4224, %v4223
        %v4243 = vpack.c.bf16 %v4226, %v4225
        %v4244 = vpack.c.bf16 %v4228, %v4227
        %4245 = vmatprep.subr.bf16.mxu0 0
        %4246 = vmatpush1.bf16.msra.mxu0 %v4229
        %4247 = vmatprep.subr.bf16.mxu0 0
        %4248 = vmatpush1.bf16.msra.mxu0 %v4230
        %4249 = vmatprep.subr.bf16.mxu0 0
        %4250 = vmatpush1.bf16.msra.mxu0 %v4231
        %4251 = vmatprep.subr.bf16.mxu0 0
        %4252 = vmatpush1.bf16.msra.mxu0 %v4232
        %4253 = vmatprep.subr.bf16.mxu0 0
        %4254 = vmatpush1.bf16.msra.mxu0 %v4233
        %4255 = vmatprep.subr.bf16.mxu0 0
        %4256 = vmatpush1.bf16.msra.mxu0 %v4234
        %4257 = vmatprep.subr.bf16.mxu0 0
        %4258 = vmatpush1.bf16.msra.mxu0 %v4235
        %4259 = vmatprep.subr.bf16.mxu0 0
        %4260 = vmatpush1.bf16.msra.mxu0 %v4236
        %4261 = vmatprep.subr.bf16.mxu0 0
        %4262 = vmatpush1.bf16.msra.mxu0 %v4237
        %4263 = vmatprep.subr.bf16.mxu0 0
        %4264 = vmatpush1.bf16.msra.mxu0 %v4238
        %4265 = vmatprep.subr.bf16.mxu0 0
        %4266 = vmatpush1.bf16.msra.mxu0 %v4239
        %4267 = vmatprep.subr.bf16.mxu0 0
        %4268 = vmatpush1.bf16.msra.mxu0 %v4240
        %4269 = vmatprep.subr.bf16.mxu0 0
        %4270 = vmatpush1.bf16.msra.mxu0 %v4241
        %4271 = vmatprep.subr.bf16.mxu0 0
        %4272 = vmatpush1.bf16.msra.mxu0 %v4242
        %4273 = vmatprep.subr.bf16.mxu0 0
        %4274 = vmatpush1.bf16.msra.mxu0 %v4243
        %4275 = vmatprep.subr.bf16.mxu0 0
        %4276 = vmatpush1.bf16.msra.mxu0 %v4244
        %4277 = vmatprep.mubr.bf16.mxu0 %v4078
        %4278 = vmatmul.mubr.bf16.gmra.mrb[0].mxu0 %v4077
        %v4279 = vpop.f32.mrb[0].mxu0
        %v4280 = vadd.f32 0.0, %v4279
        %v4281 = vpop.f32.mrb[0].mxu0
        %v4282 = vpop.f32.mrb[0].mxu0
        %v4283 = vadd.f32 0.0, %v4282
        %v4284 = vpop.f32.mrb[0].mxu0
        %4285 = vmatprep.mubr.bf16.mxu0 %v4080
        %4286 = vmatmul.mubr.bf16.gmra.mrb[0].mxu0 %v4079
        %v4287 = vpop.f32.mrb[0].mxu0
        %v4288 = vadd.f32 0.0, %v4287
        %v4289 = vpop.f32.mrb[0].mxu0
        %v4290 = vpop.f32.mrb[0].mxu0
        %v4291 = vadd.f32 0.0, %v4290
        %v4292 = vpop.f32.mrb[0].mxu0
        %4293 = vmatprep.mubr.bf16.mxu0 %v4082
        %4294 = vmatmul.mubr.bf16.gmra.mrb[0].mxu0 %v4081
        %v4295 = vpop.f32.mrb[0].mxu0
        %v4296 = vadd.f32 0.0, %v4295
        %v4297 = vpop.f32.mrb[0].mxu0
        %v4298 = vpop.f32.mrb[0].mxu0
        %v4299 = vadd.f32 0.0, %v4298
        %v4300 = vpop.f32.mrb[0].mxu0
        %4301 = vmatprep.mubr.bf16.mxu0 %v4084
        %4302 = vmatmul.mubr.bf16.gmra.mrb[0].mxu0 %v4083
        %v4303 = vpop.f32.mrb[0].mxu0
        %v4304 = vadd.f32 0.0, %v4303
        %v4305 = vpop.f32.mrb[0].mxu0
        %v4306 = vpop.f32.mrb[0].mxu0
        %v4307 = vadd.f32 0.0, %v4306
        %v4308 = vpop.f32.mrb[0].mxu0
        %4309 = vmatprep.mubr.bf16.mxu0 %v4086
        %4310 = vmatmul.mubr.bf16.gmra.mrb[0].mxu0 %v4085
        %v4311 = vpop.f32.mrb[0].mxu0
        %v4312 = vadd.f32 0.0, %v4311
        %v4313 = vpop.f32.mrb[0].mxu0
        %v4314 = vpop.f32.mrb[0].mxu0
        %v4315 = vadd.f32 0.0, %v4314
        %v4316 = vpop.f32.mrb[0].mxu0
        %4317 = vmatprep.mubr.bf16.mxu0 %v4088
        %4318 = vmatmul.mubr.bf16.gmra.mrb[0].mxu0 %v4087
        %v4319 = vpop.f32.mrb[0].mxu0
        %v4320 = vadd.f32 0.0, %v4319
        %v4321 = vpop.f32.mrb[0].mxu0
        %v4322 = vpop.f32.mrb[0].mxu0
        %v4323 = vadd.f32 0.0, %v4322
        %v4324 = vpop.f32.mrb[0].mxu0
        %4325 = vmatprep.mubr.bf16.mxu0 %v4090
        %4326 = vmatmul.mubr.bf16.gmra.mrb[0].mxu0 %v4089
        %v4327 = vpop.f32.mrb[0].mxu0
        %v4328 = vadd.f32 0.0, %v4327
        %v4329 = vpop.f32.mrb[0].mxu0
        %v4330 = vpop.f32.mrb[0].mxu0
        %v4331 = vadd.f32 0.0, %v4330
        %v4332 = vpop.f32.mrb[0].mxu0
        %4333 = vmatprep.mubr.bf16.mxu0 %v4092
        %4334 = vmatmul.mubr.bf16.gmra.mrb[0].mxu0 %v4091
        %v4335 = vpop.f32.mrb[0].mxu0
        %v4336 = vadd.f32 0.0, %v4335
        %v4337 = vpop.f32.mrb[0].mxu0
        %v4338 = vpop.f32.mrb[0].mxu0
        %v4339 = vadd.f32 0.0, %v4338
        %v4340 = vpop.f32.mrb[0].mxu0
        %4341 = vmatprep.mubr.bf16.mxu0 %v4094
        %4342 = vmatmul.mubr.bf16.gmra.mrb[0].mxu0 %v4093
        %v4343 = vpop.f32.mrb[0].mxu0
        %v4344 = vadd.f32 0.0, %v4343
        %v4345 = vpop.f32.mrb[0].mxu0
        %v4346 = vpop.f32.mrb[0].mxu0
        %v4347 = vadd.f32 0.0, %v4346
        %v4348 = vpop.f32.mrb[0].mxu0
        %4349 = vmatprep.mubr.bf16.mxu0 %v4096
        %4350 = vmatmul.mubr.bf16.gmra.mrb[0].mxu0 %v4095
        %v4351 = vpop.f32.mrb[0].mxu0
        %v4352 = vadd.f32 0.0, %v4351
        %v4353 = vpop.f32.mrb[0].mxu0
        %v4354 = vpop.f32.mrb[0].mxu0
        %v4355 = vadd.f32 0.0, %v4354
        %v4356 = vpop.f32.mrb[0].mxu0
        %4357 = vdwg.mxu0
        %v4358 = vadd.s32 %v4132, 4
        %vm4359 = vcmp.eq.s32.totalorder %v4098, %v4358
        %vm4360 = vcmp.eq.s32.totalorder %v4099, %v4358
        %vm4361 = vcmp.eq.s32.totalorder %v4100, %v4358
        %vm4362 = vcmp.eq.s32.totalorder %v4101, %v4358
        %vm4363 = vcmp.eq.s32.totalorder %v4102, %v4358
        %vm4364 = vcmp.eq.s32.totalorder %v4103, %v4358
        %vm4365 = vcmp.eq.s32.totalorder %v4104, %v4358
        %vm4366 = vcmp.eq.s32.totalorder %v4105, %v4358
        %vm4367 = vcmp.eq.s32.totalorder %v4106, %v4358
        %vm4368 = vcmp.eq.s32.totalorder %v4107, %v4358
        %vm4369 = vcmp.eq.s32.totalorder %v4108, %v4358
        %vm4370 = vcmp.eq.s32.totalorder %v4109, %v4358
        %vm4371 = vcmp.eq.s32.totalorder %v4110, %v4358
        %vm4372 = vcmp.eq.s32.totalorder %v4111, %v4358
        %vm4373 = vcmp.eq.s32.totalorder %v4112, %v4358
        %vm4374 = vcmp.eq.s32.totalorder %v4113, %v4358
        %vm4375 = vcmp.eq.s32.totalorder %v4114, %v4358
        %vm4376 = vcmp.eq.s32.totalorder %v4115, %v4358
        %vm4377 = vcmp.eq.s32.totalorder %v4116, %v4358
        %vm4378 = vcmp.eq.s32.totalorder %v4117, %v4358
        %vm4379 = vcmp.eq.s32.totalorder %v4118, %v4358
        %vm4380 = vcmp.eq.s32.totalorder %v4119, %v4358
        %vm4381 = vcmp.eq.s32.totalorder %v4120, %v4358
        %vm4382 = vcmp.eq.s32.totalorder %v4121, %v4358
        %vm4383 = vcmp.eq.s32.totalorder %v4122, %v4358
        %vm4384 = vcmp.eq.s32.totalorder %v4123, %v4358
        %vm4385 = vcmp.eq.s32.totalorder %v4124, %v4358
        %vm4386 = vcmp.eq.s32.totalorder %v4125, %v4358
        %vm4387 = vcmp.eq.s32.totalorder %v4126, %v4358
        %vm4388 = vcmp.eq.s32.totalorder %v4127, %v4358
        %vm4389 = vcmp.eq.s32.totalorder %v4128, %v4358
        %vm4390 = vcmp.eq.s32.totalorder %v4129, %v4358
        %v4391 = vsel %vm4359, 1, 0
        %v4392 = vsel %vm4360, 1, 0
        %v4393 = vsel %vm4361, 1, 0
        %v4394 = vsel %vm4362, 1, 0
        %v4395 = vsel %vm4363, 1, 0
        %v4396 = vsel %vm4364, 1, 0
        %v4397 = vsel %vm4365, 1, 0
        %v4398 = vsel %vm4366, 1, 0
        %v4399 = vsel %vm4367, 1, 0
        %v4400 = vsel %vm4368, 1, 0
        %v4401 = vsel %vm4369, 1, 0
        %v4402 = vsel %vm4370, 1, 0
        %v4403 = vsel %vm4371, 1, 0
        %v4404 = vsel %vm4372, 1, 0
        %v4405 = vsel %vm4373, 1, 0
        %v4406 = vsel %vm4374, 1, 0
        %v4407 = vsel %vm4375, 1, 0
        %v4408 = vsel %vm4376, 1, 0
        %v4409 = vsel %vm4377, 1, 0
        %v4410 = vsel %vm4378, 1, 0
        %v4411 = vsel %vm4379, 1, 0
        %v4412 = vsel %vm4380, 1, 0
        %v4413 = vsel %vm4381, 1, 0
        %v4414 = vsel %vm4382, 1, 0
        %v4415 = vsel %vm4383, 1, 0
        %v4416 = vsel %vm4384, 1, 0
        %v4417 = vsel %vm4385, 1, 0
        %v4418 = vsel %vm4386, 1, 0
        %v4419 = vsel %vm4387, 1, 0
        %v4420 = vsel %vm4388, 1, 0
        %v4421 = vsel %vm4389, 1, 0
        %v4422 = vsel %vm4390, 1, 0
        %v4423 = vcvt.s32.f32 %v4391
        %v4424 = vcvt.s32.f32 %v4392
        %v4425 = vcvt.s32.f32 %v4393
        %v4426 = vcvt.s32.f32 %v4394
        %v4427 = vcvt.s32.f32 %v4395
        %v4428 = vcvt.s32.f32 %v4396
        %v4429 = vcvt.s32.f32 %v4397
        %v4430 = vcvt.s32.f32 %v4398
        %v4431 = vcvt.s32.f32 %v4399
        %v4432 = vcvt.s32.f32 %v4400
        %v4433 = vcvt.s32.f32 %v4401
        %v4434 = vcvt.s32.f32 %v4402
        %v4435 = vcvt.s32.f32 %v4403
        %v4436 = vcvt.s32.f32 %v4404
        %v4437 = vcvt.s32.f32 %v4405
        %v4438 = vcvt.s32.f32 %v4406
        %v4439 = vcvt.s32.f32 %v4407
        %v4440 = vcvt.s32.f32 %v4408
        %v4441 = vcvt.s32.f32 %v4409
        %v4442 = vcvt.s32.f32 %v4410
        %v4443 = vcvt.s32.f32 %v4411
        %v4444 = vcvt.s32.f32 %v4412
        %v4445 = vcvt.s32.f32 %v4413
        %v4446 = vcvt.s32.f32 %v4414
        %v4447 = vcvt.s32.f32 %v4415
        %v4448 = vcvt.s32.f32 %v4416
        %v4449 = vcvt.s32.f32 %v4417
        %v4450 = vcvt.s32.f32 %v4418
        %v4451 = vcvt.s32.f32 %v4419
        %v4452 = vcvt.s32.f32 %v4420
        %v4453 = vcvt.s32.f32 %v4421
        %v4454 = vcvt.s32.f32 %v4422
        %v4455 = vpack.c.bf16 %v4424, %v4423
        %v4456 = vpack.c.bf16 %v4426, %v4425
        %v4457 = vpack.c.bf16 %v4428, %v4427
        %v4458 = vpack.c.bf16 %v4430, %v4429
        %v4459 = vpack.c.bf16 %v4432, %v4431
        %v4460 = vpack.c.bf16 %v4434, %v4433
        %v4461 = vpack.c.bf16 %v4436, %v4435
        %v4462 = vpack.c.bf16 %v4438, %v4437
        %v4463 = vpack.c.bf16 %v4440, %v4439
        %v4464 = vpack.c.bf16 %v4442, %v4441
        %v4465 = vpack.c.bf16 %v4444, %v4443
        %v4466 = vpack.c.bf16 %v4446, %v4445
        %v4467 = vpack.c.bf16 %v4448, %v4447
        %v4468 = vpack.c.bf16 %v4450, %v4449
        %v4469 = vpack.c.bf16 %v4452, %v4451
        %v4470 = vpack.c.bf16 %v4454, %v4453
        %4471 = vmatprep.subr.bf16.mxu0 0
        %4472 = vmatpush1.bf16.msra.mxu0 %v4455
        %4473 = vmatprep.subr.bf16.mxu0 0
        %4474 = vmatpush1.bf16.msra.mxu0 %v4456
        %4475 = vmatprep.subr.bf16.mxu0 0
        %4476 = vmatpush1.bf16.msra.mxu0 %v4457
        %4477 = vmatprep.subr.bf16.mxu0 0
        %4478 = vmatpush1.bf16.msra.mxu0 %v4458
        %4479 = vmatprep.subr.bf16.mxu0 0
        %4480 = vmatpush1.bf16.msra.mxu0 %v4459
        %4481 = vmatprep.subr.bf16.mxu0 0
        %4482 = vmatpush1.bf16.msra.mxu0 %v4460
        %4483 = vmatprep.subr.bf16.mxu0 0
        %4484 = vmatpush1.bf16.msra.mxu0 %v4461
        %4485 = vmatprep.subr.bf16.mxu0 0
        %4486 = vmatpush1.bf16.msra.mxu0 %v4462
        %4487 = vmatprep.subr.bf16.mxu0 0
        %4488 = vmatpush1.bf16.msra.mxu0 %v4463
        %4489 = vmatprep.subr.bf16.mxu0 0
        %4490 = vmatpush1.bf16.msra.mxu0 %v4464
        %4491 = vmatprep.subr.bf16.mxu0 0
        %4492 = vmatpush1.bf16.msra.mxu0 %v4465
        %4493 = vmatprep.subr.bf16.mxu0 0
        %4494 = vmatpush1.bf16.msra.mxu0 %v4466
        %4495 = vmatprep.subr.bf16.mxu0 0
        %4496 = vmatpush1.bf16.msra.mxu0 %v4467
        %4497 = vmatprep.subr.bf16.mxu0 0
        %4498 = vmatpush1.bf16.msra.mxu0 %v4468
        %4499 = vmatprep.subr.bf16.mxu0 0
        %4500 = vmatpush1.bf16.msra.mxu0 %v4469
        %4501 = vmatprep.subr.bf16.mxu0 0
        %4502 = vmatpush1.bf16.msra.mxu0 %v4470
        %4503 = vmatprep.mubr.bf16.mxu0 %v4078
        %4504 = vmatmul.mubr.bf16.gmra.mrb[0].mxu0 %v4077
        %v4505 = vpop.f32.mrb[0].mxu0
        %v4506 = vadd.f32 0.0, %v4505
        %v4507 = vpop.f32.mrb[0].mxu0
        %v4508 = vpop.f32.mrb[0].mxu0
        %v4509 = vadd.f32 0.0, %v4508
        %v4510 = vpop.f32.mrb[0].mxu0
        %4511 = vmatprep.mubr.bf16.mxu0 %v4080
        %4512 = vmatmul.mubr.bf16.gmra.mrb[0].mxu0 %v4079
        %v4513 = vpop.f32.mrb[0].mxu0
        %v4514 = vadd.f32 0.0, %v4513
        %v4515 = vpop.f32.mrb[0].mxu0
        %v4516 = vpop.f32.mrb[0].mxu0
        %v4517 = vadd.f32 0.0, %v4516
        %v4518 = vpop.f32.mrb[0].mxu0
        %4519 = vmatprep.mubr.bf16.mxu0 %v4082
        %4520 = vmatmul.mubr.bf16.gmra.mrb[0].mxu0 %v4081
        %v4521 = vpop.f32.mrb[0].mxu0
        %v4522 = vadd.f32 0.0, %v4521
        %v4523 = vpop.f32.mrb[0].mxu0
        %v4524 = vpop.f32.mrb[0].mxu0
        %v4525 = vadd.f32 0.0, %v4524
        %v4526 = vpop.f32.mrb[0].mxu0
        %4527 = vmatprep.mubr.bf16.mxu0 %v4084
        %4528 = vmatmul.mubr.bf16.gmra.mrb[0].mxu0 %v4083
        %v4529 = vpop.f32.mrb[0].mxu0
        %v4530 = vadd.f32 0.0, %v4529
        %v4531 = vpop.f32.mrb[0].mxu0
        %v4532 = vpop.f32.mrb[0].mxu0
        %v4533 = vadd.f32 0.0, %v4532
        %v4534 = vpop.f32.mrb[0].mxu0
        %4535 = vmatprep.mubr.bf16.mxu0 %v4086
        %4536 = vmatmul.mubr.bf16.gmra.mrb[0].mxu0 %v4085
        %v4537 = vpop.f32.mrb[0].mxu0
        %v4538 = vadd.f32 0.0, %v4537
        %v4539 = vpop.f32.mrb[0].mxu0
        %v4540 = vpop.f32.mrb[0].mxu0
        %v4541 = vadd.f32 0.0, %v4540
        %v4542 = vpop.f32.mrb[0].mxu0
        %4543 = vmatprep.mubr.bf16.mxu0 %v4088
        %4544 = vmatmul.mubr.bf16.gmra.mrb[0].mxu0 %v4087
        %v4545 = vpop.f32.mrb[0].mxu0
        %v4546 = vadd.f32 0.0, %v4545
        %v4547 = vpop.f32.mrb[0].mxu0
        %v4548 = vpop.f32.mrb[0].mxu0
        %v4549 = vadd.f32 0.0, %v4548
        %v4550 = vpop.f32.mrb[0].mxu0
        %4551 = vmatprep.mubr.bf16.mxu0 %v4090
        %4552 = vmatmul.mubr.bf16.gmra.mrb[0].mxu0 %v4089
        %v4553 = vpop.f32.mrb[0].mxu0
        %v4554 = vadd.f32 0.0, %v4553
        %v4555 = vpop.f32.mrb[0].mxu0
        %v4556 = vpop.f32.mrb[0].mxu0
        %v4557 = vadd.f32 0.0, %v4556
        %v4558 = vpop.f32.mrb[0].mxu0
        %4559 = vmatprep.mubr.bf16.mxu0 %v4092
        %4560 = vmatmul.mubr.bf16.gmra.mrb[0].mxu0 %v4091
        %v4561 = vpop.f32.mrb[0].mxu0
        %v4562 = vadd.f32 0.0, %v4561
        %v4563 = vpop.f32.mrb[0].mxu0
        %v4564 = vpop.f32.mrb[0].mxu0
        %v4565 = vadd.f32 0.0, %v4564
        %v4566 = vpop.f32.mrb[0].mxu0
        %4567 = vmatprep.mubr.bf16.mxu0 %v4094
        %4568 = vmatmul.mubr.bf16.gmra.mrb[0].mxu0 %v4093
        %v4569 = vpop.f32.mrb[0].mxu0
        %v4570 = vadd.f32 0.0, %v4569
        %v4571 = vpop.f32.mrb[0].mxu0
        %v4572 = vpop.f32.mrb[0].mxu0
        %v4573 = vadd.f32 0.0, %v4572
        %v4574 = vpop.f32.mrb[0].mxu0
        %4575 = vmatprep.mubr.bf16.mxu0 %v4096
        %4576 = vmatmul.mubr.bf16.gmra.mrb[0].mxu0 %v4095
        %v4577 = vpop.f32.mrb[0].mxu0
        %v4578 = vadd.f32 0.0, %v4577
        %v4579 = vpop.f32.mrb[0].mxu0
        %v4580 = vpop.f32.mrb[0].mxu0
        %v4581 = vadd.f32 0.0, %v4580
        %v4582 = vpop.f32.mrb[0].mxu0
        %4583 = vdwg.mxu0
        %v4584 = vadd.s32 %v4132, 8
        %vm4585 = vcmp.eq.s32.totalorder %v4098, %v4584
        %vm4586 = vcmp.eq.s32.totalorder %v4099, %v4584
        %vm4587 = vcmp.eq.s32.totalorder %v4100, %v4584
        %vm4588 = vcmp.eq.s32.totalorder %v4101, %v4584
        %vm4589 = vcmp.eq.s32.totalorder %v4102, %v4584
        %vm4590 = vcmp.eq.s32.totalorder %v4103, %v4584
        %vm4591 = vcmp.eq.s32.totalorder %v4104, %v4584
        %vm4592 = vcmp.eq.s32.totalorder %v4105, %v4584
        %vm4593 = vcmp.eq.s32.totalorder %v4106, %v4584
        %vm4594 = vcmp.eq.s32.totalorder %v4107, %v4584
        %vm4595 = vcmp.eq.s32.totalorder %v4108, %v4584
        %vm4596 = vcmp.eq.s32.totalorder %v4109, %v4584
        %vm4597 = vcmp.eq.s32.totalorder %v4110, %v4584
        %vm4598 = vcmp.eq.s32.totalorder %v4111, %v4584
        %vm4599 = vcmp.eq.s32.totalorder %v4112, %v4584
        %vm4600 = vcmp.eq.s32.totalorder %v4113, %v4584
        %vm4601 = vcmp.eq.s32.totalorder %v4114, %v4584
        %vm4602 = vcmp.eq.s32.totalorder %v4115, %v4584
        %vm4603 = vcmp.eq.s32.totalorder %v4116, %v4584
        %vm4604 = vcmp.eq.s32.totalorder %v4117, %v4584
        %vm4605 = vcmp.eq.s32.totalorder %v4118, %v4584
        %vm4606 = vcmp.eq.s32.totalorder %v4119, %v4584
        %vm4607 = vcmp.eq.s32.totalorder %v4120, %v4584
        %vm4608 = vcmp.eq.s32.totalorder %v4121, %v4584
        %vm4609 = vcmp.eq.s32.totalorder %v4122, %v4584
        %vm4610 = vcmp.eq.s32.totalorder %v4123, %v4584
        %vm4611 = vcmp.eq.s32.totalorder %v4124, %v4584
        %vm4612 = vcmp.eq.s32.totalorder %v4125, %v4584
        %vm4613 = vcmp.eq.s32.totalorder %v4126, %v4584
        %vm4614 = vcmp.eq.s32.totalorder %v4127, %v4584
        %vm4615 = vcmp.eq.s32.totalorder %v4128, %v4584
        %vm4616 = vcmp.eq.s32.totalorder %v4129, %v4584
        %v4617 = vsel %vm4585, 1, 0
        %v4618 = vsel %vm4586, 1, 0
        %v4619 = vsel %vm4587, 1, 0
        %v4620 = vsel %vm4588, 1, 0
        %v4621 = vsel %vm4589, 1, 0
        %v4622 = vsel %vm4590, 1, 0
        %v4623 = vsel %vm4591, 1, 0
        %v4624 = vsel %vm4592, 1, 0
        %v4625 = vsel %vm4593, 1, 0
        %v4626 = vsel %vm4594, 1, 0
        %v4627 = vsel %vm4595, 1, 0
        %v4628 = vsel %vm4596, 1, 0
        %v4629 = vsel %vm4597, 1, 0
        %v4630 = vsel %vm4598, 1, 0
        %v4631 = vsel %vm4599, 1, 0
        %v4632 = vsel %vm4600, 1, 0
        %v4633 = vsel %vm4601, 1, 0
        %v4634 = vsel %vm4602, 1, 0
        %v4635 = vsel %vm4603, 1, 0
        %v4636 = vsel %vm4604, 1, 0
        %v4637 = vsel %vm4605, 1, 0
        %v4638 = vsel %vm4606, 1, 0
        %v4639 = vsel %vm4607, 1, 0
        %v4640 = vsel %vm4608, 1, 0
        %v4641 = vsel %vm4609, 1, 0
        %v4642 = vsel %vm4610, 1, 0
        %v4643 = vsel %vm4611, 1, 0
        %v4644 = vsel %vm4612, 1, 0
        %v4645 = vsel %vm4613, 1, 0
        %v4646 = vsel %vm4614, 1, 0
        %v4647 = vsel %vm4615, 1, 0
        %v4648 = vsel %vm4616, 1, 0
        %v4649 = vcvt.s32.f32 %v4617
        %v4650 = vcvt.s32.f32 %v4618
        %v4651 = vcvt.s32.f32 %v4619
        %v4652 = vcvt.s32.f32 %v4620
        %v4653 = vcvt.s32.f32 %v4621
        %v4654 = vcvt.s32.f32 %v4622
        %v4655 = vcvt.s32.f32 %v4623
        %v4656 = vcvt.s32.f32 %v4624
        %v4657 = vcvt.s32.f32 %v4625
        %v4658 = vcvt.s32.f32 %v4626
        %v4659 = vcvt.s32.f32 %v4627
        %v4660 = vcvt.s32.f32 %v4628
        %v4661 = vcvt.s32.f32 %v4629
        %v4662 = vcvt.s32.f32 %v4630
        %v4663 = vcvt.s32.f32 %v4631
        %v4664 = vcvt.s32.f32 %v4632
        %v4665 = vcvt.s32.f32 %v4633
        %v4666 = vcvt.s32.f32 %v4634
        %v4667 = vcvt.s32.f32 %v4635
        %v4668 = vcvt.s32.f32 %v4636
        %v4669 = vcvt.s32.f32 %v4637
        %v4670 = vcvt.s32.f32 %v4638
        %v4671 = vcvt.s32.f32 %v4639
        %v4672 = vcvt.s32.f32 %v4640
        %v4673 = vcvt.s32.f32 %v4641
        %v4674 = vcvt.s32.f32 %v4642
        %v4675 = vcvt.s32.f32 %v4643
        %v4676 = vcvt.s32.f32 %v4644
        %v4677 = vcvt.s32.f32 %v4645
        %v4678 = vcvt.s32.f32 %v4646
        %v4679 = vcvt.s32.f32 %v4647
        %v4680 = vcvt.s32.f32 %v4648
        %v4681 = vpack.c.bf16 %v4650, %v4649
        %v4682 = vpack.c.bf16 %v4652, %v4651
        %v4683 = vpack.c.bf16 %v4654, %v4653
        %v4684 = vpack.c.bf16 %v4656, %v4655
        %v4685 = vpack.c.bf16 %v4658, %v4657
        %v4686 = vpack.c.bf16 %v4660, %v4659
        %v4687 = vpack.c.bf16 %v4662, %v4661
        %v4688 = vpack.c.bf16 %v4664, %v4663
        %v4689 = vpack.c.bf16 %v4666, %v4665
        %v4690 = vpack.c.bf16 %v4668, %v4667
        %v4691 = vpack.c.bf16 %v4670, %v4669
        %v4692 = vpack.c.bf16 %v4672, %v4671
        %v4693 = vpack.c.bf16 %v4674, %v4673
        %v4694 = vpack.c.bf16 %v4676, %v4675
        %v4695 = vpack.c.bf16 %v4678, %v4677
        %v4696 = vpack.c.bf16 %v4680, %v4679
        %4697 = vmatprep.subr.bf16.mxu0 0
        %4698 = vmatpush1.bf16.msra.mxu0 %v4681
        %4699 = vmatprep.subr.bf16.mxu0 0
        %4700 = vmatpush1.bf16.msra.mxu0 %v4682
        %4701 = vmatprep.subr.bf16.mxu0 0
        %4702 = vmatpush1.bf16.msra.mxu0 %v4683
        %4703 = vmatprep.subr.bf16.mxu0 0
        %4704 = vmatpush1.bf16.msra.mxu0 %v4684
        %4705 = vmatprep.subr.bf16.mxu0 0
        %4706 = vmatpush1.bf16.msra.mxu0 %v4685
        %4707 = vmatprep.subr.bf16.mxu0 0
        %4708 = vmatpush1.bf16.msra.mxu0 %v4686
        %4709 = vmatprep.subr.bf16.mxu0 0
        %4710 = vmatpush1.bf16.msra.mxu0 %v4687
        %4711 = vmatprep.subr.bf16.mxu0 0
        %4712 = vmatpush1.bf16.msra.mxu0 %v4688
        %4713 = vmatprep.subr.bf16.mxu0 0
        %4714 = vmatpush1.bf16.msra.mxu0 %v4689
        %4715 = vmatprep.subr.bf16.mxu0 0
        %4716 = vmatpush1.bf16.msra.mxu0 %v4690
        %4717 = vmatprep.subr.bf16.mxu0 0
        %4718 = vmatpush1.bf16.msra.mxu0 %v4691
        %4719 = vmatprep.subr.bf16.mxu0 0
        %4720 = vmatpush1.bf16.msra.mxu0 %v4692
        %4721 = vmatprep.subr.bf16.mxu0 0
        %4722 = vmatpush1.bf16.msra.mxu0 %v4693
        %4723 = vmatprep.subr.bf16.mxu0 0
        %4724 = vmatpush1.bf16.msra.mxu0 %v4694
        %4725 = vmatprep.subr.bf16.mxu0 0
        %4726 = vmatpush1.bf16.msra.mxu0 %v4695
        %4727 = vmatprep.subr.bf16.mxu0 0
        %4728 = vmatpush1.bf16.msra.mxu0 %v4696
        %4729 = vmatprep.mubr.bf16.mxu0 %v4078
        %4730 = vmatmul.mubr.bf16.gmra.mrb[0].mxu0 %v4077
        %v4731 = vpop.f32.mrb[0].mxu0
        %v4732 = vadd.f32 0.0, %v4731
        %v4733 = vpop.f32.mrb[0].mxu0
        %v4734 = vpop.f32.mrb[0].mxu0
        %v4735 = vadd.f32 0.0, %v4734
        %v4736 = vpop.f32.mrb[0].mxu0
        %4737 = vmatprep.mubr.bf16.mxu0 %v4080
        %4738 = vmatmul.mubr.bf16.gmra.mrb[0].mxu0 %v4079
        %v4739 = vpop.f32.mrb[0].mxu0
        %v4740 = vadd.f32 0.0, %v4739
        %v4741 = vpop.f32.mrb[0].mxu0
        %v4742 = vpop.f32.mrb[0].mxu0
        %v4743 = vadd.f32 0.0, %v4742
        %v4744 = vpop.f32.mrb[0].mxu0
        %4745 = vmatprep.mubr.bf16.mxu0 %v4082
        %4746 = vmatmul.mubr.bf16.gmra.mrb[0].mxu0 %v4081
        %v4747 = vpop.f32.mrb[0].mxu0
        %v4748 = vadd.f32 0.0, %v4747
        %v4749 = vpop.f32.mrb[0].mxu0
        %v4750 = vpop.f32.mrb[0].mxu0
        %v4751 = vadd.f32 0.0, %v4750
        %v4752 = vpop.f32.mrb[0].mxu0
        %4753 = vmatprep.mubr.bf16.mxu0 %v4084
        %4754 = vmatmul.mubr.bf16.gmra.mrb[0].mxu0 %v4083
        %v4755 = vpop.f32.mrb[0].mxu0
        %v4756 = vadd.f32 0.0, %v4755
        %v4757 = vpop.f32.mrb[0].mxu0
        %v4758 = vpop.f32.mrb[0].mxu0
        %v4759 = vadd.f32 0.0, %v4758
        %v4760 = vpop.f32.mrb[0].mxu0
        %4761 = vmatprep.mubr.bf16.mxu0 %v4086
        %4762 = vmatmul.mubr.bf16.gmra.mrb[0].mxu0 %v4085
        %v4763 = vpop.f32.mrb[0].mxu0
        %v4764 = vadd.f32 0.0, %v4763
        %v4765 = vpop.f32.mrb[0].mxu0
        %v4766 = vpop.f32.mrb[0].mxu0
        %v4767 = vadd.f32 0.0, %v4766
        %v4768 = vpop.f32.mrb[0].mxu0
        %4769 = vmatprep.mubr.bf16.mxu0 %v4088
        %4770 = vmatmul.mubr.bf16.gmra.mrb[0].mxu0 %v4087
        %v4771 = vpop.f32.mrb[0].mxu0
        %v4772 = vadd.f32 0.0, %v4771
        %v4773 = vpop.f32.mrb[0].mxu0
        %v4774 = vpop.f32.mrb[0].mxu0
        %v4775 = vadd.f32 0.0, %v4774
        %v4776 = vpop.f32.mrb[0].mxu0
        %4777 = vmatprep.mubr.bf16.mxu0 %v4090
        %4778 = vmatmul.mubr.bf16.gmra.mrb[0].mxu0 %v4089
        %v4779 = vpop.f32.mrb[0].mxu0
        %v4780 = vadd.f32 0.0, %v4779
        %v4781 = vpop.f32.mrb[0].mxu0
        %v4782 = vpop.f32.mrb[0].mxu0
        %v4783 = vadd.f32 0.0, %v4782
        %v4784 = vpop.f32.mrb[0].mxu0
        %4785 = vmatprep.mubr.bf16.mxu0 %v4092
        %4786 = vmatmul.mubr.bf16.gmra.mrb[0].mxu0 %v4091
        %v4787 = vpop.f32.mrb[0].mxu0
        %v4788 = vadd.f32 0.0, %v4787
        %v4789 = vpop.f32.mrb[0].mxu0
        %v4790 = vpop.f32.mrb[0].mxu0
        %v4791 = vadd.f32 0.0, %v4790
        %v4792 = vpop.f32.mrb[0].mxu0
        %4793 = vmatprep.mubr.bf16.mxu0 %v4094
        %4794 = vmatmul.mubr.bf16.gmra.mrb[0].mxu0 %v4093
        %v4795 = vpop.f32.mrb[0].mxu0
        %v4796 = vadd.f32 0.0, %v4795
        %v4797 = vpop.f32.mrb[0].mxu0
        %v4798 = vpop.f32.mrb[0].mxu0
        %v4799 = vadd.f32 0.0, %v4798
        %v4800 = vpop.f32.mrb[0].mxu0
        %4801 = vmatprep.mubr.bf16.mxu0 %v4096
        %4802 = vmatmul.mubr.bf16.gmra.mrb[0].mxu0 %v4095
        %v4803 = vpop.f32.mrb[0].mxu0
        %v4804 = vadd.f32 0.0, %v4803
        %v4805 = vpop.f32.mrb[0].mxu0
        %v4806 = vpop.f32.mrb[0].mxu0
        %v4807 = vadd.f32 0.0, %v4806
        %v4808 = vpop.f32.mrb[0].mxu0
        %4809 = vdwg.mxu0
        %v4810 = vadd.s32 %v4132, 12
        %vm4811 = vcmp.eq.s32.totalorder %v4098, %v4810
        %vm4812 = vcmp.eq.s32.totalorder %v4099, %v4810
        %vm4813 = vcmp.eq.s32.totalorder %v4100, %v4810
        %vm4814 = vcmp.eq.s32.totalorder %v4101, %v4810
        %vm4815 = vcmp.eq.s32.totalorder %v4102, %v4810
        %vm4816 = vcmp.eq.s32.totalorder %v4103, %v4810
        %vm4817 = vcmp.eq.s32.totalorder %v4104, %v4810
        %vm4818 = vcmp.eq.s32.totalorder %v4105, %v4810
        %vm4819 = vcmp.eq.s32.totalorder %v4106, %v4810
        %vm4820 = vcmp.eq.s32.totalorder %v4107, %v4810
        %vm4821 = vcmp.eq.s32.totalorder %v4108, %v4810
        %vm4822 = vcmp.eq.s32.totalorder %v4109, %v4810
        %vm4823 = vcmp.eq.s32.totalorder %v4110, %v4810
        %vm4824 = vcmp.eq.s32.totalorder %v4111, %v4810
        %vm4825 = vcmp.eq.s32.totalorder %v4112, %v4810
        %vm4826 = vcmp.eq.s32.totalorder %v4113, %v4810
        %vm4827 = vcmp.eq.s32.totalorder %v4114, %v4810
        %vm4828 = vcmp.eq.s32.totalorder %v4115, %v4810
        %vm4829 = vcmp.eq.s32.totalorder %v4116, %v4810
        %vm4830 = vcmp.eq.s32.totalorder %v4117, %v4810
        %vm4831 = vcmp.eq.s32.totalorder %v4118, %v4810
        %vm4832 = vcmp.eq.s32.totalorder %v4119, %v4810
        %vm4833 = vcmp.eq.s32.totalorder %v4120, %v4810
        %vm4834 = vcmp.eq.s32.totalorder %v4121, %v4810
        %vm4835 = vcmp.eq.s32.totalorder %v4122, %v4810
        %vm4836 = vcmp.eq.s32.totalorder %v4123, %v4810
        %vm4837 = vcmp.eq.s32.totalorder %v4124, %v4810
        %vm4838 = vcmp.eq.s32.totalorder %v4125, %v4810
        %vm4839 = vcmp.eq.s32.totalorder %v4126, %v4810
        %vm4840 = vcmp.eq.s32.totalorder %v4127, %v4810
        %vm4841 = vcmp.eq.s32.totalorder %v4128, %v4810
        %vm4842 = vcmp.eq.s32.totalorder %v4129, %v4810
        %v4843 = vsel %vm4811, 1, 0
        %v4844 = vsel %vm4812, 1, 0
        %v4845 = vsel %vm4813, 1, 0
        %v4846 = vsel %vm4814, 1, 0
        %v4847 = vsel %vm4815, 1, 0
        %v4848 = vsel %vm4816, 1, 0
        %v4849 = vsel %vm4817, 1, 0
        %v4850 = vsel %vm4818, 1, 0
        %v4851 = vsel %vm4819, 1, 0
        %v4852 = vsel %vm4820, 1, 0
        %v4853 = vsel %vm4821, 1, 0
        %v4854 = vsel %vm4822, 1, 0
        %v4855 = vsel %vm4823, 1, 0
        %v4856 = vsel %vm4824, 1, 0
        %v4857 = vsel %vm4825, 1, 0
        %v4858 = vsel %vm4826, 1, 0
        %v4859 = vsel %vm4827, 1, 0
        %v4860 = vsel %vm4828, 1, 0
        %v4861 = vsel %vm4829, 1, 0
        %v4862 = vsel %vm4830, 1, 0
        %v4863 = vsel %vm4831, 1, 0
        %v4864 = vsel %vm4832, 1, 0
        %v4865 = vsel %vm4833, 1, 0
        %v4866 = vsel %vm4834, 1, 0
        %v4867 = vsel %vm4835, 1, 0
        %v4868 = vsel %vm4836, 1, 0
        %v4869 = vsel %vm4837, 1, 0
        %v4870 = vsel %vm4838, 1, 0
        %v4871 = vsel %vm4839, 1, 0
        %v4872 = vsel %vm4840, 1, 0
        %v4873 = vsel %vm4841, 1, 0
        %v4874 = vsel %vm4842, 1, 0
        %v4875 = vcvt.s32.f32 %v4843
        %v4876 = vcvt.s32.f32 %v4844
        %v4877 = vcvt.s32.f32 %v4845
        %v4878 = vcvt.s32.f32 %v4846
        %v4879 = vcvt.s32.f32 %v4847
        %v4880 = vcvt.s32.f32 %v4848
        %v4881 = vcvt.s32.f32 %v4849
        %v4882 = vcvt.s32.f32 %v4850
        %v4883 = vcvt.s32.f32 %v4851
        %v4884 = vcvt.s32.f32 %v4852
        %v4885 = vcvt.s32.f32 %v4853
        %v4886 = vcvt.s32.f32 %v4854
        %v4887 = vcvt.s32.f32 %v4855
        %v4888 = vcvt.s32.f32 %v4856
        %v4889 = vcvt.s32.f32 %v4857
        %v4890 = vcvt.s32.f32 %v4858
        %v4891 = vcvt.s32.f32 %v4859
        %v4892 = vcvt.s32.f32 %v4860
        %v4893 = vcvt.s32.f32 %v4861
        %v4894 = vcvt.s32.f32 %v4862
        %v4895 = vcvt.s32.f32 %v4863
        %v4896 = vcvt.s32.f32 %v4864
        %v4897 = vcvt.s32.f32 %v4865
        %v4898 = vcvt.s32.f32 %v4866
        %v4899 = vcvt.s32.f32 %v4867
        %v4900 = vcvt.s32.f32 %v4868
        %v4901 = vcvt.s32.f32 %v4869
        %v4902 = vcvt.s32.f32 %v4870
        %v4903 = vcvt.s32.f32 %v4871
        %v4904 = vcvt.s32.f32 %v4872
        %v4905 = vcvt.s32.f32 %v4873
        %v4906 = vcvt.s32.f32 %v4874
        %v4907 = vpack.c.bf16 %v4876, %v4875
        %v4908 = vpack.c.bf16 %v4878, %v4877
        %v4909 = vpack.c.bf16 %v4880, %v4879
        %v4910 = vpack.c.bf16 %v4882, %v4881
        %v4911 = vpack.c.bf16 %v4884, %v4883
        %v4912 = vpack.c.bf16 %v4886, %v4885
        %v4913 = vpack.c.bf16 %v4888, %v4887
        %v4914 = vpack.c.bf16 %v4890, %v4889
        %v4915 = vpack.c.bf16 %v4892, %v4891
        %v4916 = vpack.c.bf16 %v4894, %v4893
        %v4917 = vpack.c.bf16 %v4896, %v4895
        %v4918 = vpack.c.bf16 %v4898, %v4897
        %v4919 = vpack.c.bf16 %v4900, %v4899
        %v4920 = vpack.c.bf16 %v4902, %v4901
        %v4921 = vpack.c.bf16 %v4904, %v4903
        %v4922 = vpack.c.bf16 %v4906, %v4905
        %4923 = vmatprep.subr.bf16.mxu0 0
        %4924 = vmatpush1.bf16.msra.mxu0 %v4907
        %4925 = vmatprep.subr.bf16.mxu0 0
        %4926 = vmatpush1.bf16.msra.mxu0 %v4908
        %4927 = vmatprep.subr.bf16.mxu0 0
        %4928 = vmatpush1.bf16.msra.mxu0 %v4909
        %4929 = vmatprep.subr.bf16.mxu0 0
        %4930 = vmatpush1.bf16.msra.mxu0 %v4910
        %4931 = vmatprep.subr.bf16.mxu0 0
        %4932 = vmatpush1.bf16.msra.mxu0 %v4911
        %4933 = vmatprep.subr.bf16.mxu0 0
        %4934 = vmatpush1.bf16.msra.mxu0 %v4912
        %4935 = vmatprep.subr.bf16.mxu0 0
        %4936 = vmatpush1.bf16.msra.mxu0 %v4913
        %4937 = vmatprep.subr.bf16.mxu0 0
        %4938 = vmatpush1.bf16.msra.mxu0 %v4914
        %4939 = vmatprep.subr.bf16.mxu0 0
        %4940 = vmatpush1.bf16.msra.mxu0 %v4915
        %4941 = vmatprep.subr.bf16.mxu0 0
        %4942 = vmatpush1.bf16.msra.mxu0 %v4916
        %4943 = vmatprep.subr.bf16.mxu0 0
        %4944 = vmatpush1.bf16.msra.mxu0 %v4917
        %4945 = vmatprep.subr.bf16.mxu0 0
        %4946 = vmatpush1.bf16.msra.mxu0 %v4918
        %4947 = vmatprep.subr.bf16.mxu0 0
        %4948 = vmatpush1.bf16.msra.mxu0 %v4919
        %4949 = vmatprep.subr.bf16.mxu0 0
        %4950 = vmatpush1.bf16.msra.mxu0 %v4920
        %4951 = vmatprep.subr.bf16.mxu0 0
        %4952 = vmatpush1.bf16.msra.mxu0 %v4921
        %4953 = vmatprep.subr.bf16.mxu0 0
        %4954 = vmatpush1.bf16.msra.mxu0 %v4922
        %4955 = vmatprep.mubr.bf16.mxu0 %v4078
        %4956 = vmatmul.mubr.bf16.gmra.mrb[0].mxu0 %v4077
        %v4957 = vpop.f32.mrb[0].mxu0
        %v4958 = vadd.f32 0.0, %v4957
        %v4959 = vpop.f32.mrb[0].mxu0
        %v4960 = vpop.f32.mrb[0].mxu0
        %v4961 = vadd.f32 0.0, %v4960
        %v4962 = vpop.f32.mrb[0].mxu0
        %4963 = vmatprep.mubr.bf16.mxu0 %v4080
        %4964 = vmatmul.mubr.bf16.gmra.mrb[0].mxu0 %v4079
        %v4965 = vpop.f32.mrb[0].mxu0
        %v4966 = vadd.f32 0.0, %v4965
        %v4967 = vpop.f32.mrb[0].mxu0
        %v4968 = vpop.f32.mrb[0].mxu0
        %v4969 = vadd.f32 0.0, %v4968
        %v4970 = vpop.f32.mrb[0].mxu0
        %4971 = vmatprep.mubr.bf16.mxu0 %v4082
        %4972 = vmatmul.mubr.bf16.gmra.mrb[0].mxu0 %v4081
        %v4973 = vpop.f32.mrb[0].mxu0
        %v4974 = vadd.f32 0.0, %v4973
        %v4975 = vpop.f32.mrb[0].mxu0
        %v4976 = vpop.f32.mrb[0].mxu0
        %v4977 = vadd.f32 0.0, %v4976
        %v4978 = vpop.f32.mrb[0].mxu0
        %4979 = vmatprep.mubr.bf16.mxu0 %v4084
        %4980 = vmatmul.mubr.bf16.gmra.mrb[0].mxu0 %v4083
        %v4981 = vpop.f32.mrb[0].mxu0
        %v4982 = vadd.f32 0.0, %v4981
        %v4983 = vpop.f32.mrb[0].mxu0
        %v4984 = vpop.f32.mrb[0].mxu0
        %v4985 = vadd.f32 0.0, %v4984
        %v4986 = vpop.f32.mrb[0].mxu0
        %4987 = vmatprep.mubr.bf16.mxu0 %v4086
        %4988 = vmatmul.mubr.bf16.gmra.mrb[0].mxu0 %v4085
        %v4989 = vpop.f32.mrb[0].mxu0
        %v4990 = vadd.f32 0.0, %v4989
        %v4991 = vpop.f32.mrb[0].mxu0
        %v4992 = vpop.f32.mrb[0].mxu0
        %v4993 = vadd.f32 0.0, %v4992
        %v4994 = vpop.f32.mrb[0].mxu0
        %4995 = vmatprep.mubr.bf16.mxu0 %v4088
        %4996 = vmatmul.mubr.bf16.gmra.mrb[0].mxu0 %v4087
        %v4997 = vpop.f32.mrb[0].mxu0
        %v4998 = vadd.f32 0.0, %v4997
        %v4999 = vpop.f32.mrb[0].mxu0
        %v5000 = vpop.f32.mrb[0].mxu0
        %v5001 = vadd.f32 0.0, %v5000
        %v5002 = vpop.f32.mrb[0].mxu0
        %5003 = vmatprep.mubr.bf16.mxu0 %v4090
        %5004 = vmatmul.mubr.bf16.gmra.mrb[0].mxu0 %v4089
        %v5005 = vpop.f32.mrb[0].mxu0
        %v5006 = vadd.f32 0.0, %v5005
        %v5007 = vpop.f32.mrb[0].mxu0
        %v5008 = vpop.f32.mrb[0].mxu0
        %v5009 = vadd.f32 0.0, %v5008
        %v5010 = vpop.f32.mrb[0].mxu0
        %5011 = vmatprep.mubr.bf16.mxu0 %v4092
        %5012 = vmatmul.mubr.bf16.gmra.mrb[0].mxu0 %v4091
        %v5013 = vpop.f32.mrb[0].mxu0
        %v5014 = vadd.f32 0.0, %v5013
        %v5015 = vpop.f32.mrb[0].mxu0
        %v5016 = vpop.f32.mrb[0].mxu0
        %v5017 = vadd.f32 0.0, %v5016
        %v5018 = vpop.f32.mrb[0].mxu0
        %5019 = vmatprep.mubr.bf16.mxu0 %v4094
        %5020 = vmatmul.mubr.bf16.gmra.mrb[0].mxu0 %v4093
        %v5021 = vpop.f32.mrb[0].mxu0
        %v5022 = vadd.f32 0.0, %v5021
        %v5023 = vpop.f32.mrb[0].mxu0
        %v5024 = vpop.f32.mrb[0].mxu0
        %v5025 = vadd.f32 0.0, %v5024
        %v5026 = vpop.f32.mrb[0].mxu0
        %5027 = vmatprep.mubr.bf16.mxu0 %v4096
        %5028 = vmatmul.mubr.bf16.gmra.mrb[0].mxu0 %v4095
        %v5029 = vpop.f32.mrb[0].mxu0
        %v5030 = vadd.f32 0.0, %v5029
        %v5031 = vpop.f32.mrb[0].mxu0
        %v5032 = vpop.f32.mrb[0].mxu0
        %v5033 = vadd.f32 0.0, %v5032
        %v5034 = vpop.f32.mrb[0].mxu0
        %5035 = vdwg.mxu0
        %v5036 = vadd.s32 %v4132, 16
        %vm5037 = vcmp.eq.s32.totalorder %v4098, %v5036
        %vm5038 = vcmp.eq.s32.totalorder %v4099, %v5036
        %vm5039 = vcmp.eq.s32.totalorder %v4100, %v5036
        %vm5040 = vcmp.eq.s32.totalorder %v4101, %v5036
        %vm5041 = vcmp.eq.s32.totalorder %v4102, %v5036
        %vm5042 = vcmp.eq.s32.totalorder %v4103, %v5036
        %vm5043 = vcmp.eq.s32.totalorder %v4104, %v5036
        %vm5044 = vcmp.eq.s32.totalorder %v4105, %v5036
        %vm5045 = vcmp.eq.s32.totalorder %v4106, %v5036
        %vm5046 = vcmp.eq.s32.totalorder %v4107, %v5036
        %vm5047 = vcmp.eq.s32.totalorder %v4108, %v5036
        %vm5048 = vcmp.eq.s32.totalorder %v4109, %v5036
        %vm5049 = vcmp.eq.s32.totalorder %v4110, %v5036
        %vm5050 = vcmp.eq.s32.totalorder %v4111, %v5036
        %vm5051 = vcmp.eq.s32.totalorder %v4112, %v5036
        %vm5052 = vcmp.eq.s32.totalorder %v4113, %v5036
        %vm5053 = vcmp.eq.s32.totalorder %v4114, %v5036
        %vm5054 = vcmp.eq.s32.totalorder %v4115, %v5036
        %vm5055 = vcmp.eq.s32.totalorder %v4116, %v5036
        %vm5056 = vcmp.eq.s32.totalorder %v4117, %v5036
        %vm5057 = vcmp.eq.s32.totalorder %v4118, %v5036
        %vm5058 = vcmp.eq.s32.totalorder %v4119, %v5036
        %vm5059 = vcmp.eq.s32.totalorder %v4120, %v5036
        %vm5060 = vcmp.eq.s32.totalorder %v4121, %v5036
        %vm5061 = vcmp.eq.s32.totalorder %v4122, %v5036
        %vm5062 = vcmp.eq.s32.totalorder %v4123, %v5036
        %vm5063 = vcmp.eq.s32.totalorder %v4124, %v5036
        %vm5064 = vcmp.eq.s32.totalorder %v4125, %v5036
        %vm5065 = vcmp.eq.s32.totalorder %v4126, %v5036
        %vm5066 = vcmp.eq.s32.totalorder %v4127, %v5036
        %vm5067 = vcmp.eq.s32.totalorder %v4128, %v5036
        %vm5068 = vcmp.eq.s32.totalorder %v4129, %v5036
        %v5069 = vsel %vm5037, 1, 0
        %v5070 = vsel %vm5038, 1, 0
        %v5071 = vsel %vm5039, 1, 0
        %v5072 = vsel %vm5040, 1, 0
        %v5073 = vsel %vm5041, 1, 0
        %v5074 = vsel %vm5042, 1, 0
        %v5075 = vsel %vm5043, 1, 0
        %v5076 = vsel %vm5044, 1, 0
        %v5077 = vsel %vm5045, 1, 0
        %v5078 = vsel %vm5046, 1, 0
        %v5079 = vsel %vm5047, 1, 0
        %v5080 = vsel %vm5048, 1, 0
        %v5081 = vsel %vm5049, 1, 0
        %v5082 = vsel %vm5050, 1, 0
        %v5083 = vsel %vm5051, 1, 0
        %v5084 = vsel %vm5052, 1, 0
        %v5085 = vsel %vm5053, 1, 0
        %v5086 = vsel %vm5054, 1, 0
        %v5087 = vsel %vm5055, 1, 0
        %v5088 = vsel %vm5056, 1, 0
        %v5089 = vsel %vm5057, 1, 0
        %v5090 = vsel %vm5058, 1, 0
        %v5091 = vsel %vm5059, 1, 0
        %v5092 = vsel %vm5060, 1, 0
        %v5093 = vsel %vm5061, 1, 0
        %v5094 = vsel %vm5062, 1, 0
        %v5095 = vsel %vm5063, 1, 0
        %v5096 = vsel %vm5064, 1, 0
        %v5097 = vsel %vm5065, 1, 0
        %v5098 = vsel %vm5066, 1, 0
        %v5099 = vsel %vm5067, 1, 0
        %v5100 = vsel %vm5068, 1, 0
        %v5101 = vcvt.s32.f32 %v5069
        %v5102 = vcvt.s32.f32 %v5070
        %v5103 = vcvt.s32.f32 %v5071
        %v5104 = vcvt.s32.f32 %v5072
        %v5105 = vcvt.s32.f32 %v5073
        %v5106 = vcvt.s32.f32 %v5074
        %v5107 = vcvt.s32.f32 %v5075
        %v5108 = vcvt.s32.f32 %v5076
        %v5109 = vcvt.s32.f32 %v5077
        %v5110 = vcvt.s32.f32 %v5078
        %v5111 = vcvt.s32.f32 %v5079
        %v5112 = vcvt.s32.f32 %v5080
        %v5113 = vcvt.s32.f32 %v5081
        %v5114 = vcvt.s32.f32 %v5082
        %v5115 = vcvt.s32.f32 %v5083
        %v5116 = vcvt.s32.f32 %v5084
        %v5117 = vcvt.s32.f32 %v5085
        %v5118 = vcvt.s32.f32 %v5086
        %v5119 = vcvt.s32.f32 %v5087
        %v5120 = vcvt.s32.f32 %v5088
        %v5121 = vcvt.s32.f32 %v5089
        %v5122 = vcvt.s32.f32 %v5090
        %v5123 = vcvt.s32.f32 %v5091
        %v5124 = vcvt.s32.f32 %v5092
        %v5125 = vcvt.s32.f32 %v5093
        %v5126 = vcvt.s32.f32 %v5094
        %v5127 = vcvt.s32.f32 %v5095
        %v5128 = vcvt.s32.f32 %v5096
        %v5129 = vcvt.s32.f32 %v5097
        %v5130 = vcvt.s32.f32 %v5098
        %v5131 = vcvt.s32.f32 %v5099
        %v5132 = vcvt.s32.f32 %v5100
        %v5133 = vpack.c.bf16 %v5102, %v5101
        %v5134 = vpack.c.bf16 %v5104, %v5103
        %v5135 = vpack.c.bf16 %v5106, %v5105
        %v5136 = vpack.c.bf16 %v5108, %v5107
        %v5137 = vpack.c.bf16 %v5110, %v5109
        %v5138 = vpack.c.bf16 %v5112, %v5111
        %v5139 = vpack.c.bf16 %v5114, %v5113
        %v5140 = vpack.c.bf16 %v5116, %v5115
        %v5141 = vpack.c.bf16 %v5118, %v5117
        %v5142 = vpack.c.bf16 %v5120, %v5119
        %v5143 = vpack.c.bf16 %v5122, %v5121
        %v5144 = vpack.c.bf16 %v5124, %v5123
        %v5145 = vpack.c.bf16 %v5126, %v5125
        %v5146 = vpack.c.bf16 %v5128, %v5127
        %v5147 = vpack.c.bf16 %v5130, %v5129
        %v5148 = vpack.c.bf16 %v5132, %v5131
        %5149 = vmatprep.subr.bf16.mxu0 0
        %5150 = vmatpush1.bf16.msra.mxu0 %v5133
        %5151 = vmatprep.subr.bf16.mxu0 0
        %5152 = vmatpush1.bf16.msra.mxu0 %v5134
        %5153 = vmatprep.subr.bf16.mxu0 0
        %5154 = vmatpush1.bf16.msra.mxu0 %v5135
        %5155 = vmatprep.subr.bf16.mxu0 0
        %5156 = vmatpush1.bf16.msra.mxu0 %v5136
        %5157 = vmatprep.subr.bf16.mxu0 0
        %5158 = vmatpush1.bf16.msra.mxu0 %v5137
        %5159 = vmatprep.subr.bf16.mxu0 0
        %5160 = vmatpush1.bf16.msra.mxu0 %v5138
        %5161 = vmatprep.subr.bf16.mxu0 0
        %5162 = vmatpush1.bf16.msra.mxu0 %v5139
        %5163 = vmatprep.subr.bf16.mxu0 0
        %5164 = vmatpush1.bf16.msra.mxu0 %v5140
        %5165 = vmatprep.subr.bf16.mxu0 0
        %5166 = vmatpush1.bf16.msra.mxu0 %v5141
        %5167 = vmatprep.subr.bf16.mxu0 0
        %5168 = vmatpush1.bf16.msra.mxu0 %v5142
        %5169 = vmatprep.subr.bf16.mxu0 0
        %5170 = vmatpush1.bf16.msra.mxu0 %v5143
        %5171 = vmatprep.subr.bf16.mxu0 0
        %5172 = vmatpush1.bf16.msra.mxu0 %v5144
        %5173 = vmatprep.subr.bf16.mxu0 0
        %5174 = vmatpush1.bf16.msra.mxu0 %v5145
        %5175 = vmatprep.subr.bf16.mxu0 0
        %5176 = vmatpush1.bf16.msra.mxu0 %v5146
        %5177 = vmatprep.subr.bf16.mxu0 0
        %5178 = vmatpush1.bf16.msra.mxu0 %v5147
        %5179 = vmatprep.subr.bf16.mxu0 0
        %5180 = vmatpush1.bf16.msra.mxu0 %v5148
        %5181 = vmatprep.mubr.bf16.mxu0 %v4078
        %5182 = vmatmul.mubr.bf16.gmra.mrb[0].mxu0 %v4077
        %v5183 = vpop.f32.mrb[0].mxu0
        %v5184 = vadd.f32 0.0, %v5183
        %v5185 = vpop.f32.mrb[0].mxu0
        %v5186 = vpop.f32.mrb[0].mxu0
        %v5187 = vadd.f32 0.0, %v5186
        %v5188 = vpop.f32.mrb[0].mxu0
        %5189 = vmatprep.mubr.bf16.mxu0 %v4080
        %5190 = vmatmul.mubr.bf16.gmra.mrb[0].mxu0 %v4079
        %v5191 = vpop.f32.mrb[0].mxu0
        %v5192 = vadd.f32 0.0, %v5191
        %v5193 = vpop.f32.mrb[0].mxu0
        %v5194 = vpop.f32.mrb[0].mxu0
        %v5195 = vadd.f32 0.0, %v5194
        %v5196 = vpop.f32.mrb[0].mxu0
        %5197 = vmatprep.mubr.bf16.mxu0 %v4082
        %5198 = vmatmul.mubr.bf16.gmra.mrb[0].mxu0 %v4081
        %v5199 = vpop.f32.mrb[0].mxu0
        %v5200 = vadd.f32 0.0, %v5199
        %v5201 = vpop.f32.mrb[0].mxu0
        %v5202 = vpop.f32.mrb[0].mxu0
        %v5203 = vadd.f32 0.0, %v5202
        %v5204 = vpop.f32.mrb[0].mxu0
        %5205 = vmatprep.mubr.bf16.mxu0 %v4084
        %5206 = vmatmul.mubr.bf16.gmra.mrb[0].mxu0 %v4083
        %v5207 = vpop.f32.mrb[0].mxu0
        %v5208 = vadd.f32 0.0, %v5207
        %v5209 = vpop.f32.mrb[0].mxu0
        %v5210 = vpop.f32.mrb[0].mxu0
        %v5211 = vadd.f32 0.0, %v5210
        %v5212 = vpop.f32.mrb[0].mxu0
        %5213 = vmatprep.mubr.bf16.mxu0 %v4086
        %5214 = vmatmul.mubr.bf16.gmra.mrb[0].mxu0 %v4085
        %v5215 = vpop.f32.mrb[0].mxu0
        %v5216 = vadd.f32 0.0, %v5215
        %v5217 = vpop.f32.mrb[0].mxu0
        %v5218 = vpop.f32.mrb[0].mxu0
        %v5219 = vadd.f32 0.0, %v5218
        %v5220 = vpop.f32.mrb[0].mxu0
        %5221 = vmatprep.mubr.bf16.mxu0 %v4088
        %5222 = vmatmul.mubr.bf16.gmra.mrb[0].mxu0 %v4087
        %v5223 = vpop.f32.mrb[0].mxu0
        %v5224 = vadd.f32 0.0, %v5223
        %v5225 = vpop.f32.mrb[0].mxu0
        %v5226 = vpop.f32.mrb[0].mxu0
        %v5227 = vadd.f32 0.0, %v5226
        %v5228 = vpop.f32.mrb[0].mxu0
        %5229 = vmatprep.mubr.bf16.mxu0 %v4090
        %5230 = vmatmul.mubr.bf16.gmra.mrb[0].mxu0 %v4089
        %v5231 = vpop.f32.mrb[0].mxu0
        %v5232 = vadd.f32 0.0, %v5231
        %v5233 = vpop.f32.mrb[0].mxu0
        %v5234 = vpop.f32.mrb[0].mxu0
        %v5235 = vadd.f32 0.0, %v5234
        %v5236 = vpop.f32.mrb[0].mxu0
        %5237 = vmatprep.mubr.bf16.mxu0 %v4092
        %5238 = vmatmul.mubr.bf16.gmra.mrb[0].mxu0 %v4091
        %v5239 = vpop.f32.mrb[0].mxu0
        %v5240 = vadd.f32 0.0, %v5239
        %v5241 = vpop.f32.mrb[0].mxu0
        %v5242 = vpop.f32.mrb[0].mxu0
        %v5243 = vadd.f32 0.0, %v5242
        %v5244 = vpop.f32.mrb[0].mxu0
        %5245 = vmatprep.mubr.bf16.mxu0 %v4094
        %5246 = vmatmul.mubr.bf16.gmra.mrb[0].mxu0 %v4093
        %v5247 = vpop.f32.mrb[0].mxu0
        %v5248 = vadd.f32 0.0, %v5247
        %v5249 = vpop.f32.mrb[0].mxu0
        %v5250 = vpop.f32.mrb[0].mxu0
        %v5251 = vadd.f32 0.0, %v5250
        %v5252 = vpop.f32.mrb[0].mxu0
        %5253 = vmatprep.mubr.bf16.mxu0 %v4096
        %5254 = vmatmul.mubr.bf16.gmra.mrb[0].mxu0 %v4095
        %v5255 = vpop.f32.mrb[0].mxu0
        %v5256 = vadd.f32 0.0, %v5255
        %v5257 = vpop.f32.mrb[0].mxu0
        %v5258 = vpop.f32.mrb[0].mxu0
        %v5259 = vadd.f32 0.0, %v5258
        %v5260 = vpop.f32.mrb[0].mxu0
        %5261 = vdwg.mxu0
        %v5262 = vpack.c.bf16 %v4283, %v4280
        %v5263 = vpack.c.bf16 %v4291, %v4288
        %v5264 = vpack.c.bf16 %v4299, %v4296
        %v5265 = vpack.c.bf16 %v4307, %v4304
        %v5266 = vpack.c.bf16 %v4315, %v4312
        %v5267 = vpack.c.bf16 %v4323, %v4320
        %v5268 = vpack.c.bf16 %v4331, %v4328
        %v5269 = vpack.c.bf16 %v4339, %v4336
        %v5270 = vpack.c.bf16 %v4347, %v4344
        %v5271 = vpack.c.bf16 %v4355, %v4352
        %v5272 = vpack.c.bf16 %v4509, %v4506
        %v5273 = vpack.c.bf16 %v4517, %v4514
        %v5274 = vpack.c.bf16 %v4525, %v4522
        %v5275 = vpack.c.bf16 %v4533, %v4530
        %v5276 = vpack.c.bf16 %v4541, %v4538
        %v5277 = vpack.c.bf16 %v4549, %v4546
        %v5278 = vpack.c.bf16 %v4557, %v4554
        %v5279 = vpack.c.bf16 %v4565, %v4562
        %v5280 = vpack.c.bf16 %v4573, %v4570
        %v5281 = vpack.c.bf16 %v4581, %v4578
        %v5282 = vpack.c.bf16 %v4735, %v4732
        %v5283 = vpack.c.bf16 %v4743, %v4740
        %v5284 = vpack.c.bf16 %v4751, %v4748
        %v5285 = vpack.c.bf16 %v4759, %v4756
        %v5286 = vpack.c.bf16 %v4767, %v4764
        %v5287 = vpack.c.bf16 %v4775, %v4772
        %v5288 = vpack.c.bf16 %v4783, %v4780
        %v5289 = vpack.c.bf16 %v4791, %v4788
        %v5290 = vpack.c.bf16 %v4799, %v4796
        %v5291 = vpack.c.bf16 %v4807, %v4804
        %v5292 = vpack.c.bf16 %v4961, %v4958
        %v5293 = vpack.c.bf16 %v4969, %v4966
        %v5294 = vpack.c.bf16 %v4977, %v4974
        %v5295 = vpack.c.bf16 %v4985, %v4982
        %v5296 = vpack.c.bf16 %v4993, %v4990
        %v5297 = vpack.c.bf16 %v5001, %v4998
        %v5298 = vpack.c.bf16 %v5009, %v5006
        %v5299 = vpack.c.bf16 %v5017, %v5014
        %v5300 = vpack.c.bf16 %v5025, %v5022
        %v5301 = vpack.c.bf16 %v5033, %v5030
        %v5302 = vpack.c.bf16 %v5187, %v5184
        %v5303 = vpack.c.bf16 %v5195, %v5192
        %v5304 = vpack.c.bf16 %v5203, %v5200
        %v5305 = vpack.c.bf16 %v5211, %v5208
        %v5306 = vpack.c.bf16 %v5219, %v5216
        %v5307 = vpack.c.bf16 %v5227, %v5224
        %v5308 = vpack.c.bf16 %v5235, %v5232
        %v5309 = vpack.c.bf16 %v5243, %v5240
        %v5310 = vpack.c.bf16 %v5251, %v5248
        %v5311 = vpack.c.bf16 %v5259, %v5256
        %v5312 = vld [vmem:[%s5] sm:$0xff]
        %v5313 = vld [vmem:[%s5 + $0x8] sm:$0xff]
        %v5314 = vld [vmem:[%s5 + $0x10] sm:$0xff]
        %v5315 = vld [vmem:[%s5 + $0x18] sm:$0xf]
        %v5316 = vld [vmem:[%s5 + $0x1c] sm:$0xff]
        %v5317 = vld [vmem:[%s5 + $0x24] sm:$0xff]
        %v5318 = vld [vmem:[%s5 + $0x2c] sm:$0xff]
        %v5319 = vld [vmem:[%s5 + $0x34] sm:$0xf]
        %v5320 = vld [vmem:[%s5 + $0x38] sm:$0xff]
        %v5321 = vld [vmem:[%s5 + $0x40] sm:$0xff]
        %v5322 = vld [vmem:[%s5 + $0x48] sm:$0xff]
        %v5323 = vld [vmem:[%s5 + $0x50] sm:$0xf]
        %v5324 = vld [vmem:[%s5 + $0x54] sm:$0xff]
        %v5325 = vld [vmem:[%s5 + $0x5c] sm:$0xff]
        %v5326 = vld [vmem:[%s5 + $0x64] sm:$0xff]
        %v5327 = vld [vmem:[%s5 + $0x6c] sm:$0xf]
        %v5328 = vld [vmem:[%s5 + $0x70] sm:$0xff]
        %v5329 = vld [vmem:[%s5 + $0x78] sm:$0xff]
        %v5330 = vld [vmem:[%s5 + $0x80] sm:$0xff]
        %v5331 = vld [vmem:[%s5 + $0x88] sm:$0xf]
        %v5332 = vld [vmem:[%s5 + $0x8c] sm:$0xff]
        %v5333 = vld [vmem:[%s5 + $0x94] sm:$0xff]
        %v5334 = vld [vmem:[%s5 + $0x9c] sm:$0xff]
        %v5335 = vld [vmem:[%s5 + $0xa4] sm:$0xf]
        %v5336 = vld [vmem:[%s5 + $0xa8] sm:$0xff]
        %v5337 = vld [vmem:[%s5 + $0xb0] sm:$0xff]
        %v5338 = vld [vmem:[%s5 + $0xb8] sm:$0xff]
        %v5339 = vld [vmem:[%s5 + $0xc0] sm:$0xf]
        %v5340 = vld [vmem:[%s5 + $0xc4] sm:$0xff]
        %v5341 = vld [vmem:[%s5 + $0xcc] sm:$0xff]
        %v5342 = vld [vmem:[%s5 + $0xd4] sm:$0xff]
        %v5343 = vld [vmem:[%s5 + $0xdc] sm:$0xf]
        %v5344 = vld [vmem:[%s5 + $0xe0] sm:$0xff]
        %v5345 = vld [vmem:[%s5 + $0xe8] sm:$0xff]
        %v5346 = vld [vmem:[%s5 + $0xf0] sm:$0xff]
        %v5347 = vld [vmem:[%s5 + $0xf8] sm:$0xf]
        %v5348 = vld [vmem:[%s5 + $0xfc] sm:$0xff]
        %v5349 = vld [vmem:[%s5 + $0x104] sm:$0xff]
        %v5350 = vld [vmem:[%s5 + $0x10c] sm:$0xff]
        %v5351 = vld [vmem:[%s5 + $0x114] sm:$0xf]
        %v5352 = vld [vmem:[%s5 + $0x118] sm:$0xff]
        %v5353 = vld [vmem:[%s5 + $0x120] sm:$0xff]
        %v5354 = vld [vmem:[%s5 + $0x128] sm:$0xff]
        %v5355 = vld [vmem:[%s5 + $0x130] sm:$0xf]
        %v5356 = vld [vmem:[%s5 + $0x134] sm:$0xff]
        %v5357 = vld [vmem:[%s5 + $0x13c] sm:$0xff]
        %v5358 = vld [vmem:[%s5 + $0x144] sm:$0xff]
        %v5359 = vld [vmem:[%s5 + $0x14c] sm:$0xf]
        %v5360 = vld [vmem:[%s5 + $0x150] sm:$0xff]
        %v5361 = vld [vmem:[%s5 + $0x158] sm:$0xff]
        %v5362 = vld [vmem:[%s5 + $0x160] sm:$0xff]
        %v5363 = vld [vmem:[%s5 + $0x168] sm:$0xf]
        %v5364 = vld [vmem:[%s5 + $0x16c] sm:$0xff]
        %v5365 = vld [vmem:[%s5 + $0x174] sm:$0xff]
        %v5366 = vld [vmem:[%s5 + $0x17c] sm:$0xff]
        %v5367 = vld [vmem:[%s5 + $0x184] sm:$0xf]
        %v5368 = vld [vmem:[%s5 + $0x188] sm:$0xff]
        %v5369 = vld [vmem:[%s5 + $0x190] sm:$0xff]
        %v5370 = vld [vmem:[%s5 + $0x198] sm:$0xff]
        %v5371 = vld [vmem:[%s5 + $0x1a0] sm:$0xf]
        %v5372 = vld [vmem:[%s5 + $0x1a4] sm:$0xff]
        %v5373 = vld [vmem:[%s5 + $0x1ac] sm:$0xff]
        %v5374 = vld [vmem:[%s5 + $0x1b4] sm:$0xff]
        %v5375 = vld [vmem:[%s5 + $0x1bc] sm:$0xf]
        %v5376 = vld [vmem:[%s6] sm:$0xff]
        %v5377 = vld [vmem:[%s6 + $0x8] sm:$0xff]
        %v5378 = vld [vmem:[%s6 + $0x10] sm:$0xff]
        %v5379 = vld [vmem:[%s6 + $0x18] sm:$0xff]
        %v5380 = vld [vmem:[%s6 + $0x20] sm:$0xff]
        %v5381 = vld [vmem:[%s6 + $0x28] sm:$0xff]
        %v5382 = vld [vmem:[%s6 + $0x30] sm:$0xff]
        %v5383 = vld [vmem:[%s6 + $0x38] sm:$0xff]
        %v5384 = vld [vmem:[%s6 + $0x40] sm:$0xff]
        %v5385 = vld [vmem:[%s6 + $0x48] sm:$0xff]
        %v5386 = vld [vmem:[%s6 + $0x50] sm:$0xff]
        %v5387 = vld [vmem:[%s6 + $0x58] sm:$0xff]
        %v5388 = vld [vmem:[%s6 + $0x60] sm:$0xff]
        %v5389 = vld [vmem:[%s6 + $0x68] sm:$0xff]
        %v5390 = vld [vmem:[%s6 + $0x70] sm:$0xff]
        %v5391 = vld [vmem:[%s6 + $0x78] sm:$0xff]
        %5393 = vset.pattern.permute.xlu0 0
        %5394 = vperm.xlu0 %5393, %v5376
        %v5395 = vpop.permute.xlu0 %5394
        %5398 = vset.pattern.permute.xlu0 0
        %5399 = vperm.xlu0 %5398, %v5377
        %v5400 = vpop.permute.xlu0 %5399
        %5403 = vset.pattern.permute.xlu0 0
        %5404 = vperm.xlu0 %5403, %v5378
        %v5405 = vpop.permute.xlu0 %5404
        %5408 = vset.pattern.permute.xlu0 0
        %5409 = vperm.xlu0 %5408, %v5379
        %v5410 = vpop.permute.xlu0 %5409
        %5413 = vset.pattern.permute.xlu0 0
        %5414 = vperm.xlu0 %5413, %v5380
        %v5415 = vpop.permute.xlu0 %5414
        %5418 = vset.pattern.permute.xlu0 0
        %5419 = vperm.xlu0 %5418, %v5381
        %v5420 = vpop.permute.xlu0 %5419
        %5423 = vset.pattern.permute.xlu0 0
        %5424 = vperm.xlu0 %5423, %v5382
        %v5425 = vpop.permute.xlu0 %5424
        %5428 = vset.pattern.permute.xlu0 0
        %5429 = vperm.xlu0 %5428, %v5383
        %v5430 = vpop.permute.xlu0 %5429
        %5433 = vset.pattern.permute.xlu0 0
        %5434 = vperm.xlu0 %5433, %v5384
        %v5435 = vpop.permute.xlu0 %5434
        %5438 = vset.pattern.permute.xlu0 0
        %5439 = vperm.xlu0 %5438, %v5385
        %v5440 = vpop.permute.xlu0 %5439
        %5443 = vset.pattern.permute.xlu0 0
        %5444 = vperm.xlu0 %5443, %v5386
        %v5445 = vpop.permute.xlu0 %5444
        %5448 = vset.pattern.permute.xlu0 0
        %5449 = vperm.xlu0 %5448, %v5387
        %v5450 = vpop.permute.xlu0 %5449
        %5453 = vset.pattern.permute.xlu0 0
        %5454 = vperm.xlu0 %5453, %v5388
        %v5455 = vpop.permute.xlu0 %5454
        %5458 = vset.pattern.permute.xlu0 0
        %5459 = vperm.xlu0 %5458, %v5389
        %v5460 = vpop.permute.xlu0 %5459
        %5463 = vset.pattern.permute.xlu0 0
        %5464 = vperm.xlu0 %5463, %v5390
        %v5465 = vpop.permute.xlu0 %5464
        %5468 = vset.pattern.permute.xlu0 0
        %5469 = vperm.xlu0 %5468, %v5391
        %v5470 = vpop.permute.xlu0 %5469
        %v5536 = vunpack.c.l.b16 %v5312
        %v5537 = vunpack.c.h.b16 %v5312
        %v5538 = vunpack.c.l.b16 %v5313
        %v5539 = vunpack.c.h.b16 %v5313
        %v5540 = vunpack.c.l.b16 %v5314
        %v5541 = vunpack.c.h.b16 %v5314
        %v5542 = vunpack.c.l.b16 %v5315
        %v5543 = vunpack.c.l.b16 %v5316
        %v5544 = vunpack.c.h.b16 %v5316
        %v5545 = vunpack.c.l.b16 %v5317
        %v5546 = vunpack.c.h.b16 %v5317
        %v5547 = vunpack.c.l.b16 %v5318
        %v5548 = vunpack.c.h.b16 %v5318
        %v5549 = vunpack.c.l.b16 %v5319
        %v5550 = vunpack.c.l.b16 %v5320
        %v5551 = vunpack.c.h.b16 %v5320
        %v5552 = vunpack.c.l.b16 %v5321
        %v5553 = vunpack.c.h.b16 %v5321
        %v5554 = vunpack.c.l.b16 %v5322
        %v5555 = vunpack.c.h.b16 %v5322
        %v5556 = vunpack.c.l.b16 %v5323
        %v5557 = vunpack.c.l.b16 %v5324
        %v5558 = vunpack.c.h.b16 %v5324
        %v5559 = vunpack.c.l.b16 %v5325
        %v5560 = vunpack.c.h.b16 %v5325
        %v5561 = vunpack.c.l.b16 %v5326
        %v5562 = vunpack.c.h.b16 %v5326
        %v5563 = vunpack.c.l.b16 %v5327
        %v5564 = vunpack.c.l.b16 %v5328
        %v5565 = vunpack.c.h.b16 %v5328
        %v5566 = vunpack.c.l.b16 %v5329
        %v5567 = vunpack.c.h.b16 %v5329
        %v5568 = vunpack.c.l.b16 %v5330
        %v5569 = vunpack.c.h.b16 %v5330
        %v5570 = vunpack.c.l.b16 %v5331
        %v5571 = vunpack.c.l.b16 %v5332
        %v5572 = vunpack.c.h.b16 %v5332
        %v5573 = vunpack.c.l.b16 %v5333
        %v5574 = vunpack.c.h.b16 %v5333
        %v5575 = vunpack.c.l.b16 %v5334
        %v5576 = vunpack.c.h.b16 %v5334
        %v5577 = vunpack.c.l.b16 %v5335
        %v5578 = vunpack.c.l.b16 %v5336
        %v5579 = vunpack.c.h.b16 %v5336
        %v5580 = vunpack.c.l.b16 %v5337
        %v5581 = vunpack.c.h.b16 %v5337
        %v5582 = vunpack.c.l.b16 %v5338
        %v5583 = vunpack.c.h.b16 %v5338
        %v5584 = vunpack.c.l.b16 %v5339
        %v5585 = vunpack.c.l.b16 %v5340
        %v5586 = vunpack.c.h.b16 %v5340
        %v5587 = vunpack.c.l.b16 %v5341
        %v5588 = vunpack.c.h.b16 %v5341
        %v5589 = vunpack.c.l.b16 %v5342
        %v5590 = vunpack.c.h.b16 %v5342
        %v5591 = vunpack.c.l.b16 %v5343
        %v5592 = vunpack.c.l.b16 %v5344
        %v5593 = vunpack.c.h.b16 %v5344
        %v5594 = vunpack.c.l.b16 %v5345
        %v5595 = vunpack.c.h.b16 %v5345
        %v5596 = vunpack.c.l.b16 %v5346
        %v5597 = vunpack.c.h.b16 %v5346
        %v5598 = vunpack.c.l.b16 %v5347
        %v5599 = vunpack.c.l.b16 %v5348
        %v5600 = vunpack.c.h.b16 %v5348
        %v5601 = vunpack.c.l.b16 %v5349
        %v5602 = vunpack.c.h.b16 %v5349
        %v5603 = vunpack.c.l.b16 %v5350
        %v5604 = vunpack.c.h.b16 %v5350
        %v5605 = vunpack.c.l.b16 %v5351
        %v5606 = vunpack.c.l.b16 %v5352
        %v5607 = vunpack.c.h.b16 %v5352
        %v5608 = vunpack.c.l.b16 %v5353
        %v5609 = vunpack.c.h.b16 %v5353
        %v5610 = vunpack.c.l.b16 %v5354
        %v5611 = vunpack.c.h.b16 %v5354
        %v5612 = vunpack.c.l.b16 %v5355
        %v5613 = vunpack.c.l.b16 %v5356
        %v5614 = vunpack.c.h.b16 %v5356
        %v5615 = vunpack.c.l.b16 %v5357
        %v5616 = vunpack.c.h.b16 %v5357
        %v5617 = vunpack.c.l.b16 %v5358
        %v5618 = vunpack.c.h.b16 %v5358
        %v5619 = vunpack.c.l.b16 %v5359
        %v5620 = vunpack.c.l.b16 %v5360
        %v5621 = vunpack.c.h.b16 %v5360
        %v5622 = vunpack.c.l.b16 %v5361
        %v5623 = vunpack.c.h.b16 %v5361
        %v5624 = vunpack.c.l.b16 %v5362
        %v5625 = vunpack.c.h.b16 %v5362
        %v5626 = vunpack.c.l.b16 %v5363
        %v5627 = vunpack.c.l.b16 %v5364
        %v5628 = vunpack.c.h.b16 %v5364
        %v5629 = vunpack.c.l.b16 %v5365
        %v5630 = vunpack.c.h.b16 %v5365
        %v5631 = vunpack.c.l.b16 %v5366
        %v5632 = vunpack.c.h.b16 %v5366
        %v5633 = vunpack.c.l.b16 %v5367
        %v5634 = vunpack.c.l.b16 %v5368
        %v5635 = vunpack.c.h.b16 %v5368
        %v5636 = vunpack.c.l.b16 %v5369
        %v5637 = vunpack.c.h.b16 %v5369
        %v5638 = vunpack.c.l.b16 %v5370
        %v5639 = vunpack.c.h.b16 %v5370
        %v5640 = vunpack.c.l.b16 %v5371
        %v5641 = vunpack.c.l.b16 %v5372
        %v5642 = vunpack.c.h.b16 %v5372
        %v5643 = vunpack.c.l.b16 %v5373
        %v5644 = vunpack.c.h.b16 %v5373
        %v5645 = vunpack.c.l.b16 %v5374
        %v5646 = vunpack.c.h.b16 %v5374
        %v5647 = vunpack.c.l.b16 %v5375
        %v5648 = vpack.c.b16 %v5543, %v5536
        %v5649 = vpack.c.b16 %v5544, %v5537
        %v5650 = vpack.c.b16 %v5545, %v5538
        %v5651 = vpack.c.b16 %v5546, %v5539
        %v5652 = vpack.c.b16 %v5547, %v5540
        %v5653 = vpack.c.b16 %v5548, %v5541
        %v5654 = vpack.c.b16 %v5549, %v5542
        %v5655 = vpack.c.b16 %v5557, %v5550
        %v5656 = vpack.c.b16 %v5558, %v5551
        %v5657 = vpack.c.b16 %v5559, %v5552
        %v5658 = vpack.c.b16 %v5560, %v5553
        %v5659 = vpack.c.b16 %v5561, %v5554
        %v5660 = vpack.c.b16 %v5562, %v5555
        %v5661 = vpack.c.b16 %v5563, %v5556
        %v5662 = vpack.c.b16 %v5571, %v5564
        %v5663 = vpack.c.b16 %v5572, %v5565
        %v5664 = vpack.c.b16 %v5573, %v5566
        %v5665 = vpack.c.b16 %v5574, %v5567
        %v5666 = vpack.c.b16 %v5575, %v5568
        %v5667 = vpack.c.b16 %v5576, %v5569
        %v5668 = vpack.c.b16 %v5577, %v5570
        %v5669 = vpack.c.b16 %v5585, %v5578
        %v5670 = vpack.c.b16 %v5586, %v5579
        %v5671 = vpack.c.b16 %v5587, %v5580
        %v5672 = vpack.c.b16 %v5588, %v5581
        %v5673 = vpack.c.b16 %v5589, %v5582
        %v5674 = vpack.c.b16 %v5590, %v5583
        %v5675 = vpack.c.b16 %v5591, %v5584
        %v5676 = vpack.c.b16 %v5599, %v5592
        %v5677 = vpack.c.b16 %v5600, %v5593
        %v5678 = vpack.c.b16 %v5601, %v5594
        %v5679 = vpack.c.b16 %v5602, %v5595
        %v5680 = vpack.c.b16 %v5603, %v5596
        %v5681 = vpack.c.b16 %v5604, %v5597
        %v5682 = vpack.c.b16 %v5605, %v5598
        %v5683 = vpack.c.b16 %v5613, %v5606
        %v5684 = vpack.c.b16 %v5614, %v5607
        %v5685 = vpack.c.b16 %v5615, %v5608
        %v5686 = vpack.c.b16 %v5616, %v5609
        %v5687 = vpack.c.b16 %v5617, %v5610
        %v5688 = vpack.c.b16 %v5618, %v5611
        %v5689 = vpack.c.b16 %v5619, %v5612
        %v5690 = vpack.c.b16 %v5627, %v5620
        %v5691 = vpack.c.b16 %v5628, %v5621
        %v5692 = vpack.c.b16 %v5629, %v5622
        %v5693 = vpack.c.b16 %v5630, %v5623
        %v5694 = vpack.c.b16 %v5631, %v5624
        %v5695 = vpack.c.b16 %v5632, %v5625
        %v5696 = vpack.c.b16 %v5633, %v5626
        %v5697 = vpack.c.b16 %v5641, %v5634
        %v5698 = vpack.c.b16 %v5642, %v5635
        %v5699 = vpack.c.b16 %v5643, %v5636
        %v5700 = vpack.c.b16 %v5644, %v5637
        %v5701 = vpack.c.b16 %v5645, %v5638
        %v5702 = vpack.c.b16 %v5646, %v5639
        %v5703 = vpack.c.b16 %v5647, %v5640
        %vm5752 = vcmask 261120
        %v5754 = vsel %vm5752, %v5654, 0
        %v5757 = vsel %vm5752, %v5661, 0
        %v5760 = vsel %vm5752, %v5668, 0
        %v5763 = vsel %vm5752, %v5675, 0
        %v5766 = vsel %vm5752, %v5682, 0
        %v5769 = vsel %vm5752, %v5689, 0
        %v5772 = vsel %vm5752, %v5696, 0
        %v5775 = vsel %vm5752, %v5703, 0
        %5777 = vmatprep.subr.bf16.mxu0 0
        %5778 = vmatpush1.bf16.msra.mxu0 %v5262
        %5779 = vmatprep.subr.bf16.mxu0 0
        %5780 = vmatpush1.bf16.msra.mxu0 %v5263
        %5781 = vmatprep.subr.bf16.mxu0 0
        %5782 = vmatpush1.bf16.msra.mxu0 %v5264
        %5783 = vmatprep.subr.bf16.mxu0 0
        %5784 = vmatpush1.bf16.msra.mxu0 %v5265
        %5785 = vmatprep.subr.bf16.mxu0 0
        %5786 = vmatpush1.bf16.msra.mxu0 %v5266
        %5787 = vmatprep.subr.bf16.mxu0 0
        %5788 = vmatpush1.bf16.msra.mxu0 %v5267
        %5789 = vmatprep.subr.bf16.mxu0 0
        %5790 = vmatpush1.bf16.msra.mxu0 %v5268
        %5791 = vmatprep.subr.bf16.mxu0 0
        %5792 = vmatpush1.bf16.msra.mxu0 %v5269
        %5793 = vmatprep.subr.bf16.mxu0 0
        %5794 = vmatpush1.bf16.msra.mxu0 %v5270
        %5795 = vmatprep.subr.bf16.mxu0 0
        %5796 = vmatpush1.bf16.msra.mxu0 %v5271
        %5797 = vmatprep.subr.bf16.mxu0 0
        %5798 = vmatpush1.bf16.msra.mxu0 %v5272
        %5799 = vmatprep.subr.bf16.mxu0 0
        %5800 = vmatpush1.bf16.msra.mxu0 %v5273
        %5801 = vmatprep.subr.bf16.mxu0 0
        %5802 = vmatpush1.bf16.msra.mxu0 %v5274
        %5803 = vmatprep.subr.bf16.mxu0 0
        %5804 = vmatpush1.bf16.msra.mxu0 %v5275
        %5805 = vmatprep.subr.bf16.mxu0 0
        %5806 = vmatpush1.bf16.msra.mxu0 %v5276
        %5807 = vmatprep.subr.bf16.mxu0 0
        %5808 = vmatpush1.bf16.msra.mxu0 %v5277
        %5809 = vmatprep.mubr.bf16.mxu0 %v5649
        %5810 = vmatmul.mubr.bf16.gmra.mrb[0].mxu0 %v5648
        %v5811 = vpop.f32.mrb[0].mxu0
        %v5812 = vadd.f32 %v5395, %v5811
        %v5813 = vpop.f32.mrb[0].mxu0
        %v5814 = vpop.f32.mrb[0].mxu0
        %v5815 = vadd.f32 %v5400, %v5814
        %v5816 = vpop.f32.mrb[0].mxu0
        %5817 = vmatprep.mubr.bf16.mxu0 %v5656
        %5818 = vmatmul.mubr.bf16.gmra.mrb[0].mxu0 %v5655
        %v5819 = vpop.f32.mrb[0].mxu0
        %v5820 = vadd.f32 %v5405, %v5819
        %v5821 = vpop.f32.mrb[0].mxu0
        %v5822 = vpop.f32.mrb[0].mxu0
        %v5823 = vadd.f32 %v5410, %v5822
        %v5824 = vpop.f32.mrb[0].mxu0
        %5825 = vmatprep.mubr.bf16.mxu0 %v5663
        %5826 = vmatmul.mubr.bf16.gmra.mrb[0].mxu0 %v5662
        %v5827 = vpop.f32.mrb[0].mxu0
        %v5828 = vadd.f32 %v5415, %v5827
        %v5829 = vpop.f32.mrb[0].mxu0
        %v5830 = vpop.f32.mrb[0].mxu0
        %v5831 = vadd.f32 %v5420, %v5830
        %v5832 = vpop.f32.mrb[0].mxu0
        %5833 = vmatprep.mubr.bf16.mxu0 %v5670
        %5834 = vmatmul.mubr.bf16.gmra.mrb[0].mxu0 %v5669
        %v5835 = vpop.f32.mrb[0].mxu0
        %v5836 = vadd.f32 %v5425, %v5835
        %v5837 = vpop.f32.mrb[0].mxu0
        %v5838 = vpop.f32.mrb[0].mxu0
        %v5839 = vadd.f32 %v5430, %v5838
        %v5840 = vpop.f32.mrb[0].mxu0
        %5841 = vmatprep.mubr.bf16.mxu0 %v5677
        %5842 = vmatmul.mubr.bf16.gmra.mrb[0].mxu0 %v5676
        %v5843 = vpop.f32.mrb[0].mxu0
        %v5844 = vadd.f32 %v5435, %v5843
        %v5845 = vpop.f32.mrb[0].mxu0
        %v5846 = vpop.f32.mrb[0].mxu0
        %v5847 = vadd.f32 %v5440, %v5846
        %v5848 = vpop.f32.mrb[0].mxu0
        %5849 = vmatprep.mubr.bf16.mxu0 %v5684
        %5850 = vmatmul.mubr.bf16.gmra.mrb[0].mxu0 %v5683
        %v5851 = vpop.f32.mrb[0].mxu0
        %v5852 = vadd.f32 %v5445, %v5851
        %v5853 = vpop.f32.mrb[0].mxu0
        %v5854 = vpop.f32.mrb[0].mxu0
        %v5855 = vadd.f32 %v5450, %v5854
        %v5856 = vpop.f32.mrb[0].mxu0
        %5857 = vmatprep.mubr.bf16.mxu0 %v5691
        %5858 = vmatmul.mubr.bf16.gmra.mrb[0].mxu0 %v5690
        %v5859 = vpop.f32.mrb[0].mxu0
        %v5860 = vadd.f32 %v5455, %v5859
        %v5861 = vpop.f32.mrb[0].mxu0
        %v5862 = vpop.f32.mrb[0].mxu0
        %v5863 = vadd.f32 %v5460, %v5862
        %v5864 = vpop.f32.mrb[0].mxu0
        %5865 = vmatprep.mubr.bf16.mxu0 %v5698
        %5866 = vmatmul.mubr.bf16.gmra.mrb[0].mxu0 %v5697
        %v5867 = vpop.f32.mrb[0].mxu0
        %v5868 = vadd.f32 %v5465, %v5867
        %v5869 = vpop.f32.mrb[0].mxu0
        %v5870 = vpop.f32.mrb[0].mxu0
        %v5871 = vadd.f32 %v5470, %v5870
        %v5872 = vpop.f32.mrb[0].mxu0
        %5873 = vdwg.mxu0
        %5874 = vmatprep.subr.bf16.mxu0 0
        %5875 = vmatpush1.bf16.msra.mxu0 %v5278
        %5876 = vmatprep.subr.bf16.mxu0 0
        %5877 = vmatpush1.bf16.msra.mxu0 %v5279
        %5878 = vmatprep.subr.bf16.mxu0 0
        %5879 = vmatpush1.bf16.msra.mxu0 %v5280
        %5880 = vmatprep.subr.bf16.mxu0 0
        %5881 = vmatpush1.bf16.msra.mxu0 %v5281
        %5882 = vmatprep.subr.bf16.mxu0 0
        %5883 = vmatpush1.bf16.msra.mxu0 %v5282
        %5884 = vmatprep.subr.bf16.mxu0 0
        %5885 = vmatpush1.bf16.msra.mxu0 %v5283
        %5886 = vmatprep.subr.bf16.mxu0 0
        %5887 = vmatpush1.bf16.msra.mxu0 %v5284
        %5888 = vmatprep.subr.bf16.mxu0 0
        %5889 = vmatpush1.bf16.msra.mxu0 %v5285
        %5890 = vmatprep.subr.bf16.mxu0 0
        %5891 = vmatpush1.bf16.msra.mxu0 %v5286
        %5892 = vmatprep.subr.bf16.mxu0 0
        %5893 = vmatpush1.bf16.msra.mxu0 %v5287
        %5894 = vmatprep.subr.bf16.mxu0 0
        %5895 = vmatpush1.bf16.msra.mxu0 %v5288
        %5896 = vmatprep.subr.bf16.mxu0 0
        %5897 = vmatpush1.bf16.msra.mxu0 %v5289
        %5898 = vmatprep.subr.bf16.mxu0 0
        %5899 = vmatpush1.bf16.msra.mxu0 %v5290
        %5900 = vmatprep.subr.bf16.mxu0 0
        %5901 = vmatpush1.bf16.msra.mxu0 %v5291
        %5902 = vmatprep.subr.bf16.mxu0 0
        %5903 = vmatpush1.bf16.msra.mxu0 %v5292
        %5904 = vmatprep.subr.bf16.mxu0 0
        %5905 = vmatpush1.bf16.msra.mxu0 %v5293
        %5906 = vmatprep.mubr.bf16.mxu0 %v5651
        %5907 = vmatmul.mubr.bf16.gmra.mrb[0].mxu0 %v5650
        %v5908 = vpop.f32.mrb[0].mxu0
        %v5909 = vadd.f32 %v5812, %v5908
        %v5910 = vpop.f32.mrb[0].mxu0
        %v5911 = vpop.f32.mrb[0].mxu0
        %v5912 = vadd.f32 %v5815, %v5911
        %v5913 = vpop.f32.mrb[0].mxu0
        %5914 = vmatprep.mubr.bf16.mxu0 %v5658
        %5915 = vmatmul.mubr.bf16.gmra.mrb[0].mxu0 %v5657
        %v5916 = vpop.f32.mrb[0].mxu0
        %v5917 = vadd.f32 %v5820, %v5916
        %v5918 = vpop.f32.mrb[0].mxu0
        %v5919 = vpop.f32.mrb[0].mxu0
        %v5920 = vadd.f32 %v5823, %v5919
        %v5921 = vpop.f32.mrb[0].mxu0
        %5922 = vmatprep.mubr.bf16.mxu0 %v5665
        %5923 = vmatmul.mubr.bf16.gmra.mrb[0].mxu0 %v5664
        %v5924 = vpop.f32.mrb[0].mxu0
        %v5925 = vadd.f32 %v5828, %v5924
        %v5926 = vpop.f32.mrb[0].mxu0
        %v5927 = vpop.f32.mrb[0].mxu0
        %v5928 = vadd.f32 %v5831, %v5927
        %v5929 = vpop.f32.mrb[0].mxu0
        %5930 = vmatprep.mubr.bf16.mxu0 %v5672
        %5931 = vmatmul.mubr.bf16.gmra.mrb[0].mxu0 %v5671
        %v5932 = vpop.f32.mrb[0].mxu0
        %v5933 = vadd.f32 %v5836, %v5932
        %v5934 = vpop.f32.mrb[0].mxu0
        %v5935 = vpop.f32.mrb[0].mxu0
        %v5936 = vadd.f32 %v5839, %v5935
        %v5937 = vpop.f32.mrb[0].mxu0
        %5938 = vmatprep.mubr.bf16.mxu0 %v5679
        %5939 = vmatmul.mubr.bf16.gmra.mrb[0].mxu0 %v5678
        %v5940 = vpop.f32.mrb[0].mxu0
        %v5941 = vadd.f32 %v5844, %v5940
        %v5942 = vpop.f32.mrb[0].mxu0
        %v5943 = vpop.f32.mrb[0].mxu0
        %v5944 = vadd.f32 %v5847, %v5943
        %v5945 = vpop.f32.mrb[0].mxu0
        %5946 = vmatprep.mubr.bf16.mxu0 %v5686
        %5947 = vmatmul.mubr.bf16.gmra.mrb[0].mxu0 %v5685
        %v5948 = vpop.f32.mrb[0].mxu0
        %v5949 = vadd.f32 %v5852, %v5948
        %v5950 = vpop.f32.mrb[0].mxu0
        %v5951 = vpop.f32.mrb[0].mxu0
        %v5952 = vadd.f32 %v5855, %v5951
        %v5953 = vpop.f32.mrb[0].mxu0
        %5954 = vmatprep.mubr.bf16.mxu0 %v5693
        %5955 = vmatmul.mubr.bf16.gmra.mrb[0].mxu0 %v5692
        %v5956 = vpop.f32.mrb[0].mxu0
        %v5957 = vadd.f32 %v5860, %v5956
        %v5958 = vpop.f32.mrb[0].mxu0
        %v5959 = vpop.f32.mrb[0].mxu0
        %v5960 = vadd.f32 %v5863, %v5959
        %v5961 = vpop.f32.mrb[0].mxu0
        %5962 = vmatprep.mubr.bf16.mxu0 %v5700
        %5963 = vmatmul.mubr.bf16.gmra.mrb[0].mxu0 %v5699
        %v5964 = vpop.f32.mrb[0].mxu0
        %v5965 = vadd.f32 %v5868, %v5964
        %v5966 = vpop.f32.mrb[0].mxu0
        %v5967 = vpop.f32.mrb[0].mxu0
        %v5968 = vadd.f32 %v5871, %v5967
        %v5969 = vpop.f32.mrb[0].mxu0
        %5970 = vdwg.mxu0
        %5971 = vmatprep.subr.bf16.mxu0 0
        %5972 = vmatpush1.bf16.msra.mxu0 %v5294
        %5973 = vmatprep.subr.bf16.mxu0 0
        %5974 = vmatpush1.bf16.msra.mxu0 %v5295
        %5975 = vmatprep.subr.bf16.mxu0 0
        %5976 = vmatpush1.bf16.msra.mxu0 %v5296
        %5977 = vmatprep.subr.bf16.mxu0 0
        %5978 = vmatpush1.bf16.msra.mxu0 %v5297
        %5979 = vmatprep.subr.bf16.mxu0 0
        %5980 = vmatpush1.bf16.msra.mxu0 %v5298
        %5981 = vmatprep.subr.bf16.mxu0 0
        %5982 = vmatpush1.bf16.msra.mxu0 %v5299
        %5983 = vmatprep.subr.bf16.mxu0 0
        %5984 = vmatpush1.bf16.msra.mxu0 %v5300
        %5985 = vmatprep.subr.bf16.mxu0 0
        %5986 = vmatpush1.bf16.msra.mxu0 %v5301
        %5987 = vmatprep.subr.bf16.mxu0 0
        %5988 = vmatpush1.bf16.msra.mxu0 %v5302
        %5989 = vmatprep.subr.bf16.mxu0 0
        %5990 = vmatpush1.bf16.msra.mxu0 %v5303
        %5991 = vmatprep.subr.bf16.mxu0 0
        %5992 = vmatpush1.bf16.msra.mxu0 %v5304
        %5993 = vmatprep.subr.bf16.mxu0 0
        %5994 = vmatpush1.bf16.msra.mxu0 %v5305
        %5995 = vmatprep.subr.bf16.mxu0 0
        %5996 = vmatpush1.bf16.msra.mxu0 %v5306
        %5997 = vmatprep.subr.bf16.mxu0 0
        %5998 = vmatpush1.bf16.msra.mxu0 %v5307
        %5999 = vmatprep.subr.bf16.mxu0 0
        %6000 = vmatpush1.bf16.msra.mxu0 %v5308
        %6001 = vmatprep.subr.bf16.mxu0 0
        %6002 = vmatpush1.bf16.msra.mxu0 %v5309
        %6003 = vmatprep.mubr.bf16.mxu0 %v5653
        %6004 = vmatmul.mubr.bf16.gmra.mrb[0].mxu0 %v5652
        %v6005 = vpop.f32.mrb[0].mxu0
        %v6006 = vadd.f32 %v5909, %v6005
        %v6007 = vpop.f32.mrb[0].mxu0
        %v6008 = vpop.f32.mrb[0].mxu0
        %v6009 = vadd.f32 %v5912, %v6008
        %v6010 = vpop.f32.mrb[0].mxu0
        %6011 = vmatprep.mubr.bf16.mxu0 %v5660
        %6012 = vmatmul.mubr.bf16.gmra.mrb[0].mxu0 %v5659
        %v6013 = vpop.f32.mrb[0].mxu0
        %v6014 = vadd.f32 %v5917, %v6013
        %v6015 = vpop.f32.mrb[0].mxu0
        %v6016 = vpop.f32.mrb[0].mxu0
        %v6017 = vadd.f32 %v5920, %v6016
        %v6018 = vpop.f32.mrb[0].mxu0
        %6019 = vmatprep.mubr.bf16.mxu0 %v5667
        %6020 = vmatmul.mubr.bf16.gmra.mrb[0].mxu0 %v5666
        %v6021 = vpop.f32.mrb[0].mxu0
        %v6022 = vadd.f32 %v5925, %v6021
        %v6023 = vpop.f32.mrb[0].mxu0
        %v6024 = vpop.f32.mrb[0].mxu0
        %v6025 = vadd.f32 %v5928, %v6024
        %v6026 = vpop.f32.mrb[0].mxu0
        %6027 = vmatprep.mubr.bf16.mxu0 %v5674
        %6028 = vmatmul.mubr.bf16.gmra.mrb[0].mxu0 %v5673
        %v6029 = vpop.f32.mrb[0].mxu0
        %v6030 = vadd.f32 %v5933, %v6029
        %v6031 = vpop.f32.mrb[0].mxu0
        %v6032 = vpop.f32.mrb[0].mxu0
        %v6033 = vadd.f32 %v5936, %v6032
        %v6034 = vpop.f32.mrb[0].mxu0
        %6035 = vmatprep.mubr.bf16.mxu0 %v5681
        %6036 = vmatmul.mubr.bf16.gmra.mrb[0].mxu0 %v5680
        %v6037 = vpop.f32.mrb[0].mxu0
        %v6038 = vadd.f32 %v5941, %v6037
        %v6039 = vpop.f32.mrb[0].mxu0
        %v6040 = vpop.f32.mrb[0].mxu0
        %v6041 = vadd.f32 %v5944, %v6040
        %v6042 = vpop.f32.mrb[0].mxu0
        %6043 = vmatprep.mubr.bf16.mxu0 %v5688
        %6044 = vmatmul.mubr.bf16.gmra.mrb[0].mxu0 %v5687
        %v6045 = vpop.f32.mrb[0].mxu0
        %v6046 = vadd.f32 %v5949, %v6045
        %v6047 = vpop.f32.mrb[0].mxu0
        %v6048 = vpop.f32.mrb[0].mxu0
        %v6049 = vadd.f32 %v5952, %v6048
        %v6050 = vpop.f32.mrb[0].mxu0
        %6051 = vmatprep.mubr.bf16.mxu0 %v5695
        %6052 = vmatmul.mubr.bf16.gmra.mrb[0].mxu0 %v5694
        %v6053 = vpop.f32.mrb[0].mxu0
        %v6054 = vadd.f32 %v5957, %v6053
        %v6055 = vpop.f32.mrb[0].mxu0
        %v6056 = vpop.f32.mrb[0].mxu0
        %v6057 = vadd.f32 %v5960, %v6056
        %v6058 = vpop.f32.mrb[0].mxu0
        %6059 = vmatprep.mubr.bf16.mxu0 %v5702
        %6060 = vmatmul.mubr.bf16.gmra.mrb[0].mxu0 %v5701
        %v6061 = vpop.f32.mrb[0].mxu0
        %v6062 = vadd.f32 %v5965, %v6061
        %v6063 = vpop.f32.mrb[0].mxu0
        %v6064 = vpop.f32.mrb[0].mxu0
        %v6065 = vadd.f32 %v5968, %v6064
        %v6066 = vpop.f32.mrb[0].mxu0
        %6067 = vdwg.mxu0
        %6068 = vmatprep.subr.bf16.mxu0 0
        %6069 = vmatpush1.bf16.msra.mxu0 %v5310
        %6070 = vmatprep.subr.bf16.mxu0 0
        %6071 = vmatpush1.bf16.msra.mxu0 %v5311
        %6072 = vmatprep.subr.bf16.mxu0 0
        %6073 = vmatpush1.bf16.msra.mxu0 0
        %6074 = vmatprep.subr.bf16.mxu0 0
        %6075 = vmatpush1.bf16.msra.mxu0 0
        %6076 = vmatprep.subr.bf16.mxu0 0
        %6077 = vmatpush1.bf16.msra.mxu0 0
        %6078 = vmatprep.subr.bf16.mxu0 0
        %6079 = vmatpush1.bf16.msra.mxu0 0
        %6080 = vmatprep.subr.bf16.mxu0 0
        %6081 = vmatpush1.bf16.msra.mxu0 0
        %6082 = vmatprep.subr.bf16.mxu0 0
        %6083 = vmatpush1.bf16.msra.mxu0 0
        %6084 = vmatprep.subr.bf16.mxu0 0
        %6085 = vmatpush1.bf16.msra.mxu0 0
        %6086 = vmatprep.subr.bf16.mxu0 0
        %6087 = vmatpush1.bf16.msra.mxu0 0
        %6088 = vmatprep.subr.bf16.mxu0 0
        %6089 = vmatpush1.bf16.msra.mxu0 0
        %6090 = vmatprep.subr.bf16.mxu0 0
        %6091 = vmatpush1.bf16.msra.mxu0 0
        %6092 = vmatprep.subr.bf16.mxu0 0
        %6093 = vmatpush1.bf16.msra.mxu0 0
        %6094 = vmatprep.subr.bf16.mxu0 0
        %6095 = vmatpush1.bf16.msra.mxu0 0
        %6096 = vmatprep.subr.bf16.mxu0 0
        %6097 = vmatpush1.bf16.msra.mxu0 0
        %6098 = vmatprep.subr.bf16.mxu0 0
        %6099 = vmatpush1.bf16.msra.mxu0 0
        %6100 = vmatprep.mubr.bf16.mxu0 0
        %6101 = vmatmul.mubr.bf16.gmra.mrb[0].mxu0 %v5754
        %v6102 = vpop.f32.mrb[0].mxu0
        %v6103 = vadd.f32 %v6006, %v6102
        %v6104 = vpop.f32.mrb[0].mxu0
        %v6105 = vpop.f32.mrb[0].mxu0
        %v6106 = vadd.f32 %v6009, %v6105
        %v6107 = vpop.f32.mrb[0].mxu0
        %6108 = vmatprep.mubr.bf16.mxu0 0
        %6109 = vmatmul.mubr.bf16.gmra.mrb[0].mxu0 %v5757
        %v6110 = vpop.f32.mrb[0].mxu0
        %v6111 = vadd.f32 %v6014, %v6110
        %v6112 = vpop.f32.mrb[0].mxu0
        %v6113 = vpop.f32.mrb[0].mxu0
        %v6114 = vadd.f32 %v6017, %v6113
        %v6115 = vpop.f32.mrb[0].mxu0
        %6116 = vmatprep.mubr.bf16.mxu0 0
        %6117 = vmatmul.mubr.bf16.gmra.mrb[0].mxu0 %v5760
        %v6118 = vpop.f32.mrb[0].mxu0
        %v6119 = vadd.f32 %v6022, %v6118
        %v6120 = vpop.f32.mrb[0].mxu0
        %v6121 = vpop.f32.mrb[0].mxu0
        %v6122 = vadd.f32 %v6025, %v6121
        %v6123 = vpop.f32.mrb[0].mxu0
        %6124 = vmatprep.mubr.bf16.mxu0 0
        %6125 = vmatmul.mubr.bf16.gmra.mrb[0].mxu0 %v5763
        %v6126 = vpop.f32.mrb[0].mxu0
        %v6127 = vadd.f32 %v6030, %v6126
        %v6128 = vpop.f32.mrb[0].mxu0
        %v6129 = vpop.f32.mrb[0].mxu0
        %v6130 = vadd.f32 %v6033, %v6129
        %v6131 = vpop.f32.mrb[0].mxu0
        %6132 = vmatprep.mubr.bf16.mxu0 0
        %6133 = vmatmul.mubr.bf16.gmra.mrb[0].mxu0 %v5766
        %v6134 = vpop.f32.mrb[0].mxu0
        %v6135 = vadd.f32 %v6038, %v6134
        %v6136 = vpop.f32.mrb[0].mxu0
        %v6137 = vpop.f32.mrb[0].mxu0
        %v6138 = vadd.f32 %v6041, %v6137
        %v6139 = vpop.f32.mrb[0].mxu0
        %6140 = vmatprep.mubr.bf16.mxu0 0
        %6141 = vmatmul.mubr.bf16.gmra.mrb[0].mxu0 %v5769
        %v6142 = vpop.f32.mrb[0].mxu0
        %v6143 = vadd.f32 %v6046, %v6142
        %v6144 = vpop.f32.mrb[0].mxu0
        %v6145 = vpop.f32.mrb[0].mxu0
        %v6146 = vadd.f32 %v6049, %v6145
        %v6147 = vpop.f32.mrb[0].mxu0
        %6148 = vmatprep.mubr.bf16.mxu0 0
        %6149 = vmatmul.mubr.bf16.gmra.mrb[0].mxu0 %v5772
        %v6150 = vpop.f32.mrb[0].mxu0
        %v6151 = vadd.f32 %v6054, %v6150
        %v6152 = vpop.f32.mrb[0].mxu0
        %v6153 = vpop.f32.mrb[0].mxu0
        %v6154 = vadd.f32 %v6057, %v6153
        %v6155 = vpop.f32.mrb[0].mxu0
        %6156 = vmatprep.mubr.bf16.mxu0 0
        %6157 = vmatmul.mubr.bf16.gmra.mrb[0].mxu0 %v5775
        %v6158 = vpop.f32.mrb[0].mxu0
        %v6159 = vadd.f32 %v6062, %v6158
        %v6160 = vpop.f32.mrb[0].mxu0
        %v6161 = vpop.f32.mrb[0].mxu0
        %v6162 = vadd.f32 %v6065, %v6161
        %v6163 = vpop.f32.mrb[0].mxu0
        %6164 = vdwg.mxu0
        %v6165 = vmax.f32 %v6103, 0.0
        %v6166 = vmax.f32 %v6106, 0.0
        %v6167 = vmax.f32 %v6111, 0.0
        %v6168 = vmax.f32 %v6114, 0.0
        %v6169 = vmax.f32 %v6119, 0.0
        %v6170 = vmax.f32 %v6122, 0.0
        %v6171 = vmax.f32 %v6127, 0.0
        %v6172 = vmax.f32 %v6130, 0.0
        %v6173 = vmax.f32 %v6135, 0.0
        %v6174 = vmax.f32 %v6138, 0.0
        %v6175 = vmax.f32 %v6143, 0.0
        %v6176 = vmax.f32 %v6146, 0.0
        %v6177 = vmax.f32 %v6151, 0.0
        %v6178 = vmax.f32 %v6154, 0.0
        %v6179 = vmax.f32 %v6159, 0.0
        %v6180 = vmax.f32 %v6162, 0.0
        %v6181 = vpack.c.bf16 %v6166, %v6165
        %v6182 = vpack.c.bf16 %v6168, %v6167
        %v6183 = vpack.c.bf16 %v6170, %v6169
        %v6184 = vpack.c.bf16 %v6172, %v6171
        %v6185 = vpack.c.bf16 %v6174, %v6173
        %v6186 = vpack.c.bf16 %v6176, %v6175
        %v6187 = vpack.c.bf16 %v6178, %v6177
        %v6188 = vpack.c.bf16 %v6180, %v6179
        %v6189 = vld [vmem:[%s7] sm:$0xf]
        %v6190 = vld [vmem:[%s7 + $0x4] sm:$0xf]
        %v6191 = vld [vmem:[%s7 + $0x8] sm:$0xf]
        %v6192 = vld [vmem:[%s7 + $0xc] sm:$0xf]
        %v6193 = vld [vmem:[%s7 + $0x10] sm:$0xf]
        %v6194 = vld [vmem:[%s7 + $0x14] sm:$0xf]
        %v6195 = vld [vmem:[%s7 + $0x18] sm:$0xf]
        %v6196 = vld [vmem:[%s7 + $0x1c] sm:$0xf]
        %v6197 = vld [vmem:[%s7 + $0x20] sm:$0xf]
        %v6198 = vld [vmem:[%s7 + $0x24] sm:$0xf]
        %v6199 = vld [vmem:[%s7 + $0x28] sm:$0xf]
        %v6200 = vld [vmem:[%s7 + $0x2c] sm:$0xf]
        %v6201 = vld [vmem:[%s7 + $0x30] sm:$0xf]
        %v6202 = vld [vmem:[%s7 + $0x34] sm:$0xf]
        %v6203 = vld [vmem:[%s7 + $0x38] sm:$0xf]
        %v6204 = vld [vmem:[%s7 + $0x3c] sm:$0xf]
        %v6205 = vld [vmem:[%s8] sm:$0xff]
        %v6206 = vld [vmem:[%s8 + $0x8] sm:$0xff]
        %v6207 = vld [vmem:[%s8 + $0x10] sm:$0xff]
        %v6208 = vld [vmem:[%s8 + $0x18] sm:$0xff]
        %v6209 = vld [vmem:[%s8 + $0x20] sm:$0xff]
        %v6210 = vld [vmem:[%s8 + $0x28] sm:$0xff]
        %v6211 = vld [vmem:[%s8 + $0x30] sm:$0xff]
        %v6212 = vld [vmem:[%s8 + $0x38] sm:$0xff]
        %v6213 = vld [vmem:[%s8 + $0x40] sm:$0xff]
        %v6214 = vld [vmem:[%s8 + $0x48] sm:$0xff]
        %v6215 = vld [vmem:[%s8 + $0x50] sm:$0xff]
        %v6216 = vld [vmem:[%s8 + $0x58] sm:$0xff]
        %v6217 = vld [vmem:[%s8 + $0x60] sm:$0xff]
        %v6218 = vld [vmem:[%s8 + $0x68] sm:$0xff]
        %v6219 = vld [vmem:[%s8 + $0x70] sm:$0xff]
        %v6220 = vld [vmem:[%s8 + $0x78] sm:$0xff]
        %6222 = vset.pattern.permute.xlu0 0
        %6223 = vperm.xlu0 %6222, %v6205
        %v6224 = vpop.permute.xlu0 %6223
        %6227 = vset.pattern.permute.xlu0 0
        %6228 = vperm.xlu0 %6227, %v6206
        %v6229 = vpop.permute.xlu0 %6228
        %6232 = vset.pattern.permute.xlu0 0
        %6233 = vperm.xlu0 %6232, %v6207
        %v6234 = vpop.permute.xlu0 %6233
        %6237 = vset.pattern.permute.xlu0 0
        %6238 = vperm.xlu0 %6237, %v6208
        %v6239 = vpop.permute.xlu0 %6238
        %6242 = vset.pattern.permute.xlu0 0
        %6243 = vperm.xlu0 %6242, %v6209
        %v6244 = vpop.permute.xlu0 %6243
        %6247 = vset.pattern.permute.xlu0 0
        %6248 = vperm.xlu0 %6247, %v6210
        %v6249 = vpop.permute.xlu0 %6248
        %6252 = vset.pattern.permute.xlu0 0
        %6253 = vperm.xlu0 %6252, %v6211
        %v6254 = vpop.permute.xlu0 %6253
        %6257 = vset.pattern.permute.xlu0 0
        %6258 = vperm.xlu0 %6257, %v6212
        %v6259 = vpop.permute.xlu0 %6258
        %6262 = vset.pattern.permute.xlu0 0
        %6263 = vperm.xlu0 %6262, %v6213
        %v6264 = vpop.permute.xlu0 %6263
        %6267 = vset.pattern.permute.xlu0 0
        %6268 = vperm.xlu0 %6267, %v6214
        %v6269 = vpop.permute.xlu0 %6268
        %6272 = vset.pattern.permute.xlu0 0
        %6273 = vperm.xlu0 %6272, %v6215
        %v6274 = vpop.permute.xlu0 %6273
        %6277 = vset.pattern.permute.xlu0 0
        %6278 = vperm.xlu0 %6277, %v6216
        %v6279 = vpop.permute.xlu0 %6278
        %6282 = vset.pattern.permute.xlu0 0
        %6283 = vperm.xlu0 %6282, %v6217
        %v6284 = vpop.permute.xlu0 %6283
        %6287 = vset.pattern.permute.xlu0 0
        %6288 = vperm.xlu0 %6287, %v6218
        %v6289 = vpop.permute.xlu0 %6288
        %6292 = vset.pattern.permute.xlu0 0
        %6293 = vperm.xlu0 %6292, %v6219
        %v6294 = vpop.permute.xlu0 %6293
        %6297 = vset.pattern.permute.xlu0 0
        %6298 = vperm.xlu0 %6297, %v6220
        %v6299 = vpop.permute.xlu0 %6298
        %v6317 = vunpack.c.l.b16 %v6189
        %v6318 = vunpack.c.l.b16 %v6190
        %v6319 = vunpack.c.l.b16 %v6191
        %v6320 = vunpack.c.l.b16 %v6192
        %v6321 = vunpack.c.l.b16 %v6193
        %v6322 = vunpack.c.l.b16 %v6194
        %v6323 = vunpack.c.l.b16 %v6195
        %v6324 = vunpack.c.l.b16 %v6196
        %v6325 = vunpack.c.l.b16 %v6197
        %v6326 = vunpack.c.l.b16 %v6198
        %v6327 = vunpack.c.l.b16 %v6199
        %v6328 = vunpack.c.l.b16 %v6200
        %v6329 = vunpack.c.l.b16 %v6201
        %v6330 = vunpack.c.l.b16 %v6202
        %v6331 = vunpack.c.l.b16 %v6203
        %v6332 = vunpack.c.l.b16 %v6204
        %v6333 = vpack.c.b16 %v6318, %v6317
        %v6334 = vpack.c.b16 %v6320, %v6319
        %v6335 = vpack.c.b16 %v6322, %v6321
        %v6336 = vpack.c.b16 %v6324, %v6323
        %v6337 = vpack.c.b16 %v6326, %v6325
        %v6338 = vpack.c.b16 %v6328, %v6327
        %v6339 = vpack.c.b16 %v6330, %v6329
        %v6340 = vpack.c.b16 %v6332, %v6331
        %6349 = vmatprep.subr.bf16.mxu0 0
        %6350 = vmatpush1.bf16.msra.mxu0 %v6181
        %6351 = vmatprep.subr.bf16.mxu0 0
        %6352 = vmatpush1.bf16.msra.mxu0 %v6182
        %6353 = vmatprep.subr.bf16.mxu0 0
        %6354 = vmatpush1.bf16.msra.mxu0 %v6183
        %6355 = vmatprep.subr.bf16.mxu0 0
        %6356 = vmatpush1.bf16.msra.mxu0 %v6184
        %6357 = vmatprep.subr.bf16.mxu0 0
        %6358 = vmatpush1.bf16.msra.mxu0 %v6185
        %6359 = vmatprep.subr.bf16.mxu0 0
        %6360 = vmatpush1.bf16.msra.mxu0 %v6186
        %6361 = vmatprep.subr.bf16.mxu0 0
        %6362 = vmatpush1.bf16.msra.mxu0 %v6187
        %6363 = vmatprep.subr.bf16.mxu0 0
        %6364 = vmatpush1.bf16.msra.mxu0 %v6188
        %6365 = vmatprep.subr.bf16.mxu0 0
        %6366 = vmatpush1.bf16.msra.mxu0 0
        %6367 = vmatprep.subr.bf16.mxu0 0
        %6368 = vmatpush1.bf16.msra.mxu0 0
        %6369 = vmatprep.subr.bf16.mxu0 0
        %6370 = vmatpush1.bf16.msra.mxu0 0
        %6371 = vmatprep.subr.bf16.mxu0 0
        %6372 = vmatpush1.bf16.msra.mxu0 0
        %6373 = vmatprep.subr.bf16.mxu0 0
        %6374 = vmatpush1.bf16.msra.mxu0 0
        %6375 = vmatprep.subr.bf16.mxu0 0
        %6376 = vmatpush1.bf16.msra.mxu0 0
        %6377 = vmatprep.subr.bf16.mxu0 0
        %6378 = vmatpush1.bf16.msra.mxu0 0
        %6379 = vmatprep.subr.bf16.mxu0 0
        %6380 = vmatpush1.bf16.msra.mxu0 0
        %6381 = vmatprep.mubr.bf16.mxu0 0
        %6382 = vmatmul.mubr.bf16.gmra.mrb[0].mxu0 %v6333
        %v6383 = vpop.f32.mrb[0].mxu0
        %v6384 = vadd.f32 %v6224, %v6383
        %v6385 = vpop.f32.mrb[0].mxu0
        %v6386 = vpop.f32.mrb[0].mxu0
        %v6387 = vadd.f32 %v6229, %v6386
        %v6388 = vpop.f32.mrb[0].mxu0
        %6389 = vmatprep.mubr.bf16.mxu0 0
        %6390 = vmatmul.mubr.bf16.gmra.mrb[0].mxu0 %v6334
        %v6391 = vpop.f32.mrb[0].mxu0
        %v6392 = vadd.f32 %v6234, %v6391
        %v6393 = vpop.f32.mrb[0].mxu0
        %v6394 = vpop.f32.mrb[0].mxu0
        %v6395 = vadd.f32 %v6239, %v6394
        %v6396 = vpop.f32.mrb[0].mxu0
        %6397 = vmatprep.mubr.bf16.mxu0 0
        %6398 = vmatmul.mubr.bf16.gmra.mrb[0].mxu0 %v6335
        %v6399 = vpop.f32.mrb[0].mxu0
        %v6400 = vadd.f32 %v6244, %v6399
        %v6401 = vpop.f32.mrb[0].mxu0
        %v6402 = vpop.f32.mrb[0].mxu0
        %v6403 = vadd.f32 %v6249, %v6402
        %v6404 = vpop.f32.mrb[0].mxu0
        %6405 = vmatprep.mubr.bf16.mxu0 0
        %6406 = vmatmul.mubr.bf16.gmra.mrb[0].mxu0 %v6336
        %v6407 = vpop.f32.mrb[0].mxu0
        %v6408 = vadd.f32 %v6254, %v6407
        %v6409 = vpop.f32.mrb[0].mxu0
        %v6410 = vpop.f32.mrb[0].mxu0
        %v6411 = vadd.f32 %v6259, %v6410
        %v6412 = vpop.f32.mrb[0].mxu0
        %6413 = vmatprep.mubr.bf16.mxu0 0
        %6414 = vmatmul.mubr.bf16.gmra.mrb[0].mxu0 %v6337
        %v6415 = vpop.f32.mrb[0].mxu0
        %v6416 = vadd.f32 %v6264, %v6415
        %v6417 = vpop.f32.mrb[0].mxu0
        %v6418 = vpop.f32.mrb[0].mxu0
        %v6419 = vadd.f32 %v6269, %v6418
        %v6420 = vpop.f32.mrb[0].mxu0
        %6421 = vmatprep.mubr.bf16.mxu0 0
        %6422 = vmatmul.mubr.bf16.gmra.mrb[0].mxu0 %v6338
        %v6423 = vpop.f32.mrb[0].mxu0
        %v6424 = vadd.f32 %v6274, %v6423
        %v6425 = vpop.f32.mrb[0].mxu0
        %v6426 = vpop.f32.mrb[0].mxu0
        %v6427 = vadd.f32 %v6279, %v6426
        %v6428 = vpop.f32.mrb[0].mxu0
        %6429 = vmatprep.mubr.bf16.mxu0 0
        %6430 = vmatmul.mubr.bf16.gmra.mrb[0].mxu0 %v6339
        %v6431 = vpop.f32.mrb[0].mxu0
        %v6432 = vadd.f32 %v6284, %v6431
        %v6433 = vpop.f32.mrb[0].mxu0
        %v6434 = vpop.f32.mrb[0].mxu0
        %v6435 = vadd.f32 %v6289, %v6434
        %v6436 = vpop.f32.mrb[0].mxu0
        %6437 = vmatprep.mubr.bf16.mxu0 0
        %6438 = vmatmul.mubr.bf16.gmra.mrb[0].mxu0 %v6340
        %v6439 = vpop.f32.mrb[0].mxu0
        %v6440 = vadd.f32 %v6294, %v6439
        %v6441 = vpop.f32.mrb[0].mxu0
        %v6442 = vpop.f32.mrb[0].mxu0
        %v6443 = vadd.f32 %v6299, %v6442
        %v6444 = vpop.f32.mrb[0].mxu0
        %6445 = vdwg.mxu0
        %v6446 = vmax.f32 %v6384, 0.0
        %v6447 = vmax.f32 %v6387, 0.0
        %v6448 = vmax.f32 %v6392, 0.0
        %v6449 = vmax.f32 %v6395, 0.0
        %v6450 = vmax.f32 %v6400, 0.0
        %v6451 = vmax.f32 %v6403, 0.0
        %v6452 = vmax.f32 %v6408, 0.0
        %v6453 = vmax.f32 %v6411, 0.0
        %v6454 = vmax.f32 %v6416, 0.0
        %v6455 = vmax.f32 %v6419, 0.0
        %v6456 = vmax.f32 %v6424, 0.0
        %v6457 = vmax.f32 %v6427, 0.0
        %v6458 = vmax.f32 %v6432, 0.0
        %v6459 = vmax.f32 %v6435, 0.0
        %v6460 = vmax.f32 %v6440, 0.0
        %v6461 = vmax.f32 %v6443, 0.0
        %v6462 = vpack.c.bf16 %v6447, %v6446
        %v6463 = vpack.c.bf16 %v6449, %v6448
        %v6464 = vpack.c.bf16 %v6451, %v6450
        %v6465 = vpack.c.bf16 %v6453, %v6452
        %v6466 = vpack.c.bf16 %v6455, %v6454
        %v6467 = vpack.c.bf16 %v6457, %v6456
        %v6468 = vpack.c.bf16 %v6459, %v6458
        %v6469 = vpack.c.bf16 %v6461, %v6460
        %v6470 = vld [vmem:[%s9] sm:$0xf]
        %v6471 = vld [vmem:[%s9 + $0x4] sm:$0xf]
        %v6472 = vld [vmem:[%s9 + $0x8] sm:$0xf]
        %v6473 = vld [vmem:[%s9 + $0xc] sm:$0xf]
        %v6474 = vld [vmem:[%s9 + $0x10] sm:$0xf]
        %v6475 = vld [vmem:[%s9 + $0x14] sm:$0xf]
        %v6476 = vld [vmem:[%s9 + $0x18] sm:$0xf]
        %v6477 = vld [vmem:[%s9 + $0x1c] sm:$0xf]
        %v6478 = vld [vmem:[%s9 + $0x20] sm:$0xf]
        %v6479 = vld [vmem:[%s9 + $0x24] sm:$0xf]
        %v6480 = vld [vmem:[%s9 + $0x28] sm:$0xf]
        %v6481 = vld [vmem:[%s9 + $0x2c] sm:$0xf]
        %v6482 = vld [vmem:[%s9 + $0x30] sm:$0xf]
        %v6483 = vld [vmem:[%s9 + $0x34] sm:$0xf]
        %v6484 = vld [vmem:[%s9 + $0x38] sm:$0xf]
        %v6485 = vld [vmem:[%s9 + $0x3c] sm:$0xf]
        %v6486 = vld [vmem:[%s10] sm:$0xff]
        %v6487 = vld [vmem:[%s10 + $0x8] sm:$0xff]
        %v6488 = vld [vmem:[%s10 + $0x10] sm:$0xff]
        %v6489 = vld [vmem:[%s10 + $0x18] sm:$0xff]
        %v6490 = vld [vmem:[%s10 + $0x20] sm:$0xff]
        %v6491 = vld [vmem:[%s10 + $0x28] sm:$0xff]
        %v6492 = vld [vmem:[%s10 + $0x30] sm:$0xff]
        %v6493 = vld [vmem:[%s10 + $0x38] sm:$0xff]
        %v6494 = vld [vmem:[%s10 + $0x40] sm:$0xff]
        %v6495 = vld [vmem:[%s10 + $0x48] sm:$0xff]
        %v6496 = vld [vmem:[%s10 + $0x50] sm:$0xff]
        %v6497 = vld [vmem:[%s10 + $0x58] sm:$0xff]
        %v6498 = vld [vmem:[%s10 + $0x60] sm:$0xff]
        %v6499 = vld [vmem:[%s10 + $0x68] sm:$0xff]
        %v6500 = vld [vmem:[%s10 + $0x70] sm:$0xff]
        %v6501 = vld [vmem:[%s10 + $0x78] sm:$0xff]
        %6503 = vset.pattern.permute.xlu0 0
        %6504 = vperm.xlu0 %6503, %v6486
        %v6505 = vpop.permute.xlu0 %6504
        %6508 = vset.pattern.permute.xlu0 0
        %6509 = vperm.xlu0 %6508, %v6487
        %v6510 = vpop.permute.xlu0 %6509
        %6513 = vset.pattern.permute.xlu0 0
        %6514 = vperm.xlu0 %6513, %v6488
        %v6515 = vpop.permute.xlu0 %6514
        %6518 = vset.pattern.permute.xlu0 0
        %6519 = vperm.xlu0 %6518, %v6489
        %v6520 = vpop.permute.xlu0 %6519
        %6523 = vset.pattern.permute.xlu0 0
        %6524 = vperm.xlu0 %6523, %v6490
        %v6525 = vpop.permute.xlu0 %6524
        %6528 = vset.pattern.permute.xlu0 0
        %6529 = vperm.xlu0 %6528, %v6491
        %v6530 = vpop.permute.xlu0 %6529
        %6533 = vset.pattern.permute.xlu0 0
        %6534 = vperm.xlu0 %6533, %v6492
        %v6535 = vpop.permute.xlu0 %6534
        %6538 = vset.pattern.permute.xlu0 0
        %6539 = vperm.xlu0 %6538, %v6493
        %v6540 = vpop.permute.xlu0 %6539
        %6543 = vset.pattern.permute.xlu0 0
        %6544 = vperm.xlu0 %6543, %v6494
        %v6545 = vpop.permute.xlu0 %6544
        %6548 = vset.pattern.permute.xlu0 0
        %6549 = vperm.xlu0 %6548, %v6495
        %v6550 = vpop.permute.xlu0 %6549
        %6553 = vset.pattern.permute.xlu0 0
        %6554 = vperm.xlu0 %6553, %v6496
        %v6555 = vpop.permute.xlu0 %6554
        %6558 = vset.pattern.permute.xlu0 0
        %6559 = vperm.xlu0 %6558, %v6497
        %v6560 = vpop.permute.xlu0 %6559
        %6563 = vset.pattern.permute.xlu0 0
        %6564 = vperm.xlu0 %6563, %v6498
        %v6565 = vpop.permute.xlu0 %6564
        %6568 = vset.pattern.permute.xlu0 0
        %6569 = vperm.xlu0 %6568, %v6499
        %v6570 = vpop.permute.xlu0 %6569
        %6573 = vset.pattern.permute.xlu0 0
        %6574 = vperm.xlu0 %6573, %v6500
        %v6575 = vpop.permute.xlu0 %6574
        %6578 = vset.pattern.permute.xlu0 0
        %6579 = vperm.xlu0 %6578, %v6501
        %v6580 = vpop.permute.xlu0 %6579
        %v6598 = vunpack.c.l.b16 %v6470
        %v6599 = vunpack.c.l.b16 %v6471
        %v6600 = vunpack.c.l.b16 %v6472
        %v6601 = vunpack.c.l.b16 %v6473
        %v6602 = vunpack.c.l.b16 %v6474
        %v6603 = vunpack.c.l.b16 %v6475
        %v6604 = vunpack.c.l.b16 %v6476
        %v6605 = vunpack.c.l.b16 %v6477
        %v6606 = vunpack.c.l.b16 %v6478
        %v6607 = vunpack.c.l.b16 %v6479
        %v6608 = vunpack.c.l.b16 %v6480
        %v6609 = vunpack.c.l.b16 %v6481
        %v6610 = vunpack.c.l.b16 %v6482
        %v6611 = vunpack.c.l.b16 %v6483
        %v6612 = vunpack.c.l.b16 %v6484
        %v6613 = vunpack.c.l.b16 %v6485
        %v6614 = vpack.c.b16 %v6599, %v6598
        %v6615 = vpack.c.b16 %v6601, %v6600
        %v6616 = vpack.c.b16 %v6603, %v6602
        %v6617 = vpack.c.b16 %v6605, %v6604
        %v6618 = vpack.c.b16 %v6607, %v6606
        %v6619 = vpack.c.b16 %v6609, %v6608
        %v6620 = vpack.c.b16 %v6611, %v6610
        %v6621 = vpack.c.b16 %v6613, %v6612
        %6630 = vmatprep.subr.bf16.mxu0 0
        %6631 = vmatpush1.bf16.msra.mxu0 %v6462
        %6632 = vmatprep.subr.bf16.mxu0 0
        %6633 = vmatpush1.bf16.msra.mxu0 %v6463
        %6634 = vmatprep.subr.bf16.mxu0 0
        %6635 = vmatpush1.bf16.msra.mxu0 %v6464
        %6636 = vmatprep.subr.bf16.mxu0 0
        %6637 = vmatpush1.bf16.msra.mxu0 %v6465
        %6638 = vmatprep.subr.bf16.mxu0 0
        %6639 = vmatpush1.bf16.msra.mxu0 %v6466
        %6640 = vmatprep.subr.bf16.mxu0 0
        %6641 = vmatpush1.bf16.msra.mxu0 %v6467
        %6642 = vmatprep.subr.bf16.mxu0 0
        %6643 = vmatpush1.bf16.msra.mxu0 %v6468
        %6644 = vmatprep.subr.bf16.mxu0 0
        %6645 = vmatpush1.bf16.msra.mxu0 %v6469
        %6646 = vmatprep.subr.bf16.mxu0 0
        %6647 = vmatpush1.bf16.msra.mxu0 0
        %6648 = vmatprep.subr.bf16.mxu0 0
        %6649 = vmatpush1.bf16.msra.mxu0 0
        %6650 = vmatprep.subr.bf16.mxu0 0
        %6651 = vmatpush1.bf16.msra.mxu0 0
        %6652 = vmatprep.subr.bf16.mxu0 0
        %6653 = vmatpush1.bf16.msra.mxu0 0
        %6654 = vmatprep.subr.bf16.mxu0 0
        %6655 = vmatpush1.bf16.msra.mxu0 0
        %6656 = vmatprep.subr.bf16.mxu0 0
        %6657 = vmatpush1.bf16.msra.mxu0 0
        %6658 = vmatprep.subr.bf16.mxu0 0
        %6659 = vmatpush1.bf16.msra.mxu0 0
        %6660 = vmatprep.subr.bf16.mxu0 0
        %6661 = vmatpush1.bf16.msra.mxu0 0
        %6662 = vmatprep.mubr.bf16.mxu0 0
        %6663 = vmatmul.mubr.bf16.gmra.mrb[0].mxu0 %v6614
        %v6664 = vpop.f32.mrb[0].mxu0
        %v6665 = vadd.f32 %v6505, %v6664
        %v6666 = vpop.f32.mrb[0].mxu0
        %v6667 = vpop.f32.mrb[0].mxu0
        %v6668 = vadd.f32 %v6510, %v6667
        %v6669 = vpop.f32.mrb[0].mxu0
        %6670 = vmatprep.mubr.bf16.mxu0 0
        %6671 = vmatmul.mubr.bf16.gmra.mrb[0].mxu0 %v6615
        %v6672 = vpop.f32.mrb[0].mxu0
        %v6673 = vadd.f32 %v6515, %v6672
        %v6674 = vpop.f32.mrb[0].mxu0
        %v6675 = vpop.f32.mrb[0].mxu0
        %v6676 = vadd.f32 %v6520, %v6675
        %v6677 = vpop.f32.mrb[0].mxu0
        %6678 = vmatprep.mubr.bf16.mxu0 0
        %6679 = vmatmul.mubr.bf16.gmra.mrb[0].mxu0 %v6616
        %v6680 = vpop.f32.mrb[0].mxu0
        %v6681 = vadd.f32 %v6525, %v6680
        %v6682 = vpop.f32.mrb[0].mxu0
        %v6683 = vpop.f32.mrb[0].mxu0
        %v6684 = vadd.f32 %v6530, %v6683
        %v6685 = vpop.f32.mrb[0].mxu0
        %6686 = vmatprep.mubr.bf16.mxu0 0
        %6687 = vmatmul.mubr.bf16.gmra.mrb[0].mxu0 %v6617
        %v6688 = vpop.f32.mrb[0].mxu0
        %v6689 = vadd.f32 %v6535, %v6688
        %v6690 = vpop.f32.mrb[0].mxu0
        %v6691 = vpop.f32.mrb[0].mxu0
        %v6692 = vadd.f32 %v6540, %v6691
        %v6693 = vpop.f32.mrb[0].mxu0
        %6694 = vmatprep.mubr.bf16.mxu0 0
        %6695 = vmatmul.mubr.bf16.gmra.mrb[0].mxu0 %v6618
        %v6696 = vpop.f32.mrb[0].mxu0
        %v6697 = vadd.f32 %v6545, %v6696
        %v6698 = vpop.f32.mrb[0].mxu0
        %v6699 = vpop.f32.mrb[0].mxu0
        %v6700 = vadd.f32 %v6550, %v6699
        %v6701 = vpop.f32.mrb[0].mxu0
        %6702 = vmatprep.mubr.bf16.mxu0 0
        %6703 = vmatmul.mubr.bf16.gmra.mrb[0].mxu0 %v6619
        %v6704 = vpop.f32.mrb[0].mxu0
        %v6705 = vadd.f32 %v6555, %v6704
        %v6706 = vpop.f32.mrb[0].mxu0
        %v6707 = vpop.f32.mrb[0].mxu0
        %v6708 = vadd.f32 %v6560, %v6707
        %v6709 = vpop.f32.mrb[0].mxu0
        %6710 = vmatprep.mubr.bf16.mxu0 0
        %6711 = vmatmul.mubr.bf16.gmra.mrb[0].mxu0 %v6620
        %v6712 = vpop.f32.mrb[0].mxu0
        %v6713 = vadd.f32 %v6565, %v6712
        %v6714 = vpop.f32.mrb[0].mxu0
        %v6715 = vpop.f32.mrb[0].mxu0
        %v6716 = vadd.f32 %v6570, %v6715
        %v6717 = vpop.f32.mrb[0].mxu0
        %6718 = vmatprep.mubr.bf16.mxu0 0
        %6719 = vmatmul.mubr.bf16.gmra.mrb[0].mxu0 %v6621
        %v6720 = vpop.f32.mrb[0].mxu0
        %v6721 = vadd.f32 %v6575, %v6720
        %v6722 = vpop.f32.mrb[0].mxu0
        %v6723 = vpop.f32.mrb[0].mxu0
        %v6724 = vadd.f32 %v6580, %v6723
        %v6725 = vpop.f32.mrb[0].mxu0
        %6726 = vdwg.mxu0
        %vm6727 = vcmp.eq.s32.totalorder %v4098, %v4131
        %v6728 = vsel %vm6727, 1, 0
        %v6729 = vcvt.s32.f32 %v6728
        %v6730 = vpack.c.bf16 %v6729, %v6729
        %v6731 = vpack.c.bf16 %v6668, %v6665
        %v6732 = vpack.c.bf16 %v6676, %v6673
        %v6733 = vpack.c.bf16 %v6684, %v6681
        %v6734 = vpack.c.bf16 %v6692, %v6689
        %v6735 = vpack.c.bf16 %v6700, %v6697
        %v6736 = vpack.c.bf16 %v6708, %v6705
        %v6737 = vpack.c.bf16 %v6716, %v6713
        %v6738 = vpack.c.bf16 %v6724, %v6721
        %vm6739 = vcmask 64512
        %v6741 = vsel %vm6739, %v6730, 0
        %v6744 = vsel %vm6739, %v6731, 0
        %v6747 = vsel %vm6739, %v6732, 0
        %v6750 = vsel %vm6739, %v6733, 0
        %v6753 = vsel %vm6739, %v6734, 0
        %v6756 = vsel %vm6739, %v6735, 0
        %v6759 = vsel %vm6739, %v6736, 0
        %v6762 = vsel %vm6739, %v6737, 0
        %v6765 = vsel %vm6739, %v6738, 0
        %6767 = vmatprep.subr.bf16.mxu0 0
        %6768 = vmatpush1.bf16.xpose.msra.mxu0 %v6744
        %6769 = vmatprep.subr.bf16.mxu0 0
        %6770 = vmatpush1.bf16.xpose.msra.mxu0 %v6747
        %6771 = vmatprep.subr.bf16.mxu0 0
        %6772 = vmatpush1.bf16.xpose.msra.mxu0 %v6750
        %6773 = vmatprep.subr.bf16.mxu0 0
        %6774 = vmatpush1.bf16.xpose.msra.mxu0 %v6753
        %6775 = vmatprep.subr.bf16.mxu0 0
        %6776 = vmatpush1.bf16.xpose.msra.mxu0 %v6756
        %6777 = vmatprep.subr.bf16.mxu0 0
        %6778 = vmatpush1.bf16.xpose.msra.mxu0 %v6759
        %6779 = vmatprep.subr.bf16.mxu0 0
        %6780 = vmatpush1.bf16.xpose.msra.mxu0 %v6762
        %6781 = vmatprep.subr.bf16.mxu0 0
        %6782 = vmatpush1.bf16.xpose.msra.mxu0 %v6765
        %6783 = vmatprep.subr.bf16.mxu0 0
        %6784 = vmatpush1.bf16.xpose.msra.mxu0 0
        %6785 = vmatprep.subr.bf16.mxu0 0
        %6786 = vmatpush1.bf16.xpose.msra.mxu0 0
        %6787 = vmatprep.subr.bf16.mxu0 0
        %6788 = vmatpush1.bf16.xpose.msra.mxu0 0
        %6789 = vmatprep.subr.bf16.mxu0 0
        %6790 = vmatpush1.bf16.xpose.msra.mxu0 0
        %6791 = vmatprep.subr.bf16.mxu0 0
        %6792 = vmatpush1.bf16.xpose.msra.mxu0 0
        %6793 = vmatprep.subr.bf16.mxu0 0
        %6794 = vmatpush1.bf16.xpose.msra.mxu0 0
        %6795 = vmatprep.subr.bf16.mxu0 0
        %6796 = vmatpush1.bf16.xpose.msra.mxu0 0
        %6797 = vmatprep.subr.bf16.mxu0 0
        %6798 = vmatpush1.bf16.xpose.msra.mxu0 0
        %6799 = vmatprep.mubr.bf16.mxu0 0
        %6800 = vmatmul.mubr.bf16.gmra.mrb[0].mxu0 %v6741
        %v6801 = vpop.f32.mrb[0].mxu0
        %v6802 = vadd.f32 0.0, %v6801
        %v6803 = vpop.f32.mrb[0].mxu0
        %v6804 = vpop.f32.mrb[0].mxu0
        %v6805 = vpop.f32.mrb[0].mxu0
        %6806 = vdwg.mxu0
        %6807 = vst [vmem:[%s463] sm:$0xff] %v6802
        %s6808 = sand.u32 %s269, 1
        %s6809 = scalar_lea.sflag [#allocation4], %s6808
        %s6810 = sand.u32 %s269, 1
        %s6811 = smul.addr %s6810, 8
        %s6812 = scalar_lea.vmem [#allocation3], %s6811
        // Predicated region
        $region103: #{lenet_forward.1} parent=97 // pred_check
          %p6813 = pneg %p279
        $region104: #{lenet_forward.1} parent=97 // pred_check_branch
          %6815 = sbr.rel (%p6813) target = $region106
        $region105: #{lenet_forward.1} parent=97 // pred_region
          %s6817 = ssub.s32 128, 128
          %6818 = vsyncadd %s6809, %s6817
          %s6819 = smul.addr %s25, 128
          %s6820 = scalar_lea.hbm %s11, %s6819
          %s6822 = sshll.u32 %s6812, 4
          %s6823 = int_to_ptr.vmem [resolvable:$true] %s6822
          %6825 = dma.vmem_to_hbm [thread:$0]  %s6823, 128, %s6820, %s6809
        $region106: #{lenet_forward.1} parent=97 // pred_fallthru
          _
      $region98: #{lenet_forward.1} parent=5 // pred_fallthru
        _
      %p6826 = scmp.le.s32.totalorder 2, %s20
      // Predicated region
      $region107: #{lenet_forward.1} parent=5 // pred_check
        %p6827 = pneg %p6826
      $region108: #{lenet_forward.1} parent=5 // pred_check_branch
        %6829 = sbr.rel (%p6827) target = $region110
      $region109: #{lenet_forward.1} parent=5 // pred_region
        %s6830 = ssub.s32 %s20, 2
        // Predicated region
        $region111: #{lenet_forward.1} parent=109 // pred_check
          %p6831 = pneg %p285
        $region112: #{lenet_forward.1} parent=109 // pred_check_branch
          %6833 = sbr.rel (%p6831) target = $region114
        $region113: #{lenet_forward.1} parent=109 // pred_region
          %s6834 = sand.u32 %s270, 1
          %s6835 = scalar_lea.sflag [#allocation4], %s6834
          %s6836 = sand.u32 %s270, 1
          %s6837 = smul.addr %s6836, 8
          %s6838 = scalar_lea.vmem [#allocation3], %s6837
          %6839 = dma.done %s6835, 128
        $region114: #{lenet_forward.1} parent=109 // pred_fallthru
          _
      $region110: #{lenet_forward.1} parent=5 // pred_fallthru
        _
    $region6: #{lenet_forward.1} parent=1 // loop_footer
      %s24 = sadd.s32 1, %s20
    $region7: #{lenet_forward.1} parent=1 // loop_footer_branch
      %19 = sbr.rel target = $region3
    $region8: #{lenet_forward.1} parent=1 // loop_exit
      _
    %6840 = vsyncpa [#allocation4], 1
    %s6841 = scalar_lea.sflag [#allocation4], 1
    %6842 = vsyncpa %s6841, 1

</llo_original>
